<compile_context>
chip_gen: v7x
topology: tpu7x:2x2x1
jax: 0.10.0
libtpu: 0.0.40
codegen_flags: <defaults>
</compile_context>

<pallas_src>
import functools

import jax
import jax.numpy as jnp
from jax.experimental import pallas as pl
from jax.experimental.pallas import tpu as pltpu

# ---------------- problem sizes (small, consistent with the module) ----------------
B = 2          # batch
N = 16         # number of input set elements
D = 32         # feature dim
NS = 4         # num_slots
ITERS = 3
EPS = 1e-8
HIDDEN = 128   # max(dim, 128)
SCALE = D ** (-0.5)
LN_EPS = 1e-5  # torch LayerNorm default

BN = B * N     # 32 folded input rows
BS = B * NS    # 8  folded slot rows
OUT_W = 128    # lane-dense packed output width (>= D + N)


def _layernorm(x, w, b):
    mu = jnp.mean(x, axis=-1, keepdims=True)
    var = jnp.mean((x - mu) ** 2, axis=-1, keepdims=True)
    return (x - mu) * jax.lax.rsqrt(var + LN_EPS) * w + b


# ---------------- pure-JAX reference (unpacked params, exact divisions) -------------
def _slot_attention_ref(x, slots0,
                        ln_in_w, ln_in_b, ln_sl_w, ln_sl_b, ln_ff_w, ln_ff_b,
                        wq, bq, wk, bk, wv, bv,
                        wir, wiz, win_, whr, whz, whn,
                        bir, biz, bin_, bhr, bhz, bhn,
                        w1, w1m, b1, w2, w2m, b2):
    """Per-example slot attention. x: (N, D), slots0: (NS, D)."""
    dot = functools.partial(jnp.dot, preferred_element_type=jnp.float32)

    x_n = _layernorm(x, ln_in_w, ln_in_b)
    k = dot(x_n, wk) + bk                 # (N, D)
    v = dot(x_n, wv) + bv                 # (N, D)

    slots = slots0
    attn = jnp.zeros((NS, N), jnp.float32)
    for _ in range(ITERS):
        slots_prev = slots
        s_n = _layernorm(slots, ln_sl_w, ln_sl_b)
        q = dot(s_n, wq) + bq             # (NS, D)

        dots = dot(q, k.T) * SCALE        # (NS, N)
        # softmax over the slot axis (torch dim=1 of (b, i, j))
        m = jnp.max(dots, axis=0, keepdims=True)
        e = jnp.exp(dots - m)
        attn = e / jnp.sum(e, axis=0, keepdims=True)

        attn_ = attn + EPS
        attn_ = attn_ / jnp.sum(attn_, axis=-1, keepdims=True)
        updates = dot(attn_, v)           # (NS, D)

        # GRUCell (PyTorch semantics: r, z, n gates)
        r = jax.nn.sigmoid(dot(updates, wir) + bir + dot(slots_prev, whr) + bhr)
        z = jax.nn.sigmoid(dot(updates, wiz) + biz + dot(slots_prev, whz) + bhz)
        nn_ = jnp.tanh(dot(updates, win_) + bin_ + r * (dot(slots_prev, whn) + bhn))
        slots = (1.0 - z) * nn_ + z * slots_prev

        # DeepSet residual MLP on norm_pre_ff(slots)
        y = _layernorm(slots, ln_ff_w, ln_ff_b)
        h = jax.nn.relu(dot(y, w1) + dot(jnp.mean(y, axis=0, keepdims=True), w1m) + b1)
        out = dot(h, w2) + dot(jnp.mean(h, axis=0, keepdims=True), w2m) + b2
        slots = slots + out

    return slots, attn


# ---------------- Pallas kernel (batch-folded, packed params) -----------------------
def slot_attention_kernel(x_ref, slots0_ref, w_ref, w1_ref, w2_ref, vec_ref, out_ref):
    dot = functools.partial(jnp.dot, preferred_element_type=jnp.float32)

    x = x_ref[...]            # (BN, D)
    slots = slots0_ref[...]   # (BS, D)

    W = w_ref[...]            # (D, 9D) = [wq*scale | wk | wv | wir | wiz | win | whr | whz | whn]
    wq = W[:, 0:D]            # attention scale already folded in
    wkv = W[:, D:3 * D]       # (D, 2D)
    wi = W[:, 3 * D:6 * D]    # (D, 3D)  GRU input gates [r|z|n]
    wh = W[:, 6 * D:9 * D]    # (D, 3D)  GRU hidden gates [r|z|n]
    w1c = w1_ref[...]         # (2D, HIDDEN)   = vstack([w1, w1m])
    w2c = w2_ref[...]         # (2*HIDDEN, D)  = vstack([w2, w2m])

    V = vec_ref[...]          # (16, 128) lane-padded vector slab
    ln_in_w = V[0:1, :D]; ln_in_b = V[1:2, :D]
    ln_sl_w = V[2:3, :D]; ln_sl_b = V[3:4, :D]
    ln_ff_w = V[4:5, :D]; ln_ff_b = V[5:6, :D]
    bq = V[6:7, :D]                  # already scaled
    bkv = V[7:8, :2 * D]
    bi = V[8:9, :3 * D]
    bh = V[9:10, :3 * D]
    b1 = V[10:11, :HIDDEN]
    b2 = V[11:12, :D]

    # loop-invariant broadcasts, hoisted out of the iteration loop
    ln_sl_w_b = jnp.broadcast_to(ln_sl_w, (BS, D))
    ln_sl_b_b = jnp.broadcast_to(ln_sl_b, (BS, D))
    ln_ff_w_b = jnp.broadcast_to(ln_ff_w, (BS, D))
    ln_ff_b_b = jnp.broadcast_to(ln_ff_b, (BS, D))
    bq_b = jnp.broadcast_to(bq, (BS, D))
    bi_b = jnp.broadcast_to(bi, (BS, 3 * D))
    bh_b = jnp.broadcast_to(bh, (BS, 3 * D))
    b1_b = jnp.broadcast_to(b1, (BS, HIDDEN))
    b2_b = jnp.broadcast_to(b2, (BS, D))

    # input layernorm + fused k/v projection (whole batch at once)
    x_n = _layernorm(x, ln_in_w, ln_in_b)
    kv = dot(x_n, wkv) + bkv               # (BN, 2D)
    k3 = kv[:, :D].reshape(B, N, D)
    v3 = kv[:, D:].reshape(B, N, D)

    attn = jnp.zeros((B, NS, N), jnp.float32)
    for _ in range(ITERS):
        slots_prev = slots
        s_n = _layernorm(slots, ln_sl_w_b, ln_sl_b_b)
        q = dot(s_n, wq) + bq_b            # (BS, D), scale folded in
        dots = jnp.einsum('bid,bjd->bij', q.reshape(B, NS, D), k3,
                          preferred_element_type=jnp.float32)      # (B, NS, N)

        # softmax over the slot axis (dim=1)
        m = jnp.max(dots, axis=1, keepdims=True)
        e = jnp.exp(dots - m)
        attn = e * pl.reciprocal(jnp.sum(e, axis=1, keepdims=True), approx=True)

        attn_ = attn + EPS
        attn_ = attn_ * pl.reciprocal(jnp.sum(attn_, axis=-1, keepdims=True),
                                      approx=True)
        updates = jnp.einsum('bij,bjd->bid', attn_, v3,
                             preferred_element_type=jnp.float32).reshape(BS, D)

        # GRUCell with fused gates: columns [r | z | n]
        gi = dot(updates, wi) + bi_b       # (BS, 3D)
        gh = dot(slots_prev, wh) + bh_b    # (BS, 3D)
        r = jax.nn.sigmoid(gi[:, :D] + gh[:, :D])
        z = jax.nn.sigmoid(gi[:, D:2 * D] + gh[:, D:2 * D])
        n_ = jnp.tanh(gi[:, 2 * D:] + r * gh[:, 2 * D:])
        slots = (1.0 - z) * n_ + z * slots_prev

        # DeepSet residual MLP, mean-term fused into the matmuls
        y = _layernorm(slots, ln_ff_w_b, ln_ff_b_b)                 # (BS, D)
        ym = jnp.mean(y.reshape(B, NS, D), axis=1, keepdims=True)   # (B, 1, D)
        ym_b = jnp.broadcast_to(ym, (B, NS, D)).reshape(BS, D)
        h = jax.nn.relu(dot(jnp.concatenate([y, ym_b], axis=-1), w1c) + b1_b)
        hm = jnp.mean(h.reshape(B, NS, HIDDEN), axis=1, keepdims=True)
        hm_b = jnp.broadcast_to(hm, (B, NS, HIDDEN)).reshape(BS, HIDDEN)
        out = dot(jnp.concatenate([h, hm_b], axis=-1), w2c) + b2_b
        slots = slots + out

    # lane-dense packed output: [slots | attn | zero pad] -> (BS, 128), one store
    attn_flat = attn.reshape(BS, N)
    pad = jnp.zeros((BS, OUT_W - D - N), jnp.float32)
    out_ref[...] = jnp.concatenate([slots, attn_flat, pad], axis=-1)


# ---------------- host-side parameter packing ---------------------------------------
def pack_params(params):
    (ln_in_w, ln_in_b, ln_sl_w, ln_sl_b, ln_ff_w, ln_ff_b,
     wq, bq, wk, bk, wv, bv,
     wir, wiz, win_, whr, whz, whn,
     bir, biz, bin_, bhr, bhz, bhn,
     w1, w1m, b1, w2, w2m, b2) = params

    # fold the attention scale into the q projection
    w_small = jnp.concatenate(
        [wq * SCALE, wk, wv, wir, wiz, win_, whr, whz, whn], axis=1)   # (D, 9D)
    w1_cat = jnp.concatenate([w1, w1m], axis=0)                        # (2D, HIDDEN)
    w2_cat = jnp.concatenate([w2, w2m], axis=0)                        # (2*HIDDEN, D)

    def row(v):  # lane-pad a (1, k) row vector to (1, 128)
        return jnp.pad(v, ((0, 0), (0, 128 - v.shape[1])))

    rows = [ln_in_w, ln_in_b, ln_sl_w, ln_sl_b, ln_ff_w, ln_ff_b,
            bq * SCALE,
            jnp.concatenate([bk, bv], axis=1),
            jnp.concatenate([bir, biz, bin_], axis=1),
            jnp.concatenate([bhr, bhz, bhn], axis=1),
            b1, b2]
    vec_slab = jnp.concatenate([row(r) for r in rows], axis=0)         # (12, 128)
    vec_slab = jnp.pad(vec_slab, ((0, 16 - vec_slab.shape[0]), (0, 0)))  # (16, 128)
    return w_small, w1_cat, w2_cat, vec_slab


# ---------------- wrapper ------------------------------------------------------------
@jax.jit
def slot_attention_forward(inputs, slots_init, w_small, w1_cat, w2_cat, vec_slab):
    """inputs: (B, N, D) f32, slots_init: (B, NS, D) f32, + packed param slabs."""
    x_flat = inputs.reshape(BN, D)
    slots_flat = slots_init.reshape(BS, D)

    out = pl.pallas_call(
        slot_attention_kernel,
        grid=(1,),
        in_specs=[
            pl.BlockSpec((BN, D), lambda i: (0, 0)),
            pl.BlockSpec((BS, D), lambda i: (0, 0)),
            pl.BlockSpec((D, 9 * D), lambda i: (0, 0)),
            pl.BlockSpec((2 * D, HIDDEN), lambda i: (0, 0)),
            pl.BlockSpec((2 * HIDDEN, D), lambda i: (0, 0)),
            pl.BlockSpec((16, 128), lambda i: (0, 0)),
        ],
        out_specs=pl.BlockSpec((BS, OUT_W), lambda i: (0, 0)),
        out_shape=jax.ShapeDtypeStruct((BS, OUT_W), jnp.float32),
        compiler_params=pltpu.CompilerParams(
            dimension_semantics=("arbitrary",),
            vmem_limit_bytes=2 * 1024 * 1024,   # tiny footprint; don't reserve default window
        ),
    )(x_flat, slots_flat, w_small, w1_cat, w2_cat, vec_slab)

    slots_out = out[:, :D].reshape(B, NS, D)
    attn_out = out[:, D:D + N].reshape(B, NS, N)
    return slots_out, attn_out


def make_params(key):
    """Deterministic synthetic parameters (all 2-D, f32)."""
    ks = iter(jax.random.split(key, 40))

    def w(shape, scale=0.2):
        return (scale * jax.random.normal(next(ks), shape)).astype(jnp.float32)

    ln_in_w = jnp.ones((1, D), jnp.float32);  ln_in_b = jnp.zeros((1, D), jnp.float32)
    ln_sl_w = jnp.ones((1, D), jnp.float32);  ln_sl_b = jnp.zeros((1, D), jnp.float32)
    ln_ff_w = jnp.ones((1, D), jnp.float32);  ln_ff_b = jnp.zeros((1, D), jnp.float32)

    wq, wk, wv = w((D, D)), w((D, D)), w((D, D))
    bq, bk, bv = w((1, D), 0.05), w((1, D), 0.05), w((1, D), 0.05)

    # GRUCell weights, already transposed to (in, out)
    wir, wiz, win_ = w((D, D)), w((D, D)), w((D, D))
    whr, whz, whn = w((D, D)), w((D, D)), w((D, D))
    bir, biz, bin_ = w((1, D), 0.05), w((1, D), 0.05), w((1, D), 0.05)
    bhr, bhz, bhn = w((1, D), 0.05), w((1, D), 0.05), w((1, D), 0.05)

    # DeepSet MLP: [HIDDEN, D]
    w1, w1m, b1 = w((D, HIDDEN), 0.1), w((D, HIDDEN), 0.1), w((1, HIDDEN), 0.05)
    w2, w2m, b2 = w((HIDDEN, D), 0.1), w((HIDDEN, D), 0.1), w((1, D), 0.05)

    return [ln_in_w, ln_in_b, ln_sl_w, ln_sl_b, ln_ff_w, ln_ff_b,
            wq, bq, wk, bk, wv, bv,
            wir, wiz, win_, whr, whz, whn,
            bir, biz, bin_, bhr, bhz, bhn,
            w1, w1m, b1, w2, w2m, b2]


if __name__ == "__main__":
    key = jax.random.PRNGKey(0)
    k_in, k_noise, k_mu, k_sig, k_par = jax.random.split(key, 5)

    inputs = jax.random.normal(k_in, (B, N, D), jnp.float32)

    # slots = mu + exp(logsigma) * randn  (noise generated host-side, passed to kernel)
    slots_mu = 0.5 * jax.random.normal(k_mu, (1, 1, D), jnp.float32)
    slots_logsigma = 0.1 * jax.random.normal(k_sig, (1, 1, D), jnp.float32)
    noise = jax.random.normal(k_noise, (B, NS, D), jnp.float32)
    slots_init = slots_mu + jnp.exp(slots_logsigma) * noise

    params = make_params(k_par)
    w_small, w1_cat, w2_cat, vec_slab = pack_params(params)

    slots_out, attn_out = slot_attention_forward(
        inputs, slots_init, w_small, w1_cat, w2_cat, vec_slab)
    jax.block_until_ready((slots_out, attn_out))

    # pure-JAX reference (original unpacked math, vmapped over batch)
    ref_slots, ref_attn = jax.vmap(
        lambda x, s0: _slot_attention_ref(x, s0, *params))(inputs, slots_init)

    assert slots_out.shape == (B, NS, D) and attn_out.shape == (B, NS, N)
    # tolerance accounts for the EUP approximate reciprocal used in the in-kernel
    # softmax normalizations (reference uses exact f32 division)
    assert jnp.allclose(slots_out, ref_slots, rtol=1e-2, atol=1e-2)
    assert jnp.allclose(attn_out, ref_attn, rtol=1e-2, atol=1e-2)

    print("KERNEL_OK")
</pallas_src>

<mosaic_0001>
module attributes {stable_mosaic.version = 11 : i64} {
  func.func @slot_attention_kernel(%arg0: i32, %arg1: memref<32x32xf32, #tpu.memory_space<vmem>>, %arg2: memref<8x32xf32, #tpu.memory_space<vmem>>, %arg3: memref<32x288xf32, #tpu.memory_space<vmem>>, %arg4: memref<64x128xf32, #tpu.memory_space<vmem>>, %arg5: memref<256x32xf32, #tpu.memory_space<vmem>>, %arg6: memref<16x128xf32, #tpu.memory_space<vmem>>, %arg7: memref<8x128xf32, #tpu.memory_space<vmem>>) attributes {dimension_semantics = [#tpu.dimension_semantics<arbitrary>], iteration_bounds = array<i64: 1>, scalar_prefetch = 0 : i64, scratch_operands = 0 : i64, tpu.core_type = #tpu.core_type<tc>, window_params = [{pipeline_mode = #tpu.pipeline_mode<synchronous>, transform_indices = @transform_0, window_bounds = array<i64: 32, 32>}, {pipeline_mode = #tpu.pipeline_mode<synchronous>, transform_indices = @transform_1, window_bounds = array<i64: 8, 32>}, {pipeline_mode = #tpu.pipeline_mode<synchronous>, transform_indices = @transform_2, window_bounds = array<i64: 32, 288>}, {pipeline_mode = #tpu.pipeline_mode<synchronous>, transform_indices = @transform_3, window_bounds = array<i64: 64, 128>}, {pipeline_mode = #tpu.pipeline_mode<synchronous>, transform_indices = @transform_4, window_bounds = array<i64: 256, 32>}, {pipeline_mode = #tpu.pipeline_mode<synchronous>, transform_indices = @transform_5, window_bounds = array<i64: 16, 128>}, {pipeline_mode = #tpu.pipeline_mode<synchronous>, transform_indices = @transform_6, window_bounds = array<i64: 8, 128>}]} {
    %c0 = arith.constant 0 : index
    %c0_0 = arith.constant 0 : index
    %0 = vector.load %arg1[%c0, %c0_0] : memref<32x32xf32, #tpu.memory_space<vmem>>, vector<32x32xf32>
    %c0_1 = arith.constant 0 : index
    %c0_2 = arith.constant 0 : index
    %1 = vector.load %arg2[%c0_1, %c0_2] : memref<8x32xf32, #tpu.memory_space<vmem>>, vector<8x32xf32>
    %c0_3 = arith.constant 0 : index
    %c0_4 = arith.constant 0 : index
    %2 = vector.load %arg3[%c0_3, %c0_4] : memref<32x288xf32, #tpu.memory_space<vmem>>, vector<32x288xf32>
    %3 = vector.extract_strided_slice %2 {offsets = [0, 0], sizes = [32, 32], strides = [1, 1]} : vector<32x288xf32> to vector<32x32xf32>
    %4 = vector.extract_strided_slice %2 {offsets = [0, 32], sizes = [32, 64], strides = [1, 1]} : vector<32x288xf32> to vector<32x64xf32>
    %5 = vector.extract_strided_slice %2 {offsets = [0, 96], sizes = [32, 96], strides = [1, 1]} : vector<32x288xf32> to vector<32x96xf32>
    %6 = vector.extract_strided_slice %2 {offsets = [0, 192], sizes = [32, 96], strides = [1, 1]} : vector<32x288xf32> to vector<32x96xf32>
    %c0_5 = arith.constant 0 : index
    %c0_6 = arith.constant 0 : index
    %7 = vector.load %arg4[%c0_5, %c0_6] : memref<64x128xf32, #tpu.memory_space<vmem>>, vector<64x128xf32>
    %c0_7 = arith.constant 0 : index
    %c0_8 = arith.constant 0 : index
    %8 = vector.load %arg5[%c0_7, %c0_8] : memref<256x32xf32, #tpu.memory_space<vmem>>, vector<256x32xf32>
    %c0_9 = arith.constant 0 : index
    %c0_10 = arith.constant 0 : index
    %9 = vector.load %arg6[%c0_9, %c0_10] : memref<16x128xf32, #tpu.memory_space<vmem>>, vector<16x128xf32>
    %10 = vector.extract_strided_slice %9 {offsets = [0, 0], sizes = [1, 32], strides = [1, 1]} : vector<16x128xf32> to vector<1x32xf32>
    %11 = vector.extract_strided_slice %9 {offsets = [1, 0], sizes = [1, 32], strides = [1, 1]} : vector<16x128xf32> to vector<1x32xf32>
    %12 = vector.extract_strided_slice %9 {offsets = [2, 0], sizes = [1, 32], strides = [1, 1]} : vector<16x128xf32> to vector<1x32xf32>
    %13 = vector.extract_strided_slice %9 {offsets = [3, 0], sizes = [1, 32], strides = [1, 1]} : vector<16x128xf32> to vector<1x32xf32>
    %14 = vector.extract_strided_slice %9 {offsets = [4, 0], sizes = [1, 32], strides = [1, 1]} : vector<16x128xf32> to vector<1x32xf32>
    %15 = vector.extract_strided_slice %9 {offsets = [5, 0], sizes = [1, 32], strides = [1, 1]} : vector<16x128xf32> to vector<1x32xf32>
    %16 = vector.extract_strided_slice %9 {offsets = [6, 0], sizes = [1, 32], strides = [1, 1]} : vector<16x128xf32> to vector<1x32xf32>
    %17 = vector.extract_strided_slice %9 {offsets = [7, 0], sizes = [1, 64], strides = [1, 1]} : vector<16x128xf32> to vector<1x64xf32>
    %18 = vector.extract_strided_slice %9 {offsets = [8, 0], sizes = [1, 96], strides = [1, 1]} : vector<16x128xf32> to vector<1x96xf32>
    %19 = vector.extract_strided_slice %9 {offsets = [9, 0], sizes = [1, 96], strides = [1, 1]} : vector<16x128xf32> to vector<1x96xf32>
    %20 = vector.extract_strided_slice %9 {offsets = [10, 0], sizes = [1, 128], strides = [1, 1]} : vector<16x128xf32> to vector<1x128xf32>
    %21 = vector.extract_strided_slice %9 {offsets = [11, 0], sizes = [1, 32], strides = [1, 1]} : vector<16x128xf32> to vector<1x32xf32>
    %22 = vector.shape_cast %12 : vector<1x32xf32> to vector<1x32xf32>
    %23 = vector.broadcast %22 : vector<1x32xf32> to vector<8x32xf32>
    %24 = vector.shape_cast %13 : vector<1x32xf32> to vector<1x32xf32>
    %25 = vector.broadcast %24 : vector<1x32xf32> to vector<8x32xf32>
    %26 = vector.shape_cast %14 : vector<1x32xf32> to vector<1x32xf32>
    %27 = vector.broadcast %26 : vector<1x32xf32> to vector<8x32xf32>
    %28 = vector.shape_cast %15 : vector<1x32xf32> to vector<1x32xf32>
    %29 = vector.broadcast %28 : vector<1x32xf32> to vector<8x32xf32>
    %30 = vector.shape_cast %16 : vector<1x32xf32> to vector<1x32xf32>
    %31 = vector.broadcast %30 : vector<1x32xf32> to vector<8x32xf32>
    %32 = vector.shape_cast %18 : vector<1x96xf32> to vector<1x96xf32>
    %33 = vector.broadcast %32 : vector<1x96xf32> to vector<8x96xf32>
    %34 = vector.shape_cast %19 : vector<1x96xf32> to vector<1x96xf32>
    %35 = vector.broadcast %34 : vector<1x96xf32> to vector<8x96xf32>
    %36 = vector.shape_cast %20 : vector<1x128xf32> to vector<1x128xf32>
    %37 = vector.broadcast %36 : vector<1x128xf32> to vector<8x128xf32>
    %38 = vector.shape_cast %21 : vector<1x32xf32> to vector<1x32xf32>
    %39 = vector.broadcast %38 : vector<1x32xf32> to vector<8x32xf32>
    %cst = arith.constant dense<0.000000e+00> : vector<32xf32>
    %40 = vector.multi_reduction <add>, %0, %cst [1] : vector<32x32xf32> to vector<32xf32>
    %41 = vector.shape_cast %40 : vector<32xf32> to vector<32x1xf32>
    %cst_11 = arith.constant 3.200000e+01 : f32
    %42 = vector.broadcast %cst_11 : f32 to vector<32x1xf32>
    %43 = arith.divf %41, %42 : vector<32x1xf32>
    %44 = vector.broadcast %43 : vector<32x1xf32> to vector<32x32xf32>
    %45 = arith.subf %0, %44 : vector<32x32xf32>
    %46 = arith.mulf %45, %45 : vector<32x32xf32>
    %cst_12 = arith.constant dense<0.000000e+00> : vector<32xf32>
    %47 = vector.multi_reduction <add>, %46, %cst_12 [1] : vector<32x32xf32> to vector<32xf32>
    %48 = vector.shape_cast %47 : vector<32xf32> to vector<32x1xf32>
    %cst_13 = arith.constant 3.200000e+01 : f32
    %49 = vector.broadcast %cst_13 : f32 to vector<32x1xf32>
    %50 = arith.divf %48, %49 : vector<32x1xf32>
    %51 = vector.broadcast %43 : vector<32x1xf32> to vector<32x32xf32>
    %52 = arith.subf %0, %51 : vector<32x32xf32>
    %cst_14 = arith.constant 9.99999974E-6 : f32
    %53 = vector.broadcast %cst_14 : f32 to vector<32x1xf32>
    %54 = arith.addf %50, %53 : vector<32x1xf32>
    %55 = math.rsqrt %54 : vector<32x1xf32>
    %56 = vector.broadcast %55 : vector<32x1xf32> to vector<32x32xf32>
    %57 = arith.mulf %52, %56 : vector<32x32xf32>
    %58 = vector.broadcast %10 : vector<1x32xf32> to vector<32x32xf32>
    %59 = arith.mulf %57, %58 : vector<32x32xf32>
    %60 = vector.broadcast %11 : vector<1x32xf32> to vector<32x32xf32>
    %61 = arith.addf %59, %60 : vector<32x32xf32>
    %cst_15 = arith.constant dense<0.000000e+00> : vector<32x64xf32>
    %62 = tpu.matmul %61, %4, %cst_15 {dimension_numbers = #tpu.dot_dimension_numbers<[1], [0], [0], [1], [0, 0, 1, 1], [], []>} : vector<32x32xf32>, vector<32x64xf32>, vector<32x64xf32> -> vector<32x64xf32>
    %63 = vector.broadcast %17 : vector<1x64xf32> to vector<32x64xf32>
    %64 = arith.addf %62, %63 : vector<32x64xf32>
    %65 = vector.extract_strided_slice %64 {offsets = [0, 0], sizes = [32, 32], strides = [1, 1]} : vector<32x64xf32> to vector<32x32xf32>
    %66 = vector.shape_cast %65 : vector<32x32xf32> to vector<2x16x32xf32>
    %67 = vector.extract_strided_slice %64 {offsets = [0, 32], sizes = [32, 32], strides = [1, 1]} : vector<32x64xf32> to vector<32x32xf32>
    %68 = vector.shape_cast %67 : vector<32x32xf32> to vector<2x16x32xf32>
    %cst_16 = arith.constant dense<0.000000e+00> : vector<8xf32>
    %69 = vector.multi_reduction <add>, %1, %cst_16 [1] : vector<8x32xf32> to vector<8xf32>
    %70 = vector.shape_cast %69 : vector<8xf32> to vector<8x1xf32>
    %cst_17 = arith.constant 3.200000e+01 : f32
    %71 = vector.broadcast %cst_17 : f32 to vector<8x1xf32>
    %72 = arith.divf %70, %71 : vector<8x1xf32>
    %73 = vector.broadcast %72 : vector<8x1xf32> to vector<8x32xf32>
    %74 = arith.subf %1, %73 : vector<8x32xf32>
    %75 = arith.mulf %74, %74 : vector<8x32xf32>
    %cst_18 = arith.constant dense<0.000000e+00> : vector<8xf32>
    %76 = vector.multi_reduction <add>, %75, %cst_18 [1] : vector<8x32xf32> to vector<8xf32>
    %77 = vector.shape_cast %76 : vector<8xf32> to vector<8x1xf32>
    %cst_19 = arith.constant 3.200000e+01 : f32
    %78 = vector.broadcast %cst_19 : f32 to vector<8x1xf32>
    %79 = arith.divf %77, %78 : vector<8x1xf32>
    %80 = vector.broadcast %72 : vector<8x1xf32> to vector<8x32xf32>
    %81 = arith.subf %1, %80 : vector<8x32xf32>
    %cst_20 = arith.constant 9.99999974E-6 : f32
    %82 = vector.broadcast %cst_20 : f32 to vector<8x1xf32>
    %83 = arith.addf %79, %82 : vector<8x1xf32>
    %84 = math.rsqrt %83 : vector<8x1xf32>
    %85 = vector.broadcast %84 : vector<8x1xf32> to vector<8x32xf32>
    %86 = arith.mulf %81, %85 : vector<8x32xf32>
    %87 = arith.mulf %86, %23 : vector<8x32xf32>
    %88 = arith.addf %87, %25 : vector<8x32xf32>
    %cst_21 = arith.constant dense<0.000000e+00> : vector<8x32xf32>
    %89 = tpu.matmul %88, %3, %cst_21 {dimension_numbers = #tpu.dot_dimension_numbers<[1], [0], [0], [1], [0, 0, 1, 1], [], []>} : vector<8x32xf32>, vector<32x32xf32>, vector<8x32xf32> -> vector<8x32xf32>
    %90 = arith.addf %89, %31 : vector<8x32xf32>
    %91 = vector.shape_cast %90 : vector<8x32xf32> to vector<2x4x32xf32>
    "tpu.trace_start"() <{level = 10 : i32, message = "bid,bjd->bij"}> : () -> ()
    %cst_22 = arith.constant dense<0.000000e+00> : vector<2x4x16xf32>
    %92 = tpu.matmul %91, %66, %cst_22 {dimension_numbers = #tpu.dot_dimension_numbers<[2], [2], [1], [1], [0, 0, 0, 1, 1, 1], [0], [0]>} : vector<2x4x32xf32>, vector<2x16x32xf32>, vector<2x4x16xf32> -> vector<2x4x16xf32>
    "tpu.trace_stop"() : () -> ()
    %cst_23 = arith.constant dense<0xFF800000> : vector<2x16xf32>
    %93 = vector.multi_reduction <maximumf>, %92, %cst_23 [1] : vector<2x4x16xf32> to vector<2x16xf32>
    %94 = vector.shape_cast %93 : vector<2x16xf32> to vector<2x1x16xf32>
    %95 = vector.broadcast %94 : vector<2x1x16xf32> to vector<2x4x16xf32>
    %96 = arith.subf %92, %95 : vector<2x4x16xf32>
    %97 = math.exp %96 : vector<2x4x16xf32>
    %cst_24 = arith.constant dense<0.000000e+00> : vector<2x16xf32>
    %98 = vector.multi_reduction <add>, %97, %cst_24 [1] : vector<2x4x16xf32> to vector<2x16xf32>
    %99 = vector.shape_cast %98 : vector<2x16xf32> to vector<2x1x16xf32>
    %100 = tpu.reciprocal %99 {approx = true} : vector<2x1x16xf32> -> vector<2x1x16xf32>
    %101 = vector.broadcast %100 : vector<2x1x16xf32> to vector<2x4x16xf32>
    %102 = arith.mulf %97, %101 : vector<2x4x16xf32>
    %cst_25 = arith.constant 9.99999993E-9 : f32
    %103 = vector.broadcast %cst_25 : f32 to vector<2x4x16xf32>
    %104 = arith.addf %102, %103 : vector<2x4x16xf32>
    %cst_26 = arith.constant dense<0.000000e+00> : vector<2x4xf32>
    %105 = vector.multi_reduction <add>, %104, %cst_26 [2] : vector<2x4x16xf32> to vector<2x4xf32>
    %106 = vector.shape_cast %105 : vector<2x4xf32> to vector<2x4x1xf32>
    %107 = tpu.reciprocal %106 {approx = true} : vector<2x4x1xf32> -> vector<2x4x1xf32>
    %108 = vector.broadcast %107 : vector<2x4x1xf32> to vector<2x4x16xf32>
    %109 = arith.mulf %104, %108 : vector<2x4x16xf32>
    "tpu.trace_start"() <{level = 10 : i32, message = "bij,bjd->bid"}> : () -> ()
    %cst_27 = arith.constant dense<0.000000e+00> : vector<2x4x32xf32>
    %110 = tpu.matmul %109, %68, %cst_27 {dimension_numbers = #tpu.dot_dimension_numbers<[2], [1], [1], [2], [0, 0, 0, 1, 1, 2], [0], [0]>} : vector<2x4x16xf32>, vector<2x16x32xf32>, vector<2x4x32xf32> -> vector<2x4x32xf32>
    "tpu.trace_stop"() : () -> ()
    %111 = vector.shape_cast %110 : vector<2x4x32xf32> to vector<8x32xf32>
    %cst_28 = arith.constant dense<0.000000e+00> : vector<8x96xf32>
    %112 = tpu.matmul %111, %5, %cst_28 {dimension_numbers = #tpu.dot_dimension_numbers<[1], [0], [0], [1], [0, 0, 1, 1], [], []>} : vector<8x32xf32>, vector<32x96xf32>, vector<8x96xf32> -> vector<8x96xf32>
    %113 = arith.addf %112, %33 : vector<8x96xf32>
    %cst_29 = arith.constant dense<0.000000e+00> : vector<8x96xf32>
    %114 = tpu.matmul %1, %6, %cst_29 {dimension_numbers = #tpu.dot_dimension_numbers<[1], [0], [0], [1], [0, 0, 1, 1], [], []>} : vector<8x32xf32>, vector<32x96xf32>, vector<8x96xf32> -> vector<8x96xf32>
    %115 = arith.addf %114, %35 : vector<8x96xf32>
    %116 = vector.extract_strided_slice %113 {offsets = [0, 0], sizes = [8, 32], strides = [1, 1]} : vector<8x96xf32> to vector<8x32xf32>
    %117 = vector.extract_strided_slice %115 {offsets = [0, 0], sizes = [8, 32], strides = [1, 1]} : vector<8x96xf32> to vector<8x32xf32>
    %118 = arith.addf %116, %117 : vector<8x32xf32>
    %119 = arith.negf %118 : vector<8x32xf32>
    %120 = math.exp %119 : vector<8x32xf32>
    %cst_30 = arith.constant 1.000000e+00 : f32
    %121 = vector.broadcast %cst_30 : f32 to vector<8x32xf32>
    %122 = arith.addf %121, %120 : vector<8x32xf32>
    %123 = arith.divf %121, %122 : vector<8x32xf32>
    %124 = vector.extract_strided_slice %113 {offsets = [0, 32], sizes = [8, 32], strides = [1, 1]} : vector<8x96xf32> to vector<8x32xf32>
    %125 = vector.extract_strided_slice %115 {offsets = [0, 32], sizes = [8, 32], strides = [1, 1]} : vector<8x96xf32> to vector<8x32xf32>
    %126 = arith.addf %124, %125 : vector<8x32xf32>
    %127 = arith.negf %126 : vector<8x32xf32>
    %128 = math.exp %127 : vector<8x32xf32>
    %cst_31 = arith.constant 1.000000e+00 : f32
    %129 = vector.broadcast %cst_31 : f32 to vector<8x32xf32>
    %130 = arith.addf %129, %128 : vector<8x32xf32>
    %131 = arith.divf %129, %130 : vector<8x32xf32>
    %132 = vector.extract_strided_slice %113 {offsets = [0, 64], sizes = [8, 32], strides = [1, 1]} : vector<8x96xf32> to vector<8x32xf32>
    %133 = vector.extract_strided_slice %115 {offsets = [0, 64], sizes = [8, 32], strides = [1, 1]} : vector<8x96xf32> to vector<8x32xf32>
    %134 = arith.mulf %123, %133 : vector<8x32xf32>
    %135 = arith.addf %132, %134 : vector<8x32xf32>
    %136 = math.tanh %135 : vector<8x32xf32>
    %cst_32 = arith.constant 1.000000e+00 : f32
    %137 = vector.broadcast %cst_32 : f32 to vector<8x32xf32>
    %138 = arith.subf %137, %131 : vector<8x32xf32>
    %139 = arith.mulf %138, %136 : vector<8x32xf32>
    %140 = arith.mulf %131, %1 : vector<8x32xf32>
    %141 = arith.addf %139, %140 : vector<8x32xf32>
    %cst_33 = arith.constant dense<0.000000e+00> : vector<8xf32>
    %142 = vector.multi_reduction <add>, %141, %cst_33 [1] : vector<8x32xf32> to vector<8xf32>
    %143 = vector.shape_cast %142 : vector<8xf32> to vector<8x1xf32>
    %cst_34 = arith.constant 3.200000e+01 : f32
    %144 = vector.broadcast %cst_34 : f32 to vector<8x1xf32>
    %145 = arith.divf %143, %144 : vector<8x1xf32>
    %146 = vector.broadcast %145 : vector<8x1xf32> to vector<8x32xf32>
    %147 = arith.subf %141, %146 : vector<8x32xf32>
    %148 = arith.mulf %147, %147 : vector<8x32xf32>
    %cst_35 = arith.constant dense<0.000000e+00> : vector<8xf32>
    %149 = vector.multi_reduction <add>, %148, %cst_35 [1] : vector<8x32xf32> to vector<8xf32>
    %150 = vector.shape_cast %149 : vector<8xf32> to vector<8x1xf32>
    %cst_36 = arith.constant 3.200000e+01 : f32
    %151 = vector.broadcast %cst_36 : f32 to vector<8x1xf32>
    %152 = arith.divf %150, %151 : vector<8x1xf32>
    %153 = vector.broadcast %145 : vector<8x1xf32> to vector<8x32xf32>
    %154 = arith.subf %141, %153 : vector<8x32xf32>
    %cst_37 = arith.constant 9.99999974E-6 : f32
    %155 = vector.broadcast %cst_37 : f32 to vector<8x1xf32>
    %156 = arith.addf %152, %155 : vector<8x1xf32>
    %157 = math.rsqrt %156 : vector<8x1xf32>
    %158 = vector.broadcast %157 : vector<8x1xf32> to vector<8x32xf32>
    %159 = arith.mulf %154, %158 : vector<8x32xf32>
    %160 = arith.mulf %159, %27 : vector<8x32xf32>
    %161 = arith.addf %160, %29 : vector<8x32xf32>
    %162 = vector.shape_cast %161 : vector<8x32xf32> to vector<2x4x32xf32>
    %cst_38 = arith.constant dense<0.000000e+00> : vector<2x32xf32>
    %163 = vector.multi_reduction <add>, %162, %cst_38 [1] : vector<2x4x32xf32> to vector<2x32xf32>
    %164 = vector.shape_cast %163 : vector<2x32xf32> to vector<2x1x32xf32>
    %cst_39 = arith.constant 4.000000e+00 : f32
    %165 = vector.broadcast %cst_39 : f32 to vector<2x1x32xf32>
    %166 = arith.divf %164, %165 : vector<2x1x32xf32>
    %167 = vector.shape_cast %166 : vector<2x1x32xf32> to vector<2x1x32xf32>
    %168 = vector.broadcast %167 : vector<2x1x32xf32> to vector<2x4x32xf32>
    %169 = vector.shape_cast %168 : vector<2x4x32xf32> to vector<8x32xf32>
    %170 = tpu.concatenate %161, %169 in 1 : vector<8x32xf32>, vector<8x32xf32> -> vector<8x64xf32>
    %cst_40 = arith.constant dense<0.000000e+00> : vector<8x128xf32>
    %171 = tpu.matmul %170, %7, %cst_40 {dimension_numbers = #tpu.dot_dimension_numbers<[1], [0], [0], [1], [0, 0, 1, 1], [], []>} : vector<8x64xf32>, vector<64x128xf32>, vector<8x128xf32> -> vector<8x128xf32>
    %172 = arith.addf %171, %37 : vector<8x128xf32>
    %cst_41 = arith.constant 0.000000e+00 : f32
    %173 = vector.broadcast %cst_41 : f32 to vector<8x128xf32>
    %174 = arith.maximumf %172, %173 : vector<8x128xf32>
    %175 = vector.shape_cast %174 : vector<8x128xf32> to vector<2x4x128xf32>
    %cst_42 = arith.constant dense<0.000000e+00> : vector<2x128xf32>
    %176 = vector.multi_reduction <add>, %175, %cst_42 [1] : vector<2x4x128xf32> to vector<2x128xf32>
    %177 = vector.shape_cast %176 : vector<2x128xf32> to vector<2x1x128xf32>
    %cst_43 = arith.constant 4.000000e+00 : f32
    %178 = vector.broadcast %cst_43 : f32 to vector<2x1x128xf32>
    %179 = arith.divf %177, %178 : vector<2x1x128xf32>
    %180 = vector.shape_cast %179 : vector<2x1x128xf32> to vector<2x1x128xf32>
    %181 = vector.broadcast %180 : vector<2x1x128xf32> to vector<2x4x128xf32>
    %182 = vector.shape_cast %181 : vector<2x4x128xf32> to vector<8x128xf32>
    %183 = tpu.concatenate %174, %182 in 1 : vector<8x128xf32>, vector<8x128xf32> -> vector<8x256xf32>
    %cst_44 = arith.constant dense<0.000000e+00> : vector<8x32xf32>
    %184 = tpu.matmul %183, %8, %cst_44 {dimension_numbers = #tpu.dot_dimension_numbers<[1], [0], [0], [1], [0, 0, 1, 1], [], []>} : vector<8x256xf32>, vector<256x32xf32>, vector<8x32xf32> -> vector<8x32xf32>
    %185 = arith.addf %184, %39 : vector<8x32xf32>
    %186 = arith.addf %141, %185 : vector<8x32xf32>
    %cst_45 = arith.constant dense<0.000000e+00> : vector<8xf32>
    %187 = vector.multi_reduction <add>, %186, %cst_45 [1] : vector<8x32xf32> to vector<8xf32>
    %188 = vector.shape_cast %187 : vector<8xf32> to vector<8x1xf32>
    %cst_46 = arith.constant 3.200000e+01 : f32
    %189 = vector.broadcast %cst_46 : f32 to vector<8x1xf32>
    %190 = arith.divf %188, %189 : vector<8x1xf32>
    %191 = vector.broadcast %190 : vector<8x1xf32> to vector<8x32xf32>
    %192 = arith.subf %186, %191 : vector<8x32xf32>
    %193 = arith.mulf %192, %192 : vector<8x32xf32>
    %cst_47 = arith.constant dense<0.000000e+00> : vector<8xf32>
    %194 = vector.multi_reduction <add>, %193, %cst_47 [1] : vector<8x32xf32> to vector<8xf32>
    %195 = vector.shape_cast %194 : vector<8xf32> to vector<8x1xf32>
    %cst_48 = arith.constant 3.200000e+01 : f32
    %196 = vector.broadcast %cst_48 : f32 to vector<8x1xf32>
    %197 = arith.divf %195, %196 : vector<8x1xf32>
    %198 = vector.broadcast %190 : vector<8x1xf32> to vector<8x32xf32>
    %199 = arith.subf %186, %198 : vector<8x32xf32>
    %cst_49 = arith.constant 9.99999974E-6 : f32
    %200 = vector.broadcast %cst_49 : f32 to vector<8x1xf32>
    %201 = arith.addf %197, %200 : vector<8x1xf32>
    %202 = math.rsqrt %201 : vector<8x1xf32>
    %203 = vector.broadcast %202 : vector<8x1xf32> to vector<8x32xf32>
    %204 = arith.mulf %199, %203 : vector<8x32xf32>
    %205 = arith.mulf %204, %23 : vector<8x32xf32>
    %206 = arith.addf %205, %25 : vector<8x32xf32>
    %cst_50 = arith.constant dense<0.000000e+00> : vector<8x32xf32>
    %207 = tpu.matmul %206, %3, %cst_50 {dimension_numbers = #tpu.dot_dimension_numbers<[1], [0], [0], [1], [0, 0, 1, 1], [], []>} : vector<8x32xf32>, vector<32x32xf32>, vector<8x32xf32> -> vector<8x32xf32>
    %208 = arith.addf %207, %31 : vector<8x32xf32>
    %209 = vector.shape_cast %208 : vector<8x32xf32> to vector<2x4x32xf32>
    "tpu.trace_start"() <{level = 10 : i32, message = "bid,bjd->bij"}> : () -> ()
    %cst_51 = arith.constant dense<0.000000e+00> : vector<2x4x16xf32>
    %210 = tpu.matmul %209, %66, %cst_51 {dimension_numbers = #tpu.dot_dimension_numbers<[2], [2], [1], [1], [0, 0, 0, 1, 1, 1], [0], [0]>} : vector<2x4x32xf32>, vector<2x16x32xf32>, vector<2x4x16xf32> -> vector<2x4x16xf32>
    "tpu.trace_stop"() : () -> ()
    %cst_52 = arith.constant dense<0xFF800000> : vector<2x16xf32>
    %211 = vector.multi_reduction <maximumf>, %210, %cst_52 [1] : vector<2x4x16xf32> to vector<2x16xf32>
    %212 = vector.shape_cast %211 : vector<2x16xf32> to vector<2x1x16xf32>
    %213 = vector.broadcast %212 : vector<2x1x16xf32> to vector<2x4x16xf32>
    %214 = arith.subf %210, %213 : vector<2x4x16xf32>
    %215 = math.exp %214 : vector<2x4x16xf32>
    %cst_53 = arith.constant dense<0.000000e+00> : vector<2x16xf32>
    %216 = vector.multi_reduction <add>, %215, %cst_53 [1] : vector<2x4x16xf32> to vector<2x16xf32>
    %217 = vector.shape_cast %216 : vector<2x16xf32> to vector<2x1x16xf32>
    %218 = tpu.reciprocal %217 {approx = true} : vector<2x1x16xf32> -> vector<2x1x16xf32>
    %219 = vector.broadcast %218 : vector<2x1x16xf32> to vector<2x4x16xf32>
    %220 = arith.mulf %215, %219 : vector<2x4x16xf32>
    %cst_54 = arith.constant 9.99999993E-9 : f32
    %221 = vector.broadcast %cst_54 : f32 to vector<2x4x16xf32>
    %222 = arith.addf %220, %221 : vector<2x4x16xf32>
    %cst_55 = arith.constant dense<0.000000e+00> : vector<2x4xf32>
    %223 = vector.multi_reduction <add>, %222, %cst_55 [2] : vector<2x4x16xf32> to vector<2x4xf32>
    %224 = vector.shape_cast %223 : vector<2x4xf32> to vector<2x4x1xf32>
    %225 = tpu.reciprocal %224 {approx = true} : vector<2x4x1xf32> -> vector<2x4x1xf32>
    %226 = vector.broadcast %225 : vector<2x4x1xf32> to vector<2x4x16xf32>
    %227 = arith.mulf %222, %226 : vector<2x4x16xf32>
    "tpu.trace_start"() <{level = 10 : i32, message = "bij,bjd->bid"}> : () -> ()
    %cst_56 = arith.constant dense<0.000000e+00> : vector<2x4x32xf32>
    %228 = tpu.matmul %227, %68, %cst_56 {dimension_numbers = #tpu.dot_dimension_numbers<[2], [1], [1], [2], [0, 0, 0, 1, 1, 2], [0], [0]>} : vector<2x4x16xf32>, vector<2x16x32xf32>, vector<2x4x32xf32> -> vector<2x4x32xf32>
    "tpu.trace_stop"() : () -> ()
    %229 = vector.shape_cast %228 : vector<2x4x32xf32> to vector<8x32xf32>
    %cst_57 = arith.constant dense<0.000000e+00> : vector<8x96xf32>
    %230 = tpu.matmul %229, %5, %cst_57 {dimension_numbers = #tpu.dot_dimension_numbers<[1], [0], [0], [1], [0, 0, 1, 1], [], []>} : vector<8x32xf32>, vector<32x96xf32>, vector<8x96xf32> -> vector<8x96xf32>
    %231 = arith.addf %230, %33 : vector<8x96xf32>
    %cst_58 = arith.constant dense<0.000000e+00> : vector<8x96xf32>
    %232 = tpu.matmul %186, %6, %cst_58 {dimension_numbers = #tpu.dot_dimension_numbers<[1], [0], [0], [1], [0, 0, 1, 1], [], []>} : vector<8x32xf32>, vector<32x96xf32>, vector<8x96xf32> -> vector<8x96xf32>
    %233 = arith.addf %232, %35 : vector<8x96xf32>
    %234 = vector.extract_strided_slice %231 {offsets = [0, 0], sizes = [8, 32], strides = [1, 1]} : vector<8x96xf32> to vector<8x32xf32>
    %235 = vector.extract_strided_slice %233 {offsets = [0, 0], sizes = [8, 32], strides = [1, 1]} : vector<8x96xf32> to vector<8x32xf32>
    %236 = arith.addf %234, %235 : vector<8x32xf32>
    %237 = arith.negf %236 : vector<8x32xf32>
    %238 = math.exp %237 : vector<8x32xf32>
    %cst_59 = arith.constant 1.000000e+00 : f32
    %239 = vector.broadcast %cst_59 : f32 to vector<8x32xf32>
    %240 = arith.addf %239, %238 : vector<8x32xf32>
    %241 = arith.divf %239, %240 : vector<8x32xf32>
    %242 = vector.extract_strided_slice %231 {offsets = [0, 32], sizes = [8, 32], strides = [1, 1]} : vector<8x96xf32> to vector<8x32xf32>
    %243 = vector.extract_strided_slice %233 {offsets = [0, 32], sizes = [8, 32], strides = [1, 1]} : vector<8x96xf32> to vector<8x32xf32>
    %244 = arith.addf %242, %243 : vector<8x32xf32>
    %245 = arith.negf %244 : vector<8x32xf32>
    %246 = math.exp %245 : vector<8x32xf32>
    %cst_60 = arith.constant 1.000000e+00 : f32
    %247 = vector.broadcast %cst_60 : f32 to vector<8x32xf32>
    %248 = arith.addf %247, %246 : vector<8x32xf32>
    %249 = arith.divf %247, %248 : vector<8x32xf32>
    %250 = vector.extract_strided_slice %231 {offsets = [0, 64], sizes = [8, 32], strides = [1, 1]} : vector<8x96xf32> to vector<8x32xf32>
    %251 = vector.extract_strided_slice %233 {offsets = [0, 64], sizes = [8, 32], strides = [1, 1]} : vector<8x96xf32> to vector<8x32xf32>
    %252 = arith.mulf %241, %251 : vector<8x32xf32>
    %253 = arith.addf %250, %252 : vector<8x32xf32>
    %254 = math.tanh %253 : vector<8x32xf32>
    %cst_61 = arith.constant 1.000000e+00 : f32
    %255 = vector.broadcast %cst_61 : f32 to vector<8x32xf32>
    %256 = arith.subf %255, %249 : vector<8x32xf32>
    %257 = arith.mulf %256, %254 : vector<8x32xf32>
    %258 = arith.mulf %249, %186 : vector<8x32xf32>
    %259 = arith.addf %257, %258 : vector<8x32xf32>
    %cst_62 = arith.constant dense<0.000000e+00> : vector<8xf32>
    %260 = vector.multi_reduction <add>, %259, %cst_62 [1] : vector<8x32xf32> to vector<8xf32>
    %261 = vector.shape_cast %260 : vector<8xf32> to vector<8x1xf32>
    %cst_63 = arith.constant 3.200000e+01 : f32
    %262 = vector.broadcast %cst_63 : f32 to vector<8x1xf32>
    %263 = arith.divf %261, %262 : vector<8x1xf32>
    %264 = vector.broadcast %263 : vector<8x1xf32> to vector<8x32xf32>
    %265 = arith.subf %259, %264 : vector<8x32xf32>
    %266 = arith.mulf %265, %265 : vector<8x32xf32>
    %cst_64 = arith.constant dense<0.000000e+00> : vector<8xf32>
    %267 = vector.multi_reduction <add>, %266, %cst_64 [1] : vector<8x32xf32> to vector<8xf32>
    %268 = vector.shape_cast %267 : vector<8xf32> to vector<8x1xf32>
    %cst_65 = arith.constant 3.200000e+01 : f32
    %269 = vector.broadcast %cst_65 : f32 to vector<8x1xf32>
    %270 = arith.divf %268, %269 : vector<8x1xf32>
    %271 = vector.broadcast %263 : vector<8x1xf32> to vector<8x32xf32>
    %272 = arith.subf %259, %271 : vector<8x32xf32>
    %cst_66 = arith.constant 9.99999974E-6 : f32
    %273 = vector.broadcast %cst_66 : f32 to vector<8x1xf32>
    %274 = arith.addf %270, %273 : vector<8x1xf32>
    %275 = math.rsqrt %274 : vector<8x1xf32>
    %276 = vector.broadcast %275 : vector<8x1xf32> to vector<8x32xf32>
    %277 = arith.mulf %272, %276 : vector<8x32xf32>
    %278 = arith.mulf %277, %27 : vector<8x32xf32>
    %279 = arith.addf %278, %29 : vector<8x32xf32>
    %280 = vector.shape_cast %279 : vector<8x32xf32> to vector<2x4x32xf32>
    %cst_67 = arith.constant dense<0.000000e+00> : vector<2x32xf32>
    %281 = vector.multi_reduction <add>, %280, %cst_67 [1] : vector<2x4x32xf32> to vector<2x32xf32>
    %282 = vector.shape_cast %281 : vector<2x32xf32> to vector<2x1x32xf32>
    %cst_68 = arith.constant 4.000000e+00 : f32
    %283 = vector.broadcast %cst_68 : f32 to vector<2x1x32xf32>
    %284 = arith.divf %282, %283 : vector<2x1x32xf32>
    %285 = vector.shape_cast %284 : vector<2x1x32xf32> to vector<2x1x32xf32>
    %286 = vector.broadcast %285 : vector<2x1x32xf32> to vector<2x4x32xf32>
    %287 = vector.shape_cast %286 : vector<2x4x32xf32> to vector<8x32xf32>
    %288 = tpu.concatenate %279, %287 in 1 : vector<8x32xf32>, vector<8x32xf32> -> vector<8x64xf32>
    %cst_69 = arith.constant dense<0.000000e+00> : vector<8x128xf32>
    %289 = tpu.matmul %288, %7, %cst_69 {dimension_numbers = #tpu.dot_dimension_numbers<[1], [0], [0], [1], [0, 0, 1, 1], [], []>} : vector<8x64xf32>, vector<64x128xf32>, vector<8x128xf32> -> vector<8x128xf32>
    %290 = arith.addf %289, %37 : vector<8x128xf32>
    %cst_70 = arith.constant 0.000000e+00 : f32
    %291 = vector.broadcast %cst_70 : f32 to vector<8x128xf32>
    %292 = arith.maximumf %290, %291 : vector<8x128xf32>
    %293 = vector.shape_cast %292 : vector<8x128xf32> to vector<2x4x128xf32>
    %cst_71 = arith.constant dense<0.000000e+00> : vector<2x128xf32>
    %294 = vector.multi_reduction <add>, %293, %cst_71 [1] : vector<2x4x128xf32> to vector<2x128xf32>
    %295 = vector.shape_cast %294 : vector<2x128xf32> to vector<2x1x128xf32>
    %cst_72 = arith.constant 4.000000e+00 : f32
    %296 = vector.broadcast %cst_72 : f32 to vector<2x1x128xf32>
    %297 = arith.divf %295, %296 : vector<2x1x128xf32>
    %298 = vector.shape_cast %297 : vector<2x1x128xf32> to vector<2x1x128xf32>
    %299 = vector.broadcast %298 : vector<2x1x128xf32> to vector<2x4x128xf32>
    %300 = vector.shape_cast %299 : vector<2x4x128xf32> to vector<8x128xf32>
    %301 = tpu.concatenate %292, %300 in 1 : vector<8x128xf32>, vector<8x128xf32> -> vector<8x256xf32>
    %cst_73 = arith.constant dense<0.000000e+00> : vector<8x32xf32>
    %302 = tpu.matmul %301, %8, %cst_73 {dimension_numbers = #tpu.dot_dimension_numbers<[1], [0], [0], [1], [0, 0, 1, 1], [], []>} : vector<8x256xf32>, vector<256x32xf32>, vector<8x32xf32> -> vector<8x32xf32>
    %303 = arith.addf %302, %39 : vector<8x32xf32>
    %304 = arith.addf %259, %303 : vector<8x32xf32>
    %cst_74 = arith.constant dense<0.000000e+00> : vector<8xf32>
    %305 = vector.multi_reduction <add>, %304, %cst_74 [1] : vector<8x32xf32> to vector<8xf32>
    %306 = vector.shape_cast %305 : vector<8xf32> to vector<8x1xf32>
    %cst_75 = arith.constant 3.200000e+01 : f32
    %307 = vector.broadcast %cst_75 : f32 to vector<8x1xf32>
    %308 = arith.divf %306, %307 : vector<8x1xf32>
    %309 = vector.broadcast %308 : vector<8x1xf32> to vector<8x32xf32>
    %310 = arith.subf %304, %309 : vector<8x32xf32>
    %311 = arith.mulf %310, %310 : vector<8x32xf32>
    %cst_76 = arith.constant dense<0.000000e+00> : vector<8xf32>
    %312 = vector.multi_reduction <add>, %311, %cst_76 [1] : vector<8x32xf32> to vector<8xf32>
    %313 = vector.shape_cast %312 : vector<8xf32> to vector<8x1xf32>
    %cst_77 = arith.constant 3.200000e+01 : f32
    %314 = vector.broadcast %cst_77 : f32 to vector<8x1xf32>
    %315 = arith.divf %313, %314 : vector<8x1xf32>
    %316 = vector.broadcast %308 : vector<8x1xf32> to vector<8x32xf32>
    %317 = arith.subf %304, %316 : vector<8x32xf32>
    %cst_78 = arith.constant 9.99999974E-6 : f32
    %318 = vector.broadcast %cst_78 : f32 to vector<8x1xf32>
    %319 = arith.addf %315, %318 : vector<8x1xf32>
    %320 = math.rsqrt %319 : vector<8x1xf32>
    %321 = vector.broadcast %320 : vector<8x1xf32> to vector<8x32xf32>
    %322 = arith.mulf %317, %321 : vector<8x32xf32>
    %323 = arith.mulf %322, %23 : vector<8x32xf32>
    %324 = arith.addf %323, %25 : vector<8x32xf32>
    %cst_79 = arith.constant dense<0.000000e+00> : vector<8x32xf32>
    %325 = tpu.matmul %324, %3, %cst_79 {dimension_numbers = #tpu.dot_dimension_numbers<[1], [0], [0], [1], [0, 0, 1, 1], [], []>} : vector<8x32xf32>, vector<32x32xf32>, vector<8x32xf32> -> vector<8x32xf32>
    %326 = arith.addf %325, %31 : vector<8x32xf32>
    %327 = vector.shape_cast %326 : vector<8x32xf32> to vector<2x4x32xf32>
    "tpu.trace_start"() <{level = 10 : i32, message = "bid,bjd->bij"}> : () -> ()
    %cst_80 = arith.constant dense<0.000000e+00> : vector<2x4x16xf32>
    %328 = tpu.matmul %327, %66, %cst_80 {dimension_numbers = #tpu.dot_dimension_numbers<[2], [2], [1], [1], [0, 0, 0, 1, 1, 1], [0], [0]>} : vector<2x4x32xf32>, vector<2x16x32xf32>, vector<2x4x16xf32> -> vector<2x4x16xf32>
    "tpu.trace_stop"() : () -> ()
    %cst_81 = arith.constant dense<0xFF800000> : vector<2x16xf32>
    %329 = vector.multi_reduction <maximumf>, %328, %cst_81 [1] : vector<2x4x16xf32> to vector<2x16xf32>
    %330 = vector.shape_cast %329 : vector<2x16xf32> to vector<2x1x16xf32>
    %331 = vector.broadcast %330 : vector<2x1x16xf32> to vector<2x4x16xf32>
    %332 = arith.subf %328, %331 : vector<2x4x16xf32>
    %333 = math.exp %332 : vector<2x4x16xf32>
    %cst_82 = arith.constant dense<0.000000e+00> : vector<2x16xf32>
    %334 = vector.multi_reduction <add>, %333, %cst_82 [1] : vector<2x4x16xf32> to vector<2x16xf32>
    %335 = vector.shape_cast %334 : vector<2x16xf32> to vector<2x1x16xf32>
    %336 = tpu.reciprocal %335 {approx = true} : vector<2x1x16xf32> -> vector<2x1x16xf32>
    %337 = vector.broadcast %336 : vector<2x1x16xf32> to vector<2x4x16xf32>
    %338 = arith.mulf %333, %337 : vector<2x4x16xf32>
    %cst_83 = arith.constant 9.99999993E-9 : f32
    %339 = vector.broadcast %cst_83 : f32 to vector<2x4x16xf32>
    %340 = arith.addf %338, %339 : vector<2x4x16xf32>
    %cst_84 = arith.constant dense<0.000000e+00> : vector<2x4xf32>
    %341 = vector.multi_reduction <add>, %340, %cst_84 [2] : vector<2x4x16xf32> to vector<2x4xf32>
    %342 = vector.shape_cast %341 : vector<2x4xf32> to vector<2x4x1xf32>
    %343 = tpu.reciprocal %342 {approx = true} : vector<2x4x1xf32> -> vector<2x4x1xf32>
    %344 = vector.broadcast %343 : vector<2x4x1xf32> to vector<2x4x16xf32>
    %345 = arith.mulf %340, %344 : vector<2x4x16xf32>
    "tpu.trace_start"() <{level = 10 : i32, message = "bij,bjd->bid"}> : () -> ()
    %cst_85 = arith.constant dense<0.000000e+00> : vector<2x4x32xf32>
    %346 = tpu.matmul %345, %68, %cst_85 {dimension_numbers = #tpu.dot_dimension_numbers<[2], [1], [1], [2], [0, 0, 0, 1, 1, 2], [0], [0]>} : vector<2x4x16xf32>, vector<2x16x32xf32>, vector<2x4x32xf32> -> vector<2x4x32xf32>
    "tpu.trace_stop"() : () -> ()
    %347 = vector.shape_cast %346 : vector<2x4x32xf32> to vector<8x32xf32>
    %cst_86 = arith.constant dense<0.000000e+00> : vector<8x96xf32>
    %348 = tpu.matmul %347, %5, %cst_86 {dimension_numbers = #tpu.dot_dimension_numbers<[1], [0], [0], [1], [0, 0, 1, 1], [], []>} : vector<8x32xf32>, vector<32x96xf32>, vector<8x96xf32> -> vector<8x96xf32>
    %349 = arith.addf %348, %33 : vector<8x96xf32>
    %cst_87 = arith.constant dense<0.000000e+00> : vector<8x96xf32>
    %350 = tpu.matmul %304, %6, %cst_87 {dimension_numbers = #tpu.dot_dimension_numbers<[1], [0], [0], [1], [0, 0, 1, 1], [], []>} : vector<8x32xf32>, vector<32x96xf32>, vector<8x96xf32> -> vector<8x96xf32>
    %351 = arith.addf %350, %35 : vector<8x96xf32>
    %352 = vector.extract_strided_slice %349 {offsets = [0, 0], sizes = [8, 32], strides = [1, 1]} : vector<8x96xf32> to vector<8x32xf32>
    %353 = vector.extract_strided_slice %351 {offsets = [0, 0], sizes = [8, 32], strides = [1, 1]} : vector<8x96xf32> to vector<8x32xf32>
    %354 = arith.addf %352, %353 : vector<8x32xf32>
    %355 = arith.negf %354 : vector<8x32xf32>
    %356 = math.exp %355 : vector<8x32xf32>
    %cst_88 = arith.constant 1.000000e+00 : f32
    %357 = vector.broadcast %cst_88 : f32 to vector<8x32xf32>
    %358 = arith.addf %357, %356 : vector<8x32xf32>
    %359 = arith.divf %357, %358 : vector<8x32xf32>
    %360 = vector.extract_strided_slice %349 {offsets = [0, 32], sizes = [8, 32], strides = [1, 1]} : vector<8x96xf32> to vector<8x32xf32>
    %361 = vector.extract_strided_slice %351 {offsets = [0, 32], sizes = [8, 32], strides = [1, 1]} : vector<8x96xf32> to vector<8x32xf32>
    %362 = arith.addf %360, %361 : vector<8x32xf32>
    %363 = arith.negf %362 : vector<8x32xf32>
    %364 = math.exp %363 : vector<8x32xf32>
    %cst_89 = arith.constant 1.000000e+00 : f32
    %365 = vector.broadcast %cst_89 : f32 to vector<8x32xf32>
    %366 = arith.addf %365, %364 : vector<8x32xf32>
    %367 = arith.divf %365, %366 : vector<8x32xf32>
    %368 = vector.extract_strided_slice %349 {offsets = [0, 64], sizes = [8, 32], strides = [1, 1]} : vector<8x96xf32> to vector<8x32xf32>
    %369 = vector.extract_strided_slice %351 {offsets = [0, 64], sizes = [8, 32], strides = [1, 1]} : vector<8x96xf32> to vector<8x32xf32>
    %370 = arith.mulf %359, %369 : vector<8x32xf32>
    %371 = arith.addf %368, %370 : vector<8x32xf32>
    %372 = math.tanh %371 : vector<8x32xf32>
    %cst_90 = arith.constant 1.000000e+00 : f32
    %373 = vector.broadcast %cst_90 : f32 to vector<8x32xf32>
    %374 = arith.subf %373, %367 : vector<8x32xf32>
    %375 = arith.mulf %374, %372 : vector<8x32xf32>
    %376 = arith.mulf %367, %304 : vector<8x32xf32>
    %377 = arith.addf %375, %376 : vector<8x32xf32>
    %cst_91 = arith.constant dense<0.000000e+00> : vector<8xf32>
    %378 = vector.multi_reduction <add>, %377, %cst_91 [1] : vector<8x32xf32> to vector<8xf32>
    %379 = vector.shape_cast %378 : vector<8xf32> to vector<8x1xf32>
    %cst_92 = arith.constant 3.200000e+01 : f32
    %380 = vector.broadcast %cst_92 : f32 to vector<8x1xf32>
    %381 = arith.divf %379, %380 : vector<8x1xf32>
    %382 = vector.broadcast %381 : vector<8x1xf32> to vector<8x32xf32>
    %383 = arith.subf %377, %382 : vector<8x32xf32>
    %384 = arith.mulf %383, %383 : vector<8x32xf32>
    %cst_93 = arith.constant dense<0.000000e+00> : vector<8xf32>
    %385 = vector.multi_reduction <add>, %384, %cst_93 [1] : vector<8x32xf32> to vector<8xf32>
    %386 = vector.shape_cast %385 : vector<8xf32> to vector<8x1xf32>
    %cst_94 = arith.constant 3.200000e+01 : f32
    %387 = vector.broadcast %cst_94 : f32 to vector<8x1xf32>
    %388 = arith.divf %386, %387 : vector<8x1xf32>
    %389 = vector.broadcast %381 : vector<8x1xf32> to vector<8x32xf32>
    %390 = arith.subf %377, %389 : vector<8x32xf32>
    %cst_95 = arith.constant 9.99999974E-6 : f32
    %391 = vector.broadcast %cst_95 : f32 to vector<8x1xf32>
    %392 = arith.addf %388, %391 : vector<8x1xf32>
    %393 = math.rsqrt %392 : vector<8x1xf32>
    %394 = vector.broadcast %393 : vector<8x1xf32> to vector<8x32xf32>
    %395 = arith.mulf %390, %394 : vector<8x32xf32>
    %396 = arith.mulf %395, %27 : vector<8x32xf32>
    %397 = arith.addf %396, %29 : vector<8x32xf32>
    %398 = vector.shape_cast %397 : vector<8x32xf32> to vector<2x4x32xf32>
    %cst_96 = arith.constant dense<0.000000e+00> : vector<2x32xf32>
    %399 = vector.multi_reduction <add>, %398, %cst_96 [1] : vector<2x4x32xf32> to vector<2x32xf32>
    %400 = vector.shape_cast %399 : vector<2x32xf32> to vector<2x1x32xf32>
    %cst_97 = arith.constant 4.000000e+00 : f32
    %401 = vector.broadcast %cst_97 : f32 to vector<2x1x32xf32>
    %402 = arith.divf %400, %401 : vector<2x1x32xf32>
    %403 = vector.shape_cast %402 : vector<2x1x32xf32> to vector<2x1x32xf32>
    %404 = vector.broadcast %403 : vector<2x1x32xf32> to vector<2x4x32xf32>
    %405 = vector.shape_cast %404 : vector<2x4x32xf32> to vector<8x32xf32>
    %406 = tpu.concatenate %397, %405 in 1 : vector<8x32xf32>, vector<8x32xf32> -> vector<8x64xf32>
    %cst_98 = arith.constant dense<0.000000e+00> : vector<8x128xf32>
    %407 = tpu.matmul %406, %7, %cst_98 {dimension_numbers = #tpu.dot_dimension_numbers<[1], [0], [0], [1], [0, 0, 1, 1], [], []>} : vector<8x64xf32>, vector<64x128xf32>, vector<8x128xf32> -> vector<8x128xf32>
    %408 = arith.addf %407, %37 : vector<8x128xf32>
    %cst_99 = arith.constant 0.000000e+00 : f32
    %409 = vector.broadcast %cst_99 : f32 to vector<8x128xf32>
    %410 = arith.maximumf %408, %409 : vector<8x128xf32>
    %411 = vector.shape_cast %410 : vector<8x128xf32> to vector<2x4x128xf32>
    %cst_100 = arith.constant dense<0.000000e+00> : vector<2x128xf32>
    %412 = vector.multi_reduction <add>, %411, %cst_100 [1] : vector<2x4x128xf32> to vector<2x128xf32>
    %413 = vector.shape_cast %412 : vector<2x128xf32> to vector<2x1x128xf32>
    %cst_101 = arith.constant 4.000000e+00 : f32
    %414 = vector.broadcast %cst_101 : f32 to vector<2x1x128xf32>
    %415 = arith.divf %413, %414 : vector<2x1x128xf32>
    %416 = vector.shape_cast %415 : vector<2x1x128xf32> to vector<2x1x128xf32>
    %417 = vector.broadcast %416 : vector<2x1x128xf32> to vector<2x4x128xf32>
    %418 = vector.shape_cast %417 : vector<2x4x128xf32> to vector<8x128xf32>
    %419 = tpu.concatenate %410, %418 in 1 : vector<8x128xf32>, vector<8x128xf32> -> vector<8x256xf32>
    %cst_102 = arith.constant dense<0.000000e+00> : vector<8x32xf32>
    %420 = tpu.matmul %419, %8, %cst_102 {dimension_numbers = #tpu.dot_dimension_numbers<[1], [0], [0], [1], [0, 0, 1, 1], [], []>} : vector<8x256xf32>, vector<256x32xf32>, vector<8x32xf32> -> vector<8x32xf32>
    %421 = arith.addf %420, %39 : vector<8x32xf32>
    %422 = arith.addf %377, %421 : vector<8x32xf32>
    %423 = vector.shape_cast %338 : vector<2x4x16xf32> to vector<8x16xf32>
    %cst_103 = arith.constant 0.000000e+00 : f32
    %424 = vector.broadcast %cst_103 : f32 to vector<8x80xf32>
    %425 = tpu.concatenate %422, %423, %424 in 1 : vector<8x32xf32>, vector<8x16xf32>, vector<8x80xf32> -> vector<8x128xf32>
    %c0_104 = arith.constant 0 : index
    %c0_105 = arith.constant 0 : index
    %426 = vector.load %arg7[%c0_104, %c0_105] : memref<8x128xf32, #tpu.memory_space<vmem>>, vector<8x128xf32>
    tpu.vector_store %arg7[%c0_104, %c0_105], %425 {strides = array<i32>} : memref<8x128xf32, #tpu.memory_space<vmem>>, vector<8x128xf32>,
    return
  }
  func.func @transform_0(%arg0: i32) -> (i32, i32) {
    %c0_i32 = arith.constant 0 : i32
    %c0_i32_0 = arith.constant 0 : i32
    %c0_i32_1 = arith.constant 0 : i32
    return %c0_i32, %c0_i32_0 : i32, i32
  }
  func.func @transform_1(%arg0: i32) -> (i32, i32) {
    %c0_i32 = arith.constant 0 : i32
    %c0_i32_0 = arith.constant 0 : i32
    %c0_i32_1 = arith.constant 0 : i32
    return %c0_i32, %c0_i32_0 : i32, i32
  }
  func.func @transform_2(%arg0: i32) -> (i32, i32) {
    %c0_i32 = arith.constant 0 : i32
    %c0_i32_0 = arith.constant 0 : i32
    %c0_i32_1 = arith.constant 0 : i32
    return %c0_i32, %c0_i32_0 : i32, i32
  }
  func.func @transform_3(%arg0: i32) -> (i32, i32) {
    %c0_i32 = arith.constant 0 : i32
    %c0_i32_0 = arith.constant 0 : i32
    %c0_i32_1 = arith.constant 0 : i32
    return %c0_i32, %c0_i32_0 : i32, i32
  }
  func.func @transform_4(%arg0: i32) -> (i32, i32) {
    %c0_i32 = arith.constant 0 : i32
    %c0_i32_0 = arith.constant 0 : i32
    %c0_i32_1 = arith.constant 0 : i32
    return %c0_i32, %c0_i32_0 : i32, i32
  }
  func.func @transform_5(%arg0: i32) -> (i32, i32) {
    %c0_i32 = arith.constant 0 : i32
    %c0_i32_0 = arith.constant 0 : i32
    %c0_i32_1 = arith.constant 0 : i32
    return %c0_i32, %c0_i32_0 : i32, i32
  }
  func.func @transform_6(%arg0: i32) -> (i32, i32) {
    %c0_i32 = arith.constant 0 : i32
    %c0_i32_0 = arith.constant 0 : i32
    %c0_i32_1 = arith.constant 0 : i32
    return %c0_i32, %c0_i32_0 : i32, i32
  }
}

</mosaic_0001>

<llo_original>
// kernel: slot_attention_forward.1
$region0: #{slot_attention_forward.1}
  #allocation0 [shape = 'u32[]', space=smem, size = 0x4, offset = 0x4, fixed_abs, tag = 'smem constant byte address 0x4 - core index']
  #allocation1 [shape = 'u32[144,128]{1,0:T(1,128)}', space=vmem, size = 0x12000, scoped, tag = 'internal scratch']
  %s0 = inlined_call_operand.vmem [shape: f32[32,32], index: 0, kind: input, shape index: {}]
  %s1 = inlined_call_operand.vmem [shape: f32[8,32], index: 1, kind: input, shape index: {}]
  %s2 = inlined_call_operand.vmem [shape: f32[32,288], index: 2, kind: input, shape index: {}]
  %s3 = inlined_call_operand.vmem [shape: f32[64,128], index: 3, kind: input, shape index: {}]
  %s4 = inlined_call_operand.vmem [shape: f32[256,32], index: 4, kind: input, shape index: {}]
  %s5 = inlined_call_operand.vmem [shape: f32[16,128], index: 5, kind: input, shape index: {}]
  %s6 = inlined_call_operand.vmem [shape: f32[8,128], index: 6, kind: output, shape index: {}]
  %s7 = sld [smem:[#allocation0]]
  $region34: #{slot_attention_forward.1} parent=0
    _
  %s9 = ssub.s32 1, %s7
  %s10 = scalar_select 0, %s9, %s7
  // Predicated region
  $region2: #{slot_attention_forward.1} parent=0 // pred_check
    _
  $region3: #{slot_attention_forward.1} parent=0 // pred_check_branch
    %12 = sbr.rel (0) target = $region5
  $region4: #{slot_attention_forward.1} parent=0 // pred_region
    _
  $region5: #{slot_attention_forward.1} parent=0 // pred_fallthru
    _
  // Predicated region
  $region6: #{slot_attention_forward.1} parent=0 // pred_check
    _
  $region7: #{slot_attention_forward.1} parent=0 // pred_check_branch
    %14 = sbr.rel (0) target = $region9
  $region8: #{slot_attention_forward.1} parent=0 // pred_region
    _
  $region9: #{slot_attention_forward.1} parent=0 // pred_fallthru
    _
  // Predicated region
  $region10: #{slot_attention_forward.1} parent=0 // pred_check
    _
  $region11: #{slot_attention_forward.1} parent=0 // pred_check_branch
    %16 = sbr.rel (0) target = $region13
  $region12: #{slot_attention_forward.1} parent=0 // pred_region
    _
  $region13: #{slot_attention_forward.1} parent=0 // pred_fallthru
    _
  // Predicated region
  $region14: #{slot_attention_forward.1} parent=0 // pred_check
    _
  $region15: #{slot_attention_forward.1} parent=0 // pred_check_branch
    %18 = sbr.rel (0) target = $region17
  $region16: #{slot_attention_forward.1} parent=0 // pred_region
    _
  $region17: #{slot_attention_forward.1} parent=0 // pred_fallthru
    _
  // Predicated region
  $region18: #{slot_attention_forward.1} parent=0 // pred_check
    _
  $region19: #{slot_attention_forward.1} parent=0 // pred_check_branch
    %20 = sbr.rel (0) target = $region21
  $region20: #{slot_attention_forward.1} parent=0 // pred_region
    _
  $region21: #{slot_attention_forward.1} parent=0 // pred_fallthru
    _
  // Predicated region
  $region22: #{slot_attention_forward.1} parent=0 // pred_check
    _
  $region23: #{slot_attention_forward.1} parent=0 // pred_check_branch
    %22 = sbr.rel (0) target = $region25
  $region24: #{slot_attention_forward.1} parent=0 // pred_region
    _
  $region25: #{slot_attention_forward.1} parent=0 // pred_fallthru
    _
  %v23 = vld [vmem:[%s0] sm:$0xff]
  %v24 = vld [vmem:[%s0 + $0x8] sm:$0xff]
  %v25 = vld [vmem:[%s0 + $0x10] sm:$0xff]
  %v26 = vld [vmem:[%s0 + $0x18] sm:$0xff]
  %v27 = vld [vmem:[%s1] sm:$0xff]
  %v28 = vld [vmem:[%s2] sm:$0xff]
  %v29 = vld [vmem:[%s2 + $0x8] sm:$0xff]
  %v30 = vld [vmem:[%s2 + $0x10] sm:$0xff]
  %v31 = vld [vmem:[%s2 + $0x18] sm:$0xff]
  %v32 = vld [vmem:[%s2 + $0x20] sm:$0xff]
  %v33 = vld [vmem:[%s2 + $0x28] sm:$0xff]
  %v34 = vld [vmem:[%s2 + $0x30] sm:$0xff]
  %v35 = vld [vmem:[%s2 + $0x38] sm:$0xff]
  %v36 = vld [vmem:[%s2 + $0x40] sm:$0xff]
  %v37 = vld [vmem:[%s2 + $0x48] sm:$0xff]
  %v38 = vld [vmem:[%s2 + $0x50] sm:$0xff]
  %v39 = vld [vmem:[%s2 + $0x58] sm:$0xff]
  %v40 = vld [vmem:[%s3] sm:$0xff]
  %v41 = vld [vmem:[%s3 + $0x8] sm:$0xff]
  %v42 = vld [vmem:[%s3 + $0x10] sm:$0xff]
  %v43 = vld [vmem:[%s3 + $0x18] sm:$0xff]
  %v44 = vld [vmem:[%s3 + $0x20] sm:$0xff]
  %v45 = vld [vmem:[%s3 + $0x28] sm:$0xff]
  %v46 = vld [vmem:[%s3 + $0x30] sm:$0xff]
  %v47 = vld [vmem:[%s3 + $0x38] sm:$0xff]
  %v48 = vld [vmem:[%s4] sm:$0xff]
  %v49 = vld [vmem:[%s4 + $0x8] sm:$0xff]
  %v50 = vld [vmem:[%s4 + $0x10] sm:$0xff]
  %v51 = vld [vmem:[%s4 + $0x18] sm:$0xff]
  %v52 = vld [vmem:[%s4 + $0x20] sm:$0xff]
  %v53 = vld [vmem:[%s4 + $0x28] sm:$0xff]
  %v54 = vld [vmem:[%s4 + $0x30] sm:$0xff]
  %v55 = vld [vmem:[%s4 + $0x38] sm:$0xff]
  %v56 = vld [vmem:[%s4 + $0x40] sm:$0xff]
  %v57 = vld [vmem:[%s4 + $0x48] sm:$0xff]
  %v58 = vld [vmem:[%s4 + $0x50] sm:$0xff]
  %v59 = vld [vmem:[%s4 + $0x58] sm:$0xff]
  %v60 = vld [vmem:[%s4 + $0x60] sm:$0xff]
  %v61 = vld [vmem:[%s4 + $0x68] sm:$0xff]
  %v62 = vld [vmem:[%s4 + $0x70] sm:$0xff]
  %v63 = vld [vmem:[%s4 + $0x78] sm:$0xff]
  %v64 = vld [vmem:[%s4 + $0x80] sm:$0xff]
  %v65 = vld [vmem:[%s4 + $0x88] sm:$0xff]
  %v66 = vld [vmem:[%s4 + $0x90] sm:$0xff]
  %v67 = vld [vmem:[%s4 + $0x98] sm:$0xff]
  %v68 = vld [vmem:[%s4 + $0xa0] sm:$0xff]
  %v69 = vld [vmem:[%s4 + $0xa8] sm:$0xff]
  %v70 = vld [vmem:[%s4 + $0xb0] sm:$0xff]
  %v71 = vld [vmem:[%s4 + $0xb8] sm:$0xff]
  %v72 = vld [vmem:[%s4 + $0xc0] sm:$0xff]
  %v73 = vld [vmem:[%s4 + $0xc8] sm:$0xff]
  %v74 = vld [vmem:[%s4 + $0xd0] sm:$0xff]
  %v75 = vld [vmem:[%s4 + $0xd8] sm:$0xff]
  %v76 = vld [vmem:[%s4 + $0xe0] sm:$0xff]
  %v77 = vld [vmem:[%s4 + $0xe8] sm:$0xff]
  %v78 = vld [vmem:[%s4 + $0xf0] sm:$0xff]
  %v79 = vld [vmem:[%s4 + $0xf8] sm:$0xff]
  %v80 = vld [vmem:[%s5] sm:$0xff]
  %v81 = vld [vmem:[%s5 + $0x8] sm:$0xff]
  %v82 = vlaneseq
  %v83 = vshrl.u32 %v82, 7
  %v84 = vsub.s32 2, %v83
  %v85 = vrot.slane %v80, %v84
  %v86 = vlaneseq
  %v87 = vshrl.u32 %v86, 7
  %v88 = vsub.s32 3, %v87
  %v89 = vrot.slane %v80, %v88
  %v90 = vlaneseq
  %v91 = vshrl.u32 %v90, 7
  %v92 = vsub.s32 4, %v91
  %v93 = vrot.slane %v80, %v92
  %v94 = vlaneseq
  %v95 = vshrl.u32 %v94, 7
  %v96 = vsub.s32 5, %v95
  %v97 = vrot.slane %v80, %v96
  %v98 = vlaneseq
  %v99 = vshrl.u32 %v98, 7
  %v100 = vsub.s32 6, %v99
  %v101 = vrot.slane %v80, %v100
  %v102 = vlaneseq
  %v103 = vshrl.u32 %v102, 7
  %v104 = vsub.s32 0, %v103
  %v105 = vrot.slane %v81, %v104
  %v106 = vlaneseq
  %v107 = vshrl.u32 %v106, 7
  %v108 = vsub.s32 1, %v107
  %v109 = vrot.slane %v81, %v108
  %v110 = vlaneseq
  %v111 = vshrl.u32 %v110, 7
  %v112 = vsub.s32 2, %v111
  %v113 = vrot.slane %v81, %v112
  %v114 = vlaneseq
  %v115 = vshrl.u32 %v114, 7
  %v116 = vsub.s32 3, %v115
  %v117 = vrot.slane %v81, %v116
  %vm118 = vcmask 261120
  %v119 = vsel %vm118, %v23, 0.0
  %120 = vadd.xlane.f32.xlu0 %v119
  %v121 = vpop.xlane.xlu0 %120
  %v122 = vsel %vm118, %v24, 0.0
  %123 = vadd.xlane.f32.xlu0 %v122
  %v124 = vpop.xlane.xlu0 %123
  %v125 = vsel %vm118, %v25, 0.0
  %126 = vadd.xlane.f32.xlu0 %v125
  %v127 = vpop.xlane.xlu0 %126
  %v128 = vsel %vm118, %v26, 0.0
  %129 = vadd.xlane.f32.xlu0 %v128
  %v130 = vpop.xlane.xlu0 %129
  %v131 = vrcp.pop 32.0
  %v132 = vmul.f32 %v121, %v131
  %v133 = vmul.f32 %v124, %v131
  %v134 = vmul.f32 %v127, %v131
  %v135 = vmul.f32 %v130, %v131
  %v136 = vsub.f32 %v23, %v132
  %v137 = vsub.f32 %v24, %v133
  %v138 = vsub.f32 %v25, %v134
  %v139 = vsub.f32 %v26, %v135
  %v140 = vmul.f32 %v136, %v136
  %v141 = vmul.f32 %v137, %v137
  %v142 = vmul.f32 %v138, %v138
  %v143 = vmul.f32 %v139, %v139
  %v144 = vsel %vm118, %v140, 0.0
  %145 = vadd.xlane.f32.xlu0 %v144
  %v146 = vpop.xlane.xlu0 %145
  %v147 = vsel %vm118, %v141, 0.0
  %148 = vadd.xlane.f32.xlu0 %v147
  %v149 = vpop.xlane.xlu0 %148
  %v150 = vsel %vm118, %v142, 0.0
  %151 = vadd.xlane.f32.xlu0 %v150
  %v152 = vpop.xlane.xlu0 %151
  %v153 = vsel %vm118, %v143, 0.0
  %154 = vadd.xlane.f32.xlu0 %v153
  %v155 = vpop.xlane.xlu0 %154
  %v156 = vmul.f32 %v146, %v131
  %v157 = vmul.f32 %v149, %v131
  %v158 = vmul.f32 %v152, %v131
  %v159 = vmul.f32 %v155, %v131
  %v160 = vadd.f32 %v156, 1e-05
  %v161 = vadd.f32 %v157, 1e-05
  %v162 = vadd.f32 %v158, 1e-05
  %v163 = vadd.f32 %v159, 1e-05
  %v164 = vrsqrt.pop %v160
  %v165 = vrsqrt.pop %v161
  %v166 = vrsqrt.pop %v162
  %v167 = vrsqrt.pop %v163
  %v168 = vmul.f32 %v136, %v164
  %v169 = vmul.f32 %v137, %v165
  %v170 = vmul.f32 %v138, %v166
  %v171 = vmul.f32 %v139, %v167
  %v172 = vlaneseq
  %v173 = vshrl.u32 %v172, 7
  %v174 = vsub.s32 0, %v173
  %v175 = vrot.slane %v80, %v174
  %v176 = vmul.f32 %v168, %v175
  %v177 = vmul.f32 %v169, %v175
  %v178 = vmul.f32 %v170, %v175
  %v179 = vmul.f32 %v171, %v175
  %v180 = vlaneseq
  %v181 = vshrl.u32 %v180, 7
  %v182 = vsub.s32 1, %v181
  %v183 = vrot.slane %v80, %v182
  %v184 = vadd.f32 %v176, %v183
  %v185 = vadd.f32 %v177, %v183
  %v186 = vadd.f32 %v178, %v183
  %v187 = vadd.f32 %v179, %v183
  %v188 = vlaneseq
  %v189 = vshrl.u32 %v188, 7
  %v190 = vsub.s32 7, %v189
  %v191 = vrot.slane %v80, %v190
  %196 = vrot.lane.b32.xlu0 %v28, 96
  %v197 = vpop.permute.xlu0 %196
  %198 = vrot.lane.b32.xlu0 %v31, 96
  %v199 = vpop.permute.xlu0 %198
  %200 = vrot.lane.b32.xlu0 %v34, 96
  %v201 = vpop.permute.xlu0 %200
  %202 = vrot.lane.b32.xlu0 %v37, 96
  %v203 = vpop.permute.xlu0 %202
  %v209 = vsel %vm118, %v184, 0
  %v212 = vsel %vm118, %v185, 0
  %v215 = vsel %vm118, %v186, 0
  %v218 = vsel %vm118, %v187, 0
  %220 = vmatprep.subr.mxu0 0.0
  %221 = vmatpush1.msra.mxu0 %v197
  %222 = vmatprep.subr.mxu0 0.0
  %223 = vmatpush1.msra.mxu0 %v199
  %224 = vmatprep.subr.mxu0 0.0
  %225 = vmatpush1.msra.mxu0 %v201
  %226 = vmatprep.subr.mxu0 0.0
  %227 = vmatpush1.msra.mxu0 %v203
  %228 = vmatprep.subr.mxu0 0.0
  %229 = vmatpush1.msra.mxu0 0.0
  %230 = vmatprep.subr.mxu0 0.0
  %231 = vmatpush1.msra.mxu0 0.0
  %232 = vmatprep.subr.mxu0 0.0
  %233 = vmatpush1.msra.mxu0 0.0
  %234 = vmatprep.subr.mxu0 0.0
  %235 = vmatpush1.msra.mxu0 0.0
  %236 = vmatprep.subr.mxu0 0.0
  %237 = vmatpush1.msra.mxu0 0.0
  %238 = vmatprep.subr.mxu0 0.0
  %239 = vmatpush1.msra.mxu0 0.0
  %240 = vmatprep.subr.mxu0 0.0
  %241 = vmatpush1.msra.mxu0 0.0
  %242 = vmatprep.subr.mxu0 0.0
  %243 = vmatpush1.msra.mxu0 0.0
  %244 = vmatprep.subr.mxu0 0.0
  %245 = vmatpush1.msra.mxu0 0.0
  %246 = vmatprep.subr.mxu0 0.0
  %247 = vmatpush1.msra.mxu0 0.0
  %248 = vmatprep.subr.mxu0 0.0
  %249 = vmatpush1.msra.mxu0 0.0
  %250 = vmatprep.subr.mxu0 0.0
  %251 = vmatpush1.msra.mxu0 0.0
  %252 = vmatprep.subr.mxu0 0.0
  %253 = vmatpush1.msra.mxu0 0.0
  %254 = vmatprep.subr.mxu0 0.0
  %255 = vmatpush1.msra.mxu0 0.0
  %256 = vmatprep.subr.mxu0 0.0
  %257 = vmatpush1.msra.mxu0 0.0
  %258 = vmatprep.subr.mxu0 0.0
  %259 = vmatpush1.msra.mxu0 0.0
  %260 = vmatprep.subr.mxu0 0.0
  %261 = vmatpush1.msra.mxu0 0.0
  %262 = vmatprep.subr.mxu0 0.0
  %263 = vmatpush1.msra.mxu0 0.0
  %264 = vmatprep.subr.mxu0 0.0
  %265 = vmatpush1.msra.mxu0 0.0
  %266 = vmatprep.subr.mxu0 0.0
  %267 = vmatpush1.msra.mxu0 0.0
  %268 = vmatprep.subr.mxu0 0.0
  %269 = vmatpush1.msra.mxu0 0.0
  %270 = vmatprep.subr.mxu0 0.0
  %271 = vmatpush1.msra.mxu0 0.0
  %272 = vmatprep.subr.mxu0 0.0
  %273 = vmatpush1.msra.mxu0 0.0
  %274 = vmatprep.subr.mxu0 0.0
  %275 = vmatpush1.msra.mxu0 0.0
  %276 = vmatprep.subr.mxu0 0.0
  %277 = vmatpush1.msra.mxu0 0.0
  %278 = vmatprep.subr.mxu0 0.0
  %279 = vmatpush1.msra.mxu0 0.0
  %280 = vmatprep.subr.mxu0 0.0
  %281 = vmatpush1.msra.mxu0 0.0
  %282 = vmatprep.subr.mxu0 0.0
  %283 = vmatpush1.msra.mxu0 0.0
  %284 = vmatprep.mubr.f32.mxu0 0.0
  %285 = vmatmul.mubr.f32.gmra.mrb[0].mxu0 %v209
  %v286 = vpop.f32.mrb[0].mxu0
  %v287 = vadd.f32 %v191, %v286
  %v288 = vpop.f32.mrb[0].mxu0
  %289 = vmatprep.mubr.f32.mxu0 0.0
  %290 = vmatmul.mubr.f32.gmra.mrb[0].mxu0 %v212
  %v291 = vpop.f32.mrb[0].mxu0
  %v292 = vadd.f32 %v191, %v291
  %v293 = vpop.f32.mrb[0].mxu0
  %294 = vmatprep.mubr.f32.mxu0 0.0
  %295 = vmatmul.mubr.f32.gmra.mrb[0].mxu0 %v215
  %v296 = vpop.f32.mrb[0].mxu0
  %v297 = vadd.f32 %v191, %v296
  %v298 = vpop.f32.mrb[0].mxu0
  %299 = vmatprep.mubr.f32.mxu0 0.0
  %300 = vmatmul.mubr.f32.gmra.mrb[0].mxu0 %v218
  %v301 = vpop.f32.mrb[0].mxu0
  %v302 = vadd.f32 %v191, %v301
  %v303 = vpop.f32.mrb[0].mxu0
  %304 = vdwg.mxu0
  %v305 = vsel %vm118, %v27, 0.0
  %306 = vadd.xlane.f32.xlu0 %v305
  %v307 = vpop.xlane.xlu0 %306
  %v308 = vmul.f32 %v307, %v131
  %v309 = vsub.f32 %v27, %v308
  %v310 = vmul.f32 %v309, %v309
  %v311 = vsel %vm118, %v310, 0.0
  %312 = vadd.xlane.f32.xlu0 %v311
  %v313 = vpop.xlane.xlu0 %312
  %v314 = vmul.f32 %v313, %v131
  %v315 = vadd.f32 %v314, 1e-05
  %v316 = vrsqrt.pop %v315
  %v317 = vmul.f32 %v309, %v316
  %v318 = vmul.f32 %v317, %v85
  %v319 = vadd.f32 %v318, %v89
  %v321 = vsel %vm118, %v319, 0
  %323 = vmatprep.subr.mxu0 0.0
  %324 = vmatpush1.msra.mxu0 %v28
  %325 = vmatprep.subr.mxu0 0.0
  %326 = vmatpush1.msra.mxu0 %v31
  %327 = vmatprep.subr.mxu0 0.0
  %328 = vmatpush1.msra.mxu0 %v34
  %329 = vmatprep.subr.mxu0 0.0
  %330 = vmatpush1.msra.mxu0 %v37
  %331 = vmatprep.subr.mxu0 0.0
  %332 = vmatpush1.msra.mxu0 0.0
  %333 = vmatprep.subr.mxu0 0.0
  %334 = vmatpush1.msra.mxu0 0.0
  %335 = vmatprep.subr.mxu0 0.0
  %336 = vmatpush1.msra.mxu0 0.0
  %337 = vmatprep.subr.mxu0 0.0
  %338 = vmatpush1.msra.mxu0 0.0
  %339 = vmatprep.subr.mxu0 0.0
  %340 = vmatpush1.msra.mxu0 0.0
  %341 = vmatprep.subr.mxu0 0.0
  %342 = vmatpush1.msra.mxu0 0.0
  %343 = vmatprep.subr.mxu0 0.0
  %344 = vmatpush1.msra.mxu0 0.0
  %345 = vmatprep.subr.mxu0 0.0
  %346 = vmatpush1.msra.mxu0 0.0
  %347 = vmatprep.subr.mxu0 0.0
  %348 = vmatpush1.msra.mxu0 0.0
  %349 = vmatprep.subr.mxu0 0.0
  %350 = vmatpush1.msra.mxu0 0.0
  %351 = vmatprep.subr.mxu0 0.0
  %352 = vmatpush1.msra.mxu0 0.0
  %353 = vmatprep.subr.mxu0 0.0
  %354 = vmatpush1.msra.mxu0 0.0
  %355 = vmatprep.subr.mxu0 0.0
  %356 = vmatpush1.msra.mxu0 0.0
  %357 = vmatprep.subr.mxu0 0.0
  %358 = vmatpush1.msra.mxu0 0.0
  %359 = vmatprep.subr.mxu0 0.0
  %360 = vmatpush1.msra.mxu0 0.0
  %361 = vmatprep.subr.mxu0 0.0
  %362 = vmatpush1.msra.mxu0 0.0
  %363 = vmatprep.subr.mxu0 0.0
  %364 = vmatpush1.msra.mxu0 0.0
  %365 = vmatprep.subr.mxu0 0.0
  %366 = vmatpush1.msra.mxu0 0.0
  %367 = vmatprep.subr.mxu0 0.0
  %368 = vmatpush1.msra.mxu0 0.0
  %369 = vmatprep.subr.mxu0 0.0
  %370 = vmatpush1.msra.mxu0 0.0
  %371 = vmatprep.subr.mxu0 0.0
  %372 = vmatpush1.msra.mxu0 0.0
  %373 = vmatprep.subr.mxu0 0.0
  %374 = vmatpush1.msra.mxu0 0.0
  %375 = vmatprep.subr.mxu0 0.0
  %376 = vmatpush1.msra.mxu0 0.0
  %377 = vmatprep.subr.mxu0 0.0
  %378 = vmatpush1.msra.mxu0 0.0
  %379 = vmatprep.subr.mxu0 0.0
  %380 = vmatpush1.msra.mxu0 0.0
  %381 = vmatprep.subr.mxu0 0.0
  %382 = vmatpush1.msra.mxu0 0.0
  %383 = vmatprep.subr.mxu0 0.0
  %384 = vmatpush1.msra.mxu0 0.0
  %385 = vmatprep.subr.mxu0 0.0
  %386 = vmatpush1.msra.mxu0 0.0
  %387 = vmatprep.mubr.f32.mxu0 0.0
  %388 = vmatmul.mubr.f32.gmra.mrb[0].mxu0 %v321
  %v389 = vpop.f32.mrb[0].mxu0
  %v390 = vadd.f32 %v101, %v389
  %v391 = vpop.f32.mrb[0].mxu0
  %392 = vdwg.mxu0
  %v394 = vcombine.high %v390, %v390
  %v395 = vsel %vm118, %v390, 0
  %v398 = vsel %vm118, %v287, 0
  %v401 = vsel %vm118, %v292, 0
  %403 = vmatprep.subr.mxu0 0.0
  %404 = vmatpush1.xpose.msra.mxu0 %v398
  %405 = vmatprep.subr.mxu0 0.0
  %406 = vmatpush1.xpose.msra.mxu0 %v401
  %407 = vmatprep.subr.mxu0 0.0
  %408 = vmatpush1.xpose.msra.mxu0 0.0
  %409 = vmatprep.subr.mxu0 0.0
  %410 = vmatpush1.xpose.msra.mxu0 0.0
  %411 = vmatprep.subr.mxu0 0.0
  %412 = vmatpush1.xpose.msra.mxu0 0.0
  %413 = vmatprep.subr.mxu0 0.0
  %414 = vmatpush1.xpose.msra.mxu0 0.0
  %415 = vmatprep.subr.mxu0 0.0
  %416 = vmatpush1.xpose.msra.mxu0 0.0
  %417 = vmatprep.subr.mxu0 0.0
  %418 = vmatpush1.xpose.msra.mxu0 0.0
  %419 = vmatprep.subr.mxu0 0.0
  %420 = vmatpush1.xpose.msra.mxu0 0.0
  %421 = vmatprep.subr.mxu0 0.0
  %422 = vmatpush1.xpose.msra.mxu0 0.0
  %423 = vmatprep.subr.mxu0 0.0
  %424 = vmatpush1.xpose.msra.mxu0 0.0
  %425 = vmatprep.subr.mxu0 0.0
  %426 = vmatpush1.xpose.msra.mxu0 0.0
  %427 = vmatprep.subr.mxu0 0.0
  %428 = vmatpush1.xpose.msra.mxu0 0.0
  %429 = vmatprep.subr.mxu0 0.0
  %430 = vmatpush1.xpose.msra.mxu0 0.0
  %431 = vmatprep.subr.mxu0 0.0
  %432 = vmatpush1.xpose.msra.mxu0 0.0
  %433 = vmatprep.subr.mxu0 0.0
  %434 = vmatpush1.xpose.msra.mxu0 0.0
  %435 = vmatprep.subr.mxu0 0.0
  %436 = vmatpush1.xpose.msra.mxu0 0.0
  %437 = vmatprep.subr.mxu0 0.0
  %438 = vmatpush1.xpose.msra.mxu0 0.0
  %439 = vmatprep.subr.mxu0 0.0
  %440 = vmatpush1.xpose.msra.mxu0 0.0
  %441 = vmatprep.subr.mxu0 0.0
  %442 = vmatpush1.xpose.msra.mxu0 0.0
  %443 = vmatprep.subr.mxu0 0.0
  %444 = vmatpush1.xpose.msra.mxu0 0.0
  %445 = vmatprep.subr.mxu0 0.0
  %446 = vmatpush1.xpose.msra.mxu0 0.0
  %447 = vmatprep.subr.mxu0 0.0
  %448 = vmatpush1.xpose.msra.mxu0 0.0
  %449 = vmatprep.subr.mxu0 0.0
  %450 = vmatpush1.xpose.msra.mxu0 0.0
  %451 = vmatprep.subr.mxu0 0.0
  %452 = vmatpush1.xpose.msra.mxu0 0.0
  %453 = vmatprep.subr.mxu0 0.0
  %454 = vmatpush1.xpose.msra.mxu0 0.0
  %455 = vmatprep.subr.mxu0 0.0
  %456 = vmatpush1.xpose.msra.mxu0 0.0
  %457 = vmatprep.subr.mxu0 0.0
  %458 = vmatpush1.xpose.msra.mxu0 0.0
  %459 = vmatprep.subr.mxu0 0.0
  %460 = vmatpush1.xpose.msra.mxu0 0.0
  %461 = vmatprep.subr.mxu0 0.0
  %462 = vmatpush1.xpose.msra.mxu0 0.0
  %463 = vmatprep.subr.mxu0 0.0
  %464 = vmatpush1.xpose.msra.mxu0 0.0
  %465 = vmatprep.subr.mxu0 0.0
  %466 = vmatpush1.xpose.msra.mxu0 0.0
  %467 = vmatprep.mubr.f32.mxu0 0.0
  %468 = vmatmul.mubr.f32.gmra.mrb[0].mxu0 %v395
  %v469 = vpop.f32.mrb[0].mxu0
  %v470 = vadd.f32 0.0, %v469
  %v471 = vpop.f32.mrb[0].mxu0
  %472 = vdwg.mxu0
  %v473 = vsel %vm118, %v394, 0
  %v476 = vsel %vm118, %v297, 0
  %v479 = vsel %vm118, %v302, 0
  %481 = vmatprep.subr.mxu0 0.0
  %482 = vmatpush1.xpose.msra.mxu0 %v476
  %483 = vmatprep.subr.mxu0 0.0
  %484 = vmatpush1.xpose.msra.mxu0 %v479
  %485 = vmatprep.subr.mxu0 0.0
  %486 = vmatpush1.xpose.msra.mxu0 0.0
  %487 = vmatprep.subr.mxu0 0.0
  %488 = vmatpush1.xpose.msra.mxu0 0.0
  %489 = vmatprep.subr.mxu0 0.0
  %490 = vmatpush1.xpose.msra.mxu0 0.0
  %491 = vmatprep.subr.mxu0 0.0
  %492 = vmatpush1.xpose.msra.mxu0 0.0
  %493 = vmatprep.subr.mxu0 0.0
  %494 = vmatpush1.xpose.msra.mxu0 0.0
  %495 = vmatprep.subr.mxu0 0.0
  %496 = vmatpush1.xpose.msra.mxu0 0.0
  %497 = vmatprep.subr.mxu0 0.0
  %498 = vmatpush1.xpose.msra.mxu0 0.0
  %499 = vmatprep.subr.mxu0 0.0
  %500 = vmatpush1.xpose.msra.mxu0 0.0
  %501 = vmatprep.subr.mxu0 0.0
  %502 = vmatpush1.xpose.msra.mxu0 0.0
  %503 = vmatprep.subr.mxu0 0.0
  %504 = vmatpush1.xpose.msra.mxu0 0.0
  %505 = vmatprep.subr.mxu0 0.0
  %506 = vmatpush1.xpose.msra.mxu0 0.0
  %507 = vmatprep.subr.mxu0 0.0
  %508 = vmatpush1.xpose.msra.mxu0 0.0
  %509 = vmatprep.subr.mxu0 0.0
  %510 = vmatpush1.xpose.msra.mxu0 0.0
  %511 = vmatprep.subr.mxu0 0.0
  %512 = vmatpush1.xpose.msra.mxu0 0.0
  %513 = vmatprep.subr.mxu0 0.0
  %514 = vmatpush1.xpose.msra.mxu0 0.0
  %515 = vmatprep.subr.mxu0 0.0
  %516 = vmatpush1.xpose.msra.mxu0 0.0
  %517 = vmatprep.subr.mxu0 0.0
  %518 = vmatpush1.xpose.msra.mxu0 0.0
  %519 = vmatprep.subr.mxu0 0.0
  %520 = vmatpush1.xpose.msra.mxu0 0.0
  %521 = vmatprep.subr.mxu0 0.0
  %522 = vmatpush1.xpose.msra.mxu0 0.0
  %523 = vmatprep.subr.mxu0 0.0
  %524 = vmatpush1.xpose.msra.mxu0 0.0
  %525 = vmatprep.subr.mxu0 0.0
  %526 = vmatpush1.xpose.msra.mxu0 0.0
  %527 = vmatprep.subr.mxu0 0.0
  %528 = vmatpush1.xpose.msra.mxu0 0.0
  %529 = vmatprep.subr.mxu0 0.0
  %530 = vmatpush1.xpose.msra.mxu0 0.0
  %531 = vmatprep.subr.mxu0 0.0
  %532 = vmatpush1.xpose.msra.mxu0 0.0
  %533 = vmatprep.subr.mxu0 0.0
  %534 = vmatpush1.xpose.msra.mxu0 0.0
  %535 = vmatprep.subr.mxu0 0.0
  %536 = vmatpush1.xpose.msra.mxu0 0.0
  %537 = vmatprep.subr.mxu0 0.0
  %538 = vmatpush1.xpose.msra.mxu0 0.0
  %539 = vmatprep.subr.mxu0 0.0
  %540 = vmatpush1.xpose.msra.mxu0 0.0
  %541 = vmatprep.subr.mxu0 0.0
  %542 = vmatpush1.xpose.msra.mxu0 0.0
  %543 = vmatprep.subr.mxu0 0.0
  %544 = vmatpush1.xpose.msra.mxu0 0.0
  %545 = vmatprep.mubr.f32.mxu0 0.0
  %546 = vmatmul.mubr.f32.gmra.mrb[0].mxu0 %v473
  %v547 = vpop.f32.mrb[0].mxu0
  %v548 = vadd.f32 0.0, %v547
  %v549 = vpop.f32.mrb[0].mxu0
  %550 = vdwg.mxu0
  %vm551 = vcmask 125952
  %v552 = vsel %vm551, %v470, -inf
  %v553 = vrot.slane %v552, 4
  %v554 = vmax.f32 %v552, %v553
  %v555 = vrot.slane %v554, 2
  %v556 = vmax.f32 %v554, %v555
  %v557 = vrot.slane %v556, 1
  %v558 = vmax.f32 %v556, %v557
  %v559 = vsel %vm551, %v548, -inf
  %v560 = vrot.slane %v559, 4
  %v561 = vmax.f32 %v559, %v560
  %v562 = vrot.slane %v561, 2
  %v563 = vmax.f32 %v561, %v562
  %v564 = vrot.slane %v563, 1
  %v565 = vmax.f32 %v563, %v564
  %v566 = vsub.f32 %v470, %v558
  %v567 = vsub.f32 %v548, %v565
  %v568 = vmul.f32 %v566, 1.442695
  %v569 = vpow.pop %v568
  %v570 = vmul.f32 %v567, 1.442695
  %v571 = vpow.pop %v570
  %v572 = vsel %vm551, %v569, 0.0
  %v573 = vrot.slane %v572, 4
  %v574 = vadd.f32 %v572, %v573
  %v575 = vrot.slane %v574, 2
  %v576 = vadd.f32 %v574, %v575
  %v577 = vrot.slane %v576, 1
  %v578 = vadd.f32 %v576, %v577
  %v579 = vsel %vm551, %v571, 0.0
  %v580 = vrot.slane %v579, 4
  %v581 = vadd.f32 %v579, %v580
  %v582 = vrot.slane %v581, 2
  %v583 = vadd.f32 %v581, %v582
  %v584 = vrot.slane %v583, 1
  %v585 = vadd.f32 %v583, %v584
  %v586 = vrcp.pop %v578
  %v587 = vrcp.pop %v585
  %v588 = vmul.f32 %v569, %v586
  %v589 = vmul.f32 %v571, %v587
  %v590 = vadd.f32 %v588, 1e-08
  %v591 = vadd.f32 %v589, 1e-08
  %v592 = vsel %vm551, %v590, 0.0
  %593 = vadd.xlane.f32.xlu0 %v592
  %v594 = vpop.xlane.xlu0 %593
  %v595 = vsel %vm551, %v591, 0.0
  %596 = vadd.xlane.f32.xlu0 %v595
  %v597 = vpop.xlane.xlu0 %596
  %v598 = vrcp.pop %v594
  %v599 = vrcp.pop %v597
  %v600 = vmul.f32 %v590, %v598
  %v601 = vmul.f32 %v591, %v599
  %602 = vrot.lane.b32.xlu0 %v287, 96
  %v603 = vpop.permute.xlu0 %602
  %604 = vrot.lane.b32.xlu0 %v292, 96
  %v605 = vpop.permute.xlu0 %604
  %vm608 = vcmask 130048
  %v610 = vsel %vm608, %v600, 0
  %612 = vmatprep.subr.mxu0 0.0
  %613 = vmatpush1.msra.mxu0 %v603
  %614 = vmatprep.subr.mxu0 0.0
  %615 = vmatpush1.msra.mxu0 %v605
  %616 = vmatprep.subr.mxu0 0.0
  %617 = vmatpush1.msra.mxu0 0.0
  %618 = vmatprep.subr.mxu0 0.0
  %619 = vmatpush1.msra.mxu0 0.0
  %620 = vmatprep.subr.mxu0 0.0
  %621 = vmatpush1.msra.mxu0 0.0
  %622 = vmatprep.subr.mxu0 0.0
  %623 = vmatpush1.msra.mxu0 0.0
  %624 = vmatprep.subr.mxu0 0.0
  %625 = vmatpush1.msra.mxu0 0.0
  %626 = vmatprep.subr.mxu0 0.0
  %627 = vmatpush1.msra.mxu0 0.0
  %628 = vmatprep.subr.mxu0 0.0
  %629 = vmatpush1.msra.mxu0 0.0
  %630 = vmatprep.subr.mxu0 0.0
  %631 = vmatpush1.msra.mxu0 0.0
  %632 = vmatprep.subr.mxu0 0.0
  %633 = vmatpush1.msra.mxu0 0.0
  %634 = vmatprep.subr.mxu0 0.0
  %635 = vmatpush1.msra.mxu0 0.0
  %636 = vmatprep.subr.mxu0 0.0
  %637 = vmatpush1.msra.mxu0 0.0
  %638 = vmatprep.subr.mxu0 0.0
  %639 = vmatpush1.msra.mxu0 0.0
  %640 = vmatprep.subr.mxu0 0.0
  %641 = vmatpush1.msra.mxu0 0.0
  %642 = vmatprep.subr.mxu0 0.0
  %643 = vmatpush1.msra.mxu0 0.0
  %644 = vmatprep.subr.mxu0 0.0
  %645 = vmatpush1.msra.mxu0 0.0
  %646 = vmatprep.subr.mxu0 0.0
  %647 = vmatpush1.msra.mxu0 0.0
  %648 = vmatprep.subr.mxu0 0.0
  %649 = vmatpush1.msra.mxu0 0.0
  %650 = vmatprep.subr.mxu0 0.0
  %651 = vmatpush1.msra.mxu0 0.0
  %652 = vmatprep.subr.mxu0 0.0
  %653 = vmatpush1.msra.mxu0 0.0
  %654 = vmatprep.subr.mxu0 0.0
  %655 = vmatpush1.msra.mxu0 0.0
  %656 = vmatprep.subr.mxu0 0.0
  %657 = vmatpush1.msra.mxu0 0.0
  %658 = vmatprep.subr.mxu0 0.0
  %659 = vmatpush1.msra.mxu0 0.0
  %660 = vmatprep.subr.mxu0 0.0
  %661 = vmatpush1.msra.mxu0 0.0
  %662 = vmatprep.subr.mxu0 0.0
  %663 = vmatpush1.msra.mxu0 0.0
  %664 = vmatprep.subr.mxu0 0.0
  %665 = vmatpush1.msra.mxu0 0.0
  %666 = vmatprep.subr.mxu0 0.0
  %667 = vmatpush1.msra.mxu0 0.0
  %668 = vmatprep.subr.mxu0 0.0
  %669 = vmatpush1.msra.mxu0 0.0
  %670 = vmatprep.subr.mxu0 0.0
  %671 = vmatpush1.msra.mxu0 0.0
  %672 = vmatprep.subr.mxu0 0.0
  %673 = vmatpush1.msra.mxu0 0.0
  %674 = vmatprep.subr.mxu0 0.0
  %675 = vmatpush1.msra.mxu0 0.0
  %676 = vmatprep.mubr.f32.mxu0 0.0
  %677 = vmatmul.mubr.f32.gmra.mrb[0].mxu0 %v610
  %v678 = vpop.f32.mrb[0].mxu0
  %v679 = vadd.f32 0.0, %v678
  %v680 = vpop.f32.mrb[0].mxu0
  %681 = vdwg.mxu0
  %682 = vrot.lane.b32.xlu0 %v297, 96
  %v683 = vpop.permute.xlu0 %682
  %684 = vrot.lane.b32.xlu0 %v302, 96
  %v685 = vpop.permute.xlu0 %684
  %v689 = vsel %vm608, %v601, 0
  %691 = vmatprep.subr.mxu0 0.0
  %692 = vmatpush1.msra.mxu0 %v683
  %693 = vmatprep.subr.mxu0 0.0
  %694 = vmatpush1.msra.mxu0 %v685
  %695 = vmatprep.subr.mxu0 0.0
  %696 = vmatpush1.msra.mxu0 0.0
  %697 = vmatprep.subr.mxu0 0.0
  %698 = vmatpush1.msra.mxu0 0.0
  %699 = vmatprep.subr.mxu0 0.0
  %700 = vmatpush1.msra.mxu0 0.0
  %701 = vmatprep.subr.mxu0 0.0
  %702 = vmatpush1.msra.mxu0 0.0
  %703 = vmatprep.subr.mxu0 0.0
  %704 = vmatpush1.msra.mxu0 0.0
  %705 = vmatprep.subr.mxu0 0.0
  %706 = vmatpush1.msra.mxu0 0.0
  %707 = vmatprep.subr.mxu0 0.0
  %708 = vmatpush1.msra.mxu0 0.0
  %709 = vmatprep.subr.mxu0 0.0
  %710 = vmatpush1.msra.mxu0 0.0
  %711 = vmatprep.subr.mxu0 0.0
  %712 = vmatpush1.msra.mxu0 0.0
  %713 = vmatprep.subr.mxu0 0.0
  %714 = vmatpush1.msra.mxu0 0.0
  %715 = vmatprep.subr.mxu0 0.0
  %716 = vmatpush1.msra.mxu0 0.0
  %717 = vmatprep.subr.mxu0 0.0
  %718 = vmatpush1.msra.mxu0 0.0
  %719 = vmatprep.subr.mxu0 0.0
  %720 = vmatpush1.msra.mxu0 0.0
  %721 = vmatprep.subr.mxu0 0.0
  %722 = vmatpush1.msra.mxu0 0.0
  %723 = vmatprep.subr.mxu0 0.0
  %724 = vmatpush1.msra.mxu0 0.0
  %725 = vmatprep.subr.mxu0 0.0
  %726 = vmatpush1.msra.mxu0 0.0
  %727 = vmatprep.subr.mxu0 0.0
  %728 = vmatpush1.msra.mxu0 0.0
  %729 = vmatprep.subr.mxu0 0.0
  %730 = vmatpush1.msra.mxu0 0.0
  %731 = vmatprep.subr.mxu0 0.0
  %732 = vmatpush1.msra.mxu0 0.0
  %733 = vmatprep.subr.mxu0 0.0
  %734 = vmatpush1.msra.mxu0 0.0
  %735 = vmatprep.subr.mxu0 0.0
  %736 = vmatpush1.msra.mxu0 0.0
  %737 = vmatprep.subr.mxu0 0.0
  %738 = vmatpush1.msra.mxu0 0.0
  %739 = vmatprep.subr.mxu0 0.0
  %740 = vmatpush1.msra.mxu0 0.0
  %741 = vmatprep.subr.mxu0 0.0
  %742 = vmatpush1.msra.mxu0 0.0
  %743 = vmatprep.subr.mxu0 0.0
  %744 = vmatpush1.msra.mxu0 0.0
  %745 = vmatprep.subr.mxu0 0.0
  %746 = vmatpush1.msra.mxu0 0.0
  %747 = vmatprep.subr.mxu0 0.0
  %748 = vmatpush1.msra.mxu0 0.0
  %749 = vmatprep.subr.mxu0 0.0
  %750 = vmatpush1.msra.mxu0 0.0
  %751 = vmatprep.subr.mxu0 0.0
  %752 = vmatpush1.msra.mxu0 0.0
  %753 = vmatprep.subr.mxu0 0.0
  %754 = vmatpush1.msra.mxu0 0.0
  %755 = vmatprep.mubr.f32.mxu0 0.0
  %756 = vmatmul.mubr.f32.gmra.mrb[0].mxu0 %v689
  %v757 = vpop.f32.mrb[0].mxu0
  %v758 = vadd.f32 0.0, %v757
  %v759 = vpop.f32.mrb[0].mxu0
  %760 = vdwg.mxu0
  %v763 = vcombine.low %v679, %v758
  %768 = vrot.lane.b32.xlu0 %v28, 32
  %v769 = vpop.permute.xlu0 %768
  %770 = vrot.lane.b32.xlu0 %v29, 32
  %v771 = vpop.permute.xlu0 %770
  %772 = vrot.lane.b32.xlu0 %v31, 32
  %v773 = vpop.permute.xlu0 %772
  %774 = vrot.lane.b32.xlu0 %v32, 32
  %v775 = vpop.permute.xlu0 %774
  %776 = vrot.lane.b32.xlu0 %v34, 32
  %v777 = vpop.permute.xlu0 %776
  %778 = vrot.lane.b32.xlu0 %v35, 32
  %v779 = vpop.permute.xlu0 %778
  %780 = vrot.lane.b32.xlu0 %v37, 32
  %v781 = vpop.permute.xlu0 %780
  %782 = vrot.lane.b32.xlu0 %v38, 32
  %v783 = vpop.permute.xlu0 %782
  %v784 = vsel %vm118, %v769, %v771
  %v785 = vsel %vm118, %v773, %v775
  %v786 = vsel %vm118, %v777, %v779
  %v787 = vsel %vm118, %v781, %v783
  %v792 = vsel %vm118, %v763, 0
  %794 = vmatprep.subr.mxu0 0.0
  %795 = vmatpush1.msra.mxu0 %v784
  %796 = vmatprep.subr.mxu0 0.0
  %797 = vmatpush1.msra.mxu0 %v785
  %798 = vmatprep.subr.mxu0 0.0
  %799 = vmatpush1.msra.mxu0 %v786
  %800 = vmatprep.subr.mxu0 0.0
  %801 = vmatpush1.msra.mxu0 %v787
  %802 = vmatprep.subr.mxu0 0.0
  %803 = vmatpush1.msra.mxu0 0.0
  %804 = vmatprep.subr.mxu0 0.0
  %805 = vmatpush1.msra.mxu0 0.0
  %806 = vmatprep.subr.mxu0 0.0
  %807 = vmatpush1.msra.mxu0 0.0
  %808 = vmatprep.subr.mxu0 0.0
  %809 = vmatpush1.msra.mxu0 0.0
  %810 = vmatprep.subr.mxu0 0.0
  %811 = vmatpush1.msra.mxu0 0.0
  %812 = vmatprep.subr.mxu0 0.0
  %813 = vmatpush1.msra.mxu0 0.0
  %814 = vmatprep.subr.mxu0 0.0
  %815 = vmatpush1.msra.mxu0 0.0
  %816 = vmatprep.subr.mxu0 0.0
  %817 = vmatpush1.msra.mxu0 0.0
  %818 = vmatprep.subr.mxu0 0.0
  %819 = vmatpush1.msra.mxu0 0.0
  %820 = vmatprep.subr.mxu0 0.0
  %821 = vmatpush1.msra.mxu0 0.0
  %822 = vmatprep.subr.mxu0 0.0
  %823 = vmatpush1.msra.mxu0 0.0
  %824 = vmatprep.subr.mxu0 0.0
  %825 = vmatpush1.msra.mxu0 0.0
  %826 = vmatprep.subr.mxu0 0.0
  %827 = vmatpush1.msra.mxu0 0.0
  %828 = vmatprep.subr.mxu0 0.0
  %829 = vmatpush1.msra.mxu0 0.0
  %830 = vmatprep.subr.mxu0 0.0
  %831 = vmatpush1.msra.mxu0 0.0
  %832 = vmatprep.subr.mxu0 0.0
  %833 = vmatpush1.msra.mxu0 0.0
  %834 = vmatprep.subr.mxu0 0.0
  %835 = vmatpush1.msra.mxu0 0.0
  %836 = vmatprep.subr.mxu0 0.0
  %837 = vmatpush1.msra.mxu0 0.0
  %838 = vmatprep.subr.mxu0 0.0
  %839 = vmatpush1.msra.mxu0 0.0
  %840 = vmatprep.subr.mxu0 0.0
  %841 = vmatpush1.msra.mxu0 0.0
  %842 = vmatprep.subr.mxu0 0.0
  %843 = vmatpush1.msra.mxu0 0.0
  %844 = vmatprep.subr.mxu0 0.0
  %845 = vmatpush1.msra.mxu0 0.0
  %846 = vmatprep.subr.mxu0 0.0
  %847 = vmatpush1.msra.mxu0 0.0
  %848 = vmatprep.subr.mxu0 0.0
  %849 = vmatpush1.msra.mxu0 0.0
  %850 = vmatprep.subr.mxu0 0.0
  %851 = vmatpush1.msra.mxu0 0.0
  %852 = vmatprep.subr.mxu0 0.0
  %853 = vmatpush1.msra.mxu0 0.0
  %854 = vmatprep.subr.mxu0 0.0
  %855 = vmatpush1.msra.mxu0 0.0
  %856 = vmatprep.subr.mxu0 0.0
  %857 = vmatpush1.msra.mxu0 0.0
  %858 = vmatprep.mubr.f32.mxu0 0.0
  %859 = vmatmul.mubr.f32.gmra.mrb[0].mxu0 %v792
  %v860 = vpop.f32.mrb[0].mxu0
  %v861 = vadd.f32 %v105, %v860
  %v862 = vpop.f32.mrb[0].mxu0
  %863 = vdwg.mxu0
  %868 = vrot.lane.b32.xlu0 %v29, 64
  %v869 = vpop.permute.xlu0 %868
  %870 = vrot.lane.b32.xlu0 %v30, 64
  %v871 = vpop.permute.xlu0 %870
  %872 = vrot.lane.b32.xlu0 %v32, 64
  %v873 = vpop.permute.xlu0 %872
  %874 = vrot.lane.b32.xlu0 %v33, 64
  %v875 = vpop.permute.xlu0 %874
  %876 = vrot.lane.b32.xlu0 %v35, 64
  %v877 = vpop.permute.xlu0 %876
  %878 = vrot.lane.b32.xlu0 %v36, 64
  %v879 = vpop.permute.xlu0 %878
  %880 = vrot.lane.b32.xlu0 %v38, 64
  %v881 = vpop.permute.xlu0 %880
  %882 = vrot.lane.b32.xlu0 %v39, 64
  %v883 = vpop.permute.xlu0 %882
  %vm884 = vcmask 523264
  %v885 = vsel %vm884, %v869, %v871
  %v886 = vsel %vm884, %v873, %v875
  %v887 = vsel %vm884, %v877, %v879
  %v888 = vsel %vm884, %v881, %v883
  %v894 = vsel %vm118, %v27, 0
  %896 = vmatprep.subr.mxu0 0.0
  %897 = vmatpush1.msra.mxu0 %v885
  %898 = vmatprep.subr.mxu0 0.0
  %899 = vmatpush1.msra.mxu0 %v886
  %900 = vmatprep.subr.mxu0 0.0
  %901 = vmatpush1.msra.mxu0 %v887
  %902 = vmatprep.subr.mxu0 0.0
  %903 = vmatpush1.msra.mxu0 %v888
  %904 = vmatprep.subr.mxu0 0.0
  %905 = vmatpush1.msra.mxu0 0.0
  %906 = vmatprep.subr.mxu0 0.0
  %907 = vmatpush1.msra.mxu0 0.0
  %908 = vmatprep.subr.mxu0 0.0
  %909 = vmatpush1.msra.mxu0 0.0
  %910 = vmatprep.subr.mxu0 0.0
  %911 = vmatpush1.msra.mxu0 0.0
  %912 = vmatprep.subr.mxu0 0.0
  %913 = vmatpush1.msra.mxu0 0.0
  %914 = vmatprep.subr.mxu0 0.0
  %915 = vmatpush1.msra.mxu0 0.0
  %916 = vmatprep.subr.mxu0 0.0
  %917 = vmatpush1.msra.mxu0 0.0
  %918 = vmatprep.subr.mxu0 0.0
  %919 = vmatpush1.msra.mxu0 0.0
  %920 = vmatprep.subr.mxu0 0.0
  %921 = vmatpush1.msra.mxu0 0.0
  %922 = vmatprep.subr.mxu0 0.0
  %923 = vmatpush1.msra.mxu0 0.0
  %924 = vmatprep.subr.mxu0 0.0
  %925 = vmatpush1.msra.mxu0 0.0
  %926 = vmatprep.subr.mxu0 0.0
  %927 = vmatpush1.msra.mxu0 0.0
  %928 = vmatprep.subr.mxu0 0.0
  %929 = vmatpush1.msra.mxu0 0.0
  %930 = vmatprep.subr.mxu0 0.0
  %931 = vmatpush1.msra.mxu0 0.0
  %932 = vmatprep.subr.mxu0 0.0
  %933 = vmatpush1.msra.mxu0 0.0
  %934 = vmatprep.subr.mxu0 0.0
  %935 = vmatpush1.msra.mxu0 0.0
  %936 = vmatprep.subr.mxu0 0.0
  %937 = vmatpush1.msra.mxu0 0.0
  %938 = vmatprep.subr.mxu0 0.0
  %939 = vmatpush1.msra.mxu0 0.0
  %940 = vmatprep.subr.mxu0 0.0
  %941 = vmatpush1.msra.mxu0 0.0
  %942 = vmatprep.subr.mxu0 0.0
  %943 = vmatpush1.msra.mxu0 0.0
  %944 = vmatprep.subr.mxu0 0.0
  %945 = vmatpush1.msra.mxu0 0.0
  %946 = vmatprep.subr.mxu0 0.0
  %947 = vmatpush1.msra.mxu0 0.0
  %948 = vmatprep.subr.mxu0 0.0
  %949 = vmatpush1.msra.mxu0 0.0
  %950 = vmatprep.subr.mxu0 0.0
  %951 = vmatpush1.msra.mxu0 0.0
  %952 = vmatprep.subr.mxu0 0.0
  %953 = vmatpush1.msra.mxu0 0.0
  %954 = vmatprep.subr.mxu0 0.0
  %955 = vmatpush1.msra.mxu0 0.0
  %956 = vmatprep.subr.mxu0 0.0
  %957 = vmatpush1.msra.mxu0 0.0
  %958 = vmatprep.subr.mxu0 0.0
  %959 = vmatpush1.msra.mxu0 0.0
  %960 = vmatprep.mubr.f32.mxu0 0.0
  %961 = vmatmul.mubr.f32.gmra.mrb[0].mxu0 %v894
  %v962 = vpop.f32.mrb[0].mxu0
  %v963 = vadd.f32 %v109, %v962
  %v964 = vpop.f32.mrb[0].mxu0
  %965 = vdwg.mxu0
  %v966 = vadd.f32 %v861, %v963
  %v967 = vxor.u32 %v966, 2147483648
  %v968 = vmul.f32 %v967, 1.442695
  %v969 = vpow.pop %v968
  %v970 = vadd.f32 %v969, 1.0
  %v971 = vrcp.pop %v970
  %v972 = vmul.f32 1.0, %v971
  %974 = vrot.lane.b32.xlu0 %v963, 64
  %v975 = vpop.permute.xlu0 %974
  %v977 = vmul.f32 %v972, %v975
  %979 = vrot.lane.b32.xlu0 %v977, 64
  %v980 = vpop.permute.xlu0 %979
  %v982 = vadd.f32 %v861, %v980
  %v983 = vtanh.pop %v982
  %v984 = vsub.f32 1.0, %v972
  %986 = vrot.lane.b32.xlu0 %v983, 96
  %v987 = vpop.permute.xlu0 %986
  %v989 = vmul.f32 %v984, %v987
  %990 = vrot.lane.b32.xlu0 %v27, 32
  %v991 = vpop.permute.xlu0 %990
  %v993 = vmul.f32 %v972, %v991
  %v994 = vadd.f32 %v989, %v993
  %996 = vrot.lane.b32.xlu0 %v994, 96
  %v997 = vpop.permute.xlu0 %996
  %v999 = vsel %vm118, %v997, 0.0
  %1000 = vadd.xlane.f32.xlu0 %v999
  %v1001 = vpop.xlane.xlu0 %1000
  %v1002 = vmul.f32 %v1001, %v131
  %v1003 = vsub.f32 %v994, %v1002
  %v1004 = vmul.f32 %v1003, %v1003
  %1006 = vrot.lane.b32.xlu0 %v1004, 96
  %v1007 = vpop.permute.xlu0 %1006
  %v1009 = vsel %vm118, %v1007, 0.0
  %1010 = vadd.xlane.f32.xlu0 %v1009
  %v1011 = vpop.xlane.xlu0 %1010
  %v1012 = vmul.f32 %v1011, %v131
  %v1013 = vadd.f32 %v1012, 1e-05
  %v1014 = vrsqrt.pop %v1013
  %v1015 = vmul.f32 %v1003, %v1014
  %1017 = vrot.lane.b32.xlu0 %v93, 32
  %v1018 = vpop.permute.xlu0 %1017
  %v1020 = vmul.f32 %v1015, %v1018
  %1022 = vrot.lane.b32.xlu0 %v97, 32
  %v1023 = vpop.permute.xlu0 %1022
  %v1025 = vadd.f32 %v1020, %v1023
  %v1027 = vcombine.high %v1025, %v1025
  %vm1029 = vcmask 519424
  %v1030 = vsel %vm1029, %v1025, 0.0
  %v1031 = vrot.slane %v1030, 4
  %v1032 = vadd.f32 %v1030, %v1031
  %v1033 = vrot.slane %v1032, 2
  %v1034 = vadd.f32 %v1032, %v1033
  %v1035 = vrot.slane %v1034, 1
  %v1036 = vadd.f32 %v1034, %v1035
  %v1037 = vsel %vm1029, %v1027, 0.0
  %v1038 = vrot.slane %v1037, 4
  %v1039 = vadd.f32 %v1037, %v1038
  %v1040 = vrot.slane %v1039, 2
  %v1041 = vadd.f32 %v1039, %v1040
  %v1042 = vrot.slane %v1041, 1
  %v1043 = vadd.f32 %v1041, %v1042
  %v1044 = vrcp.pop 4.0
  %v1045 = vmul.f32 %v1036, %v1044
  %v1046 = vmul.f32 %v1043, %v1044
  %1047 = vrot.lane.b32.xlu0 %v1025, 96
  %v1048 = vpop.permute.xlu0 %1047
  %v1052 = vcombine.low %v1045, %v1046
  %v1054 = vsel %vm118, %v1048, %v1052
  %v1056 = vsel %vm884, %v1054, 0
  %1058 = vmatprep.subr.mxu0 0.0
  %1059 = vmatpush1.msra.mxu0 %v40
  %1060 = vmatprep.subr.mxu0 0.0
  %1061 = vmatpush1.msra.mxu0 %v41
  %1062 = vmatprep.subr.mxu0 0.0
  %1063 = vmatpush1.msra.mxu0 %v42
  %1064 = vmatprep.subr.mxu0 0.0
  %1065 = vmatpush1.msra.mxu0 %v43
  %1066 = vmatprep.subr.mxu0 0.0
  %1067 = vmatpush1.msra.mxu0 %v44
  %1068 = vmatprep.subr.mxu0 0.0
  %1069 = vmatpush1.msra.mxu0 %v45
  %1070 = vmatprep.subr.mxu0 0.0
  %1071 = vmatpush1.msra.mxu0 %v46
  %1072 = vmatprep.subr.mxu0 0.0
  %1073 = vmatpush1.msra.mxu0 %v47
  %1074 = vmatprep.subr.mxu0 0.0
  %1075 = vmatpush1.msra.mxu0 0.0
  %1076 = vmatprep.subr.mxu0 0.0
  %1077 = vmatpush1.msra.mxu0 0.0
  %1078 = vmatprep.subr.mxu0 0.0
  %1079 = vmatpush1.msra.mxu0 0.0
  %1080 = vmatprep.subr.mxu0 0.0
  %1081 = vmatpush1.msra.mxu0 0.0
  %1082 = vmatprep.subr.mxu0 0.0
  %1083 = vmatpush1.msra.mxu0 0.0
  %1084 = vmatprep.subr.mxu0 0.0
  %1085 = vmatpush1.msra.mxu0 0.0
  %1086 = vmatprep.subr.mxu0 0.0
  %1087 = vmatpush1.msra.mxu0 0.0
  %1088 = vmatprep.subr.mxu0 0.0
  %1089 = vmatpush1.msra.mxu0 0.0
  %1090 = vmatprep.subr.mxu0 0.0
  %1091 = vmatpush1.msra.mxu0 0.0
  %1092 = vmatprep.subr.mxu0 0.0
  %1093 = vmatpush1.msra.mxu0 0.0
  %1094 = vmatprep.subr.mxu0 0.0
  %1095 = vmatpush1.msra.mxu0 0.0
  %1096 = vmatprep.subr.mxu0 0.0
  %1097 = vmatpush1.msra.mxu0 0.0
  %1098 = vmatprep.subr.mxu0 0.0
  %1099 = vmatpush1.msra.mxu0 0.0
  %1100 = vmatprep.subr.mxu0 0.0
  %1101 = vmatpush1.msra.mxu0 0.0
  %1102 = vmatprep.subr.mxu0 0.0
  %1103 = vmatpush1.msra.mxu0 0.0
  %1104 = vmatprep.subr.mxu0 0.0
  %1105 = vmatpush1.msra.mxu0 0.0
  %1106 = vmatprep.subr.mxu0 0.0
  %1107 = vmatpush1.msra.mxu0 0.0
  %1108 = vmatprep.subr.mxu0 0.0
  %1109 = vmatpush1.msra.mxu0 0.0
  %1110 = vmatprep.subr.mxu0 0.0
  %1111 = vmatpush1.msra.mxu0 0.0
  %1112 = vmatprep.subr.mxu0 0.0
  %1113 = vmatpush1.msra.mxu0 0.0
  %1114 = vmatprep.subr.mxu0 0.0
  %1115 = vmatpush1.msra.mxu0 0.0
  %1116 = vmatprep.subr.mxu0 0.0
  %1117 = vmatpush1.msra.mxu0 0.0
  %1118 = vmatprep.subr.mxu0 0.0
  %1119 = vmatpush1.msra.mxu0 0.0
  %1120 = vmatprep.subr.mxu0 0.0
  %1121 = vmatpush1.msra.mxu0 0.0
  %1122 = vmatprep.mubr.f32.mxu0 0.0
  %1123 = vmatmul.mubr.f32.gmra.mrb[0].mxu0 %v1056
  %v1124 = vpop.f32.mrb[0].mxu0
  %v1125 = vadd.f32 %v113, %v1124
  %v1126 = vpop.f32.mrb[0].mxu0
  %1127 = vdwg.mxu0
  %v1128 = vmax.f32 %v1125, 0.0
  %v1130 = vcombine.high %v1128, %v1128
  %vm1132 = vcmask 1043456
  %v1133 = vsel %vm1132, %v1128, 0.0
  %v1134 = vrot.slane %v1133, 4
  %v1135 = vadd.f32 %v1133, %v1134
  %v1136 = vrot.slane %v1135, 2
  %v1137 = vadd.f32 %v1135, %v1136
  %v1138 = vrot.slane %v1137, 1
  %v1139 = vadd.f32 %v1137, %v1138
  %v1140 = vsel %vm1132, %v1130, 0.0
  %v1141 = vrot.slane %v1140, 4
  %v1142 = vadd.f32 %v1140, %v1141
  %v1143 = vrot.slane %v1142, 2
  %v1144 = vadd.f32 %v1142, %v1143
  %v1145 = vrot.slane %v1144, 1
  %v1146 = vadd.f32 %v1144, %v1145
  %v1147 = vmul.f32 %v1139, %v1044
  %v1148 = vmul.f32 %v1146, %v1044
  %v1151 = vcombine.low %v1147, %v1148
  %1153 = vmatprep.subr.mxu0 0.0
  %1154 = vmatpush1.msra.mxu0 %v48
  %1155 = vmatprep.subr.mxu0 0.0
  %1156 = vmatpush1.msra.mxu0 %v49
  %1157 = vmatprep.subr.mxu0 0.0
  %1158 = vmatpush1.msra.mxu0 %v50
  %1159 = vmatprep.subr.mxu0 0.0
  %1160 = vmatpush1.msra.mxu0 %v51
  %1161 = vmatprep.subr.mxu0 0.0
  %1162 = vmatpush1.msra.mxu0 %v52
  %1163 = vmatprep.subr.mxu0 0.0
  %1164 = vmatpush1.msra.mxu0 %v53
  %1165 = vmatprep.subr.mxu0 0.0
  %1166 = vmatpush1.msra.mxu0 %v54
  %1167 = vmatprep.subr.mxu0 0.0
  %1168 = vmatpush1.msra.mxu0 %v55
  %1169 = vmatprep.subr.mxu0 0.0
  %1170 = vmatpush1.msra.mxu0 %v56
  %1171 = vmatprep.subr.mxu0 0.0
  %1172 = vmatpush1.msra.mxu0 %v57
  %1173 = vmatprep.subr.mxu0 0.0
  %1174 = vmatpush1.msra.mxu0 %v58
  %1175 = vmatprep.subr.mxu0 0.0
  %1176 = vmatpush1.msra.mxu0 %v59
  %1177 = vmatprep.subr.mxu0 0.0
  %1178 = vmatpush1.msra.mxu0 %v60
  %1179 = vmatprep.subr.mxu0 0.0
  %1180 = vmatpush1.msra.mxu0 %v61
  %1181 = vmatprep.subr.mxu0 0.0
  %1182 = vmatpush1.msra.mxu0 %v62
  %1183 = vmatprep.subr.mxu0 0.0
  %1184 = vmatpush1.msra.mxu0 %v63
  %1185 = vmatprep.subr.mxu0 0.0
  %1186 = vmatpush1.msra.mxu0 %v64
  %1187 = vmatprep.subr.mxu0 0.0
  %1188 = vmatpush1.msra.mxu0 %v65
  %1189 = vmatprep.subr.mxu0 0.0
  %1190 = vmatpush1.msra.mxu0 %v66
  %1191 = vmatprep.subr.mxu0 0.0
  %1192 = vmatpush1.msra.mxu0 %v67
  %1193 = vmatprep.subr.mxu0 0.0
  %1194 = vmatpush1.msra.mxu0 %v68
  %1195 = vmatprep.subr.mxu0 0.0
  %1196 = vmatpush1.msra.mxu0 %v69
  %1197 = vmatprep.subr.mxu0 0.0
  %1198 = vmatpush1.msra.mxu0 %v70
  %1199 = vmatprep.subr.mxu0 0.0
  %1200 = vmatpush1.msra.mxu0 %v71
  %1201 = vmatprep.subr.mxu0 0.0
  %1202 = vmatpush1.msra.mxu0 %v72
  %1203 = vmatprep.subr.mxu0 0.0
  %1204 = vmatpush1.msra.mxu0 %v73
  %1205 = vmatprep.subr.mxu0 0.0
  %1206 = vmatpush1.msra.mxu0 %v74
  %1207 = vmatprep.subr.mxu0 0.0
  %1208 = vmatpush1.msra.mxu0 %v75
  %1209 = vmatprep.subr.mxu0 0.0
  %1210 = vmatpush1.msra.mxu0 %v76
  %1211 = vmatprep.subr.mxu0 0.0
  %1212 = vmatpush1.msra.mxu0 %v77
  %1213 = vmatprep.subr.mxu0 0.0
  %1214 = vmatpush1.msra.mxu0 %v78
  %1215 = vmatprep.subr.mxu0 0.0
  %1216 = vmatpush1.msra.mxu0 %v79
  %1217 = vmatprep.mubr.f32.mxu0 %v1151
  %1218 = vmatmul.mubr.f32.gmra.mrb[0].mxu0 %v1128
  %v1219 = vpop.f32.mrb[0].mxu0
  %v1220 = vadd.f32 %v117, %v1219
  %v1221 = vpop.f32.mrb[0].mxu0
  %1222 = vdwg.mxu0
  %1224 = vrot.lane.b32.xlu0 %v1220, 32
  %v1225 = vpop.permute.xlu0 %1224
  %v1227 = vadd.f32 %v994, %v1225
  %1229 = vrot.lane.b32.xlu0 %v1227, 96
  %v1230 = vpop.permute.xlu0 %1229
  %v1232 = vsel %vm118, %v1230, 0.0
  %1233 = vadd.xlane.f32.xlu0 %v1232
  %v1234 = vpop.xlane.xlu0 %1233
  %v1235 = vmul.f32 %v1234, %v131
  %v1236 = vsub.f32 %v1227, %v1235
  %v1237 = vmul.f32 %v1236, %v1236
  %1239 = vrot.lane.b32.xlu0 %v1237, 96
  %v1240 = vpop.permute.xlu0 %1239
  %v1242 = vsel %vm118, %v1240, 0.0
  %1243 = vadd.xlane.f32.xlu0 %v1242
  %v1244 = vpop.xlane.xlu0 %1243
  %v1245 = vmul.f32 %v1244, %v131
  %v1246 = vadd.f32 %v1245, 1e-05
  %v1247 = vrsqrt.pop %v1246
  %v1248 = vmul.f32 %v1236, %v1247
  %1250 = vrot.lane.b32.xlu0 %v85, 32
  %v1251 = vpop.permute.xlu0 %1250
  %v1253 = vmul.f32 %v1248, %v1251
  %1255 = vrot.lane.b32.xlu0 %v89, 32
  %v1256 = vpop.permute.xlu0 %1255
  %v1258 = vadd.f32 %v1253, %v1256
  %1260 = vrot.lane.b32.xlu0 %v1258, 96
  %v1261 = vpop.permute.xlu0 %1260
  %v1262 = vsel %vm118, %v1261, 0
  %1264 = vmatprep.subr.mxu0 0.0
  %1265 = vmatpush1.msra.mxu0 %v28
  %1266 = vmatprep.subr.mxu0 0.0
  %1267 = vmatpush1.msra.mxu0 %v31
  %1268 = vmatprep.subr.mxu0 0.0
  %1269 = vmatpush1.msra.mxu0 %v34
  %1270 = vmatprep.subr.mxu0 0.0
  %1271 = vmatpush1.msra.mxu0 %v37
  %1272 = vmatprep.subr.mxu0 0.0
  %1273 = vmatpush1.msra.mxu0 0.0
  %1274 = vmatprep.subr.mxu0 0.0
  %1275 = vmatpush1.msra.mxu0 0.0
  %1276 = vmatprep.subr.mxu0 0.0
  %1277 = vmatpush1.msra.mxu0 0.0
  %1278 = vmatprep.subr.mxu0 0.0
  %1279 = vmatpush1.msra.mxu0 0.0
  %1280 = vmatprep.subr.mxu0 0.0
  %1281 = vmatpush1.msra.mxu0 0.0
  %1282 = vmatprep.subr.mxu0 0.0
  %1283 = vmatpush1.msra.mxu0 0.0
  %1284 = vmatprep.subr.mxu0 0.0
  %1285 = vmatpush1.msra.mxu0 0.0
  %1286 = vmatprep.subr.mxu0 0.0
  %1287 = vmatpush1.msra.mxu0 0.0
  %1288 = vmatprep.subr.mxu0 0.0
  %1289 = vmatpush1.msra.mxu0 0.0
  %1290 = vmatprep.subr.mxu0 0.0
  %1291 = vmatpush1.msra.mxu0 0.0
  %1292 = vmatprep.subr.mxu0 0.0
  %1293 = vmatpush1.msra.mxu0 0.0
  %1294 = vmatprep.subr.mxu0 0.0
  %1295 = vmatpush1.msra.mxu0 0.0
  %1296 = vmatprep.subr.mxu0 0.0
  %1297 = vmatpush1.msra.mxu0 0.0
  %1298 = vmatprep.subr.mxu0 0.0
  %1299 = vmatpush1.msra.mxu0 0.0
  %1300 = vmatprep.subr.mxu0 0.0
  %1301 = vmatpush1.msra.mxu0 0.0
  %1302 = vmatprep.subr.mxu0 0.0
  %1303 = vmatpush1.msra.mxu0 0.0
  %1304 = vmatprep.subr.mxu0 0.0
  %1305 = vmatpush1.msra.mxu0 0.0
  %1306 = vmatprep.subr.mxu0 0.0
  %1307 = vmatpush1.msra.mxu0 0.0
  %1308 = vmatprep.subr.mxu0 0.0
  %1309 = vmatpush1.msra.mxu0 0.0
  %1310 = vmatprep.subr.mxu0 0.0
  %1311 = vmatpush1.msra.mxu0 0.0
  %1312 = vmatprep.subr.mxu0 0.0
  %1313 = vmatpush1.msra.mxu0 0.0
  %1314 = vmatprep.subr.mxu0 0.0
  %1315 = vmatpush1.msra.mxu0 0.0
  %1316 = vmatprep.subr.mxu0 0.0
  %1317 = vmatpush1.msra.mxu0 0.0
  %1318 = vmatprep.subr.mxu0 0.0
  %1319 = vmatpush1.msra.mxu0 0.0
  %1320 = vmatprep.subr.mxu0 0.0
  %1321 = vmatpush1.msra.mxu0 0.0
  %1322 = vmatprep.subr.mxu0 0.0
  %1323 = vmatpush1.msra.mxu0 0.0
  %1324 = vmatprep.subr.mxu0 0.0
  %1325 = vmatpush1.msra.mxu0 0.0
  %1326 = vmatprep.subr.mxu0 0.0
  %1327 = vmatpush1.msra.mxu0 0.0
  %1328 = vmatprep.mubr.f32.mxu0 0.0
  %1329 = vmatmul.mubr.f32.gmra.mrb[0].mxu0 %v1262
  %v1330 = vpop.f32.mrb[0].mxu0
  %v1331 = vadd.f32 %v101, %v1330
  %v1332 = vpop.f32.mrb[0].mxu0
  %1333 = vdwg.mxu0
  %v1335 = vcombine.high %v1331, %v1331
  %v1336 = vsel %vm118, %v1331, 0
  %1338 = vmatprep.subr.mxu0 0.0
  %1339 = vmatpush1.xpose.msra.mxu0 %v398
  %1340 = vmatprep.subr.mxu0 0.0
  %1341 = vmatpush1.xpose.msra.mxu0 %v401
  %1342 = vmatprep.subr.mxu0 0.0
  %1343 = vmatpush1.xpose.msra.mxu0 0.0
  %1344 = vmatprep.subr.mxu0 0.0
  %1345 = vmatpush1.xpose.msra.mxu0 0.0
  %1346 = vmatprep.subr.mxu0 0.0
  %1347 = vmatpush1.xpose.msra.mxu0 0.0
  %1348 = vmatprep.subr.mxu0 0.0
  %1349 = vmatpush1.xpose.msra.mxu0 0.0
  %1350 = vmatprep.subr.mxu0 0.0
  %1351 = vmatpush1.xpose.msra.mxu0 0.0
  %1352 = vmatprep.subr.mxu0 0.0
  %1353 = vmatpush1.xpose.msra.mxu0 0.0
  %1354 = vmatprep.subr.mxu0 0.0
  %1355 = vmatpush1.xpose.msra.mxu0 0.0
  %1356 = vmatprep.subr.mxu0 0.0
  %1357 = vmatpush1.xpose.msra.mxu0 0.0
  %1358 = vmatprep.subr.mxu0 0.0
  %1359 = vmatpush1.xpose.msra.mxu0 0.0
  %1360 = vmatprep.subr.mxu0 0.0
  %1361 = vmatpush1.xpose.msra.mxu0 0.0
  %1362 = vmatprep.subr.mxu0 0.0
  %1363 = vmatpush1.xpose.msra.mxu0 0.0
  %1364 = vmatprep.subr.mxu0 0.0
  %1365 = vmatpush1.xpose.msra.mxu0 0.0
  %1366 = vmatprep.subr.mxu0 0.0
  %1367 = vmatpush1.xpose.msra.mxu0 0.0
  %1368 = vmatprep.subr.mxu0 0.0
  %1369 = vmatpush1.xpose.msra.mxu0 0.0
  %1370 = vmatprep.subr.mxu0 0.0
  %1371 = vmatpush1.xpose.msra.mxu0 0.0
  %1372 = vmatprep.subr.mxu0 0.0
  %1373 = vmatpush1.xpose.msra.mxu0 0.0
  %1374 = vmatprep.subr.mxu0 0.0
  %1375 = vmatpush1.xpose.msra.mxu0 0.0
  %1376 = vmatprep.subr.mxu0 0.0
  %1377 = vmatpush1.xpose.msra.mxu0 0.0
  %1378 = vmatprep.subr.mxu0 0.0
  %1379 = vmatpush1.xpose.msra.mxu0 0.0
  %1380 = vmatprep.subr.mxu0 0.0
  %1381 = vmatpush1.xpose.msra.mxu0 0.0
  %1382 = vmatprep.subr.mxu0 0.0
  %1383 = vmatpush1.xpose.msra.mxu0 0.0
  %1384 = vmatprep.subr.mxu0 0.0
  %1385 = vmatpush1.xpose.msra.mxu0 0.0
  %1386 = vmatprep.subr.mxu0 0.0
  %1387 = vmatpush1.xpose.msra.mxu0 0.0
  %1388 = vmatprep.subr.mxu0 0.0
  %1389 = vmatpush1.xpose.msra.mxu0 0.0
  %1390 = vmatprep.subr.mxu0 0.0
  %1391 = vmatpush1.xpose.msra.mxu0 0.0
  %1392 = vmatprep.subr.mxu0 0.0
  %1393 = vmatpush1.xpose.msra.mxu0 0.0
  %1394 = vmatprep.subr.mxu0 0.0
  %1395 = vmatpush1.xpose.msra.mxu0 0.0
  %1396 = vmatprep.subr.mxu0 0.0
  %1397 = vmatpush1.xpose.msra.mxu0 0.0
  %1398 = vmatprep.subr.mxu0 0.0
  %1399 = vmatpush1.xpose.msra.mxu0 0.0
  %1400 = vmatprep.subr.mxu0 0.0
  %1401 = vmatpush1.xpose.msra.mxu0 0.0
  %1402 = vmatprep.mubr.f32.mxu0 0.0
  %1403 = vmatmul.mubr.f32.gmra.mrb[0].mxu0 %v1336
  %v1404 = vpop.f32.mrb[0].mxu0
  %v1405 = vadd.f32 0.0, %v1404
  %v1406 = vpop.f32.mrb[0].mxu0
  %1407 = vdwg.mxu0
  %v1408 = vsel %vm118, %v1335, 0
  %1410 = vmatprep.subr.mxu0 0.0
  %1411 = vmatpush1.xpose.msra.mxu0 %v476
  %1412 = vmatprep.subr.mxu0 0.0
  %1413 = vmatpush1.xpose.msra.mxu0 %v479
  %1414 = vmatprep.subr.mxu0 0.0
  %1415 = vmatpush1.xpose.msra.mxu0 0.0
  %1416 = vmatprep.subr.mxu0 0.0
  %1417 = vmatpush1.xpose.msra.mxu0 0.0
  %1418 = vmatprep.subr.mxu0 0.0
  %1419 = vmatpush1.xpose.msra.mxu0 0.0
  %1420 = vmatprep.subr.mxu0 0.0
  %1421 = vmatpush1.xpose.msra.mxu0 0.0
  %1422 = vmatprep.subr.mxu0 0.0
  %1423 = vmatpush1.xpose.msra.mxu0 0.0
  %1424 = vmatprep.subr.mxu0 0.0
  %1425 = vmatpush1.xpose.msra.mxu0 0.0
  %1426 = vmatprep.subr.mxu0 0.0
  %1427 = vmatpush1.xpose.msra.mxu0 0.0
  %1428 = vmatprep.subr.mxu0 0.0
  %1429 = vmatpush1.xpose.msra.mxu0 0.0
  %1430 = vmatprep.subr.mxu0 0.0
  %1431 = vmatpush1.xpose.msra.mxu0 0.0
  %1432 = vmatprep.subr.mxu0 0.0
  %1433 = vmatpush1.xpose.msra.mxu0 0.0
  %1434 = vmatprep.subr.mxu0 0.0
  %1435 = vmatpush1.xpose.msra.mxu0 0.0
  %1436 = vmatprep.subr.mxu0 0.0
  %1437 = vmatpush1.xpose.msra.mxu0 0.0
  %1438 = vmatprep.subr.mxu0 0.0
  %1439 = vmatpush1.xpose.msra.mxu0 0.0
  %1440 = vmatprep.subr.mxu0 0.0
  %1441 = vmatpush1.xpose.msra.mxu0 0.0
  %1442 = vmatprep.subr.mxu0 0.0
  %1443 = vmatpush1.xpose.msra.mxu0 0.0
  %1444 = vmatprep.subr.mxu0 0.0
  %1445 = vmatpush1.xpose.msra.mxu0 0.0
  %1446 = vmatprep.subr.mxu0 0.0
  %1447 = vmatpush1.xpose.msra.mxu0 0.0
  %1448 = vmatprep.subr.mxu0 0.0
  %1449 = vmatpush1.xpose.msra.mxu0 0.0
  %1450 = vmatprep.subr.mxu0 0.0
  %1451 = vmatpush1.xpose.msra.mxu0 0.0
  %1452 = vmatprep.subr.mxu0 0.0
  %1453 = vmatpush1.xpose.msra.mxu0 0.0
  %1454 = vmatprep.subr.mxu0 0.0
  %1455 = vmatpush1.xpose.msra.mxu0 0.0
  %1456 = vmatprep.subr.mxu0 0.0
  %1457 = vmatpush1.xpose.msra.mxu0 0.0
  %1458 = vmatprep.subr.mxu0 0.0
  %1459 = vmatpush1.xpose.msra.mxu0 0.0
  %1460 = vmatprep.subr.mxu0 0.0
  %1461 = vmatpush1.xpose.msra.mxu0 0.0
  %1462 = vmatprep.subr.mxu0 0.0
  %1463 = vmatpush1.xpose.msra.mxu0 0.0
  %1464 = vmatprep.subr.mxu0 0.0
  %1465 = vmatpush1.xpose.msra.mxu0 0.0
  %1466 = vmatprep.subr.mxu0 0.0
  %1467 = vmatpush1.xpose.msra.mxu0 0.0
  %1468 = vmatprep.subr.mxu0 0.0
  %1469 = vmatpush1.xpose.msra.mxu0 0.0
  %1470 = vmatprep.subr.mxu0 0.0
  %1471 = vmatpush1.xpose.msra.mxu0 0.0
  %1472 = vmatprep.subr.mxu0 0.0
  %1473 = vmatpush1.xpose.msra.mxu0 0.0
  %1474 = vmatprep.mubr.f32.mxu0 0.0
  %1475 = vmatmul.mubr.f32.gmra.mrb[0].mxu0 %v1408
  %v1476 = vpop.f32.mrb[0].mxu0
  %v1477 = vadd.f32 0.0, %v1476
  %v1478 = vpop.f32.mrb[0].mxu0
  %1479 = vdwg.mxu0
  %v1480 = vsel %vm551, %v1405, -inf
  %v1481 = vrot.slane %v1480, 4
  %v1482 = vmax.f32 %v1480, %v1481
  %v1483 = vrot.slane %v1482, 2
  %v1484 = vmax.f32 %v1482, %v1483
  %v1485 = vrot.slane %v1484, 1
  %v1486 = vmax.f32 %v1484, %v1485
  %v1487 = vsel %vm551, %v1477, -inf
  %v1488 = vrot.slane %v1487, 4
  %v1489 = vmax.f32 %v1487, %v1488
  %v1490 = vrot.slane %v1489, 2
  %v1491 = vmax.f32 %v1489, %v1490
  %v1492 = vrot.slane %v1491, 1
  %v1493 = vmax.f32 %v1491, %v1492
  %v1494 = vsub.f32 %v1405, %v1486
  %v1495 = vsub.f32 %v1477, %v1493
  %v1496 = vmul.f32 %v1494, 1.442695
  %v1497 = vpow.pop %v1496
  %v1498 = vmul.f32 %v1495, 1.442695
  %v1499 = vpow.pop %v1498
  %v1500 = vsel %vm551, %v1497, 0.0
  %v1501 = vrot.slane %v1500, 4
  %v1502 = vadd.f32 %v1500, %v1501
  %v1503 = vrot.slane %v1502, 2
  %v1504 = vadd.f32 %v1502, %v1503
  %v1505 = vrot.slane %v1504, 1
  %v1506 = vadd.f32 %v1504, %v1505
  %v1507 = vsel %vm551, %v1499, 0.0
  %v1508 = vrot.slane %v1507, 4
  %v1509 = vadd.f32 %v1507, %v1508
  %v1510 = vrot.slane %v1509, 2
  %v1511 = vadd.f32 %v1509, %v1510
  %v1512 = vrot.slane %v1511, 1
  %v1513 = vadd.f32 %v1511, %v1512
  %v1514 = vrcp.pop %v1506
  %v1515 = vrcp.pop %v1513
  %v1516 = vmul.f32 %v1497, %v1514
  %v1517 = vmul.f32 %v1499, %v1515
  %v1518 = vadd.f32 %v1516, 1e-08
  %v1519 = vadd.f32 %v1517, 1e-08
  %v1520 = vsel %vm551, %v1518, 0.0
  %1521 = vadd.xlane.f32.xlu0 %v1520
  %v1522 = vpop.xlane.xlu0 %1521
  %v1523 = vsel %vm551, %v1519, 0.0
  %1524 = vadd.xlane.f32.xlu0 %v1523
  %v1525 = vpop.xlane.xlu0 %1524
  %v1526 = vrcp.pop %v1522
  %v1527 = vrcp.pop %v1525
  %v1528 = vmul.f32 %v1518, %v1526
  %v1529 = vmul.f32 %v1519, %v1527
  %v1531 = vsel %vm608, %v1528, 0
  %1533 = vmatprep.subr.mxu0 0.0
  %1534 = vmatpush1.msra.mxu0 %v603
  %1535 = vmatprep.subr.mxu0 0.0
  %1536 = vmatpush1.msra.mxu0 %v605
  %1537 = vmatprep.subr.mxu0 0.0
  %1538 = vmatpush1.msra.mxu0 0.0
  %1539 = vmatprep.subr.mxu0 0.0
  %1540 = vmatpush1.msra.mxu0 0.0
  %1541 = vmatprep.subr.mxu0 0.0
  %1542 = vmatpush1.msra.mxu0 0.0
  %1543 = vmatprep.subr.mxu0 0.0
  %1544 = vmatpush1.msra.mxu0 0.0
  %1545 = vmatprep.subr.mxu0 0.0
  %1546 = vmatpush1.msra.mxu0 0.0
  %1547 = vmatprep.subr.mxu0 0.0
  %1548 = vmatpush1.msra.mxu0 0.0
  %1549 = vmatprep.subr.mxu0 0.0
  %1550 = vmatpush1.msra.mxu0 0.0
  %1551 = vmatprep.subr.mxu0 0.0
  %1552 = vmatpush1.msra.mxu0 0.0
  %1553 = vmatprep.subr.mxu0 0.0
  %1554 = vmatpush1.msra.mxu0 0.0
  %1555 = vmatprep.subr.mxu0 0.0
  %1556 = vmatpush1.msra.mxu0 0.0
  %1557 = vmatprep.subr.mxu0 0.0
  %1558 = vmatpush1.msra.mxu0 0.0
  %1559 = vmatprep.subr.mxu0 0.0
  %1560 = vmatpush1.msra.mxu0 0.0
  %1561 = vmatprep.subr.mxu0 0.0
  %1562 = vmatpush1.msra.mxu0 0.0
  %1563 = vmatprep.subr.mxu0 0.0
  %1564 = vmatpush1.msra.mxu0 0.0
  %1565 = vmatprep.subr.mxu0 0.0
  %1566 = vmatpush1.msra.mxu0 0.0
  %1567 = vmatprep.subr.mxu0 0.0
  %1568 = vmatpush1.msra.mxu0 0.0
  %1569 = vmatprep.subr.mxu0 0.0
  %1570 = vmatpush1.msra.mxu0 0.0
  %1571 = vmatprep.subr.mxu0 0.0
  %1572 = vmatpush1.msra.mxu0 0.0
  %1573 = vmatprep.subr.mxu0 0.0
  %1574 = vmatpush1.msra.mxu0 0.0
  %1575 = vmatprep.subr.mxu0 0.0
  %1576 = vmatpush1.msra.mxu0 0.0
  %1577 = vmatprep.subr.mxu0 0.0
  %1578 = vmatpush1.msra.mxu0 0.0
  %1579 = vmatprep.subr.mxu0 0.0
  %1580 = vmatpush1.msra.mxu0 0.0
  %1581 = vmatprep.subr.mxu0 0.0
  %1582 = vmatpush1.msra.mxu0 0.0
  %1583 = vmatprep.subr.mxu0 0.0
  %1584 = vmatpush1.msra.mxu0 0.0
  %1585 = vmatprep.subr.mxu0 0.0
  %1586 = vmatpush1.msra.mxu0 0.0
  %1587 = vmatprep.subr.mxu0 0.0
  %1588 = vmatpush1.msra.mxu0 0.0
  %1589 = vmatprep.subr.mxu0 0.0
  %1590 = vmatpush1.msra.mxu0 0.0
  %1591 = vmatprep.subr.mxu0 0.0
  %1592 = vmatpush1.msra.mxu0 0.0
  %1593 = vmatprep.subr.mxu0 0.0
  %1594 = vmatpush1.msra.mxu0 0.0
  %1595 = vmatprep.subr.mxu0 0.0
  %1596 = vmatpush1.msra.mxu0 0.0
  %1597 = vmatprep.mubr.f32.mxu0 0.0
  %1598 = vmatmul.mubr.f32.gmra.mrb[0].mxu0 %v1531
  %v1599 = vpop.f32.mrb[0].mxu0
  %v1600 = vadd.f32 0.0, %v1599
  %v1601 = vpop.f32.mrb[0].mxu0
  %1602 = vdwg.mxu0
  %v1604 = vsel %vm608, %v1529, 0
  %1606 = vmatprep.subr.mxu0 0.0
  %1607 = vmatpush1.msra.mxu0 %v683
  %1608 = vmatprep.subr.mxu0 0.0
  %1609 = vmatpush1.msra.mxu0 %v685
  %1610 = vmatprep.subr.mxu0 0.0
  %1611 = vmatpush1.msra.mxu0 0.0
  %1612 = vmatprep.subr.mxu0 0.0
  %1613 = vmatpush1.msra.mxu0 0.0
  %1614 = vmatprep.subr.mxu0 0.0
  %1615 = vmatpush1.msra.mxu0 0.0
  %1616 = vmatprep.subr.mxu0 0.0
  %1617 = vmatpush1.msra.mxu0 0.0
  %1618 = vmatprep.subr.mxu0 0.0
  %1619 = vmatpush1.msra.mxu0 0.0
  %1620 = vmatprep.subr.mxu0 0.0
  %1621 = vmatpush1.msra.mxu0 0.0
  %1622 = vmatprep.subr.mxu0 0.0
  %1623 = vmatpush1.msra.mxu0 0.0
  %1624 = vmatprep.subr.mxu0 0.0
  %1625 = vmatpush1.msra.mxu0 0.0
  %1626 = vmatprep.subr.mxu0 0.0
  %1627 = vmatpush1.msra.mxu0 0.0
  %1628 = vmatprep.subr.mxu0 0.0
  %1629 = vmatpush1.msra.mxu0 0.0
  %1630 = vmatprep.subr.mxu0 0.0
  %1631 = vmatpush1.msra.mxu0 0.0
  %1632 = vmatprep.subr.mxu0 0.0
  %1633 = vmatpush1.msra.mxu0 0.0
  %1634 = vmatprep.subr.mxu0 0.0
  %1635 = vmatpush1.msra.mxu0 0.0
  %1636 = vmatprep.subr.mxu0 0.0
  %1637 = vmatpush1.msra.mxu0 0.0
  %1638 = vmatprep.subr.mxu0 0.0
  %1639 = vmatpush1.msra.mxu0 0.0
  %1640 = vmatprep.subr.mxu0 0.0
  %1641 = vmatpush1.msra.mxu0 0.0
  %1642 = vmatprep.subr.mxu0 0.0
  %1643 = vmatpush1.msra.mxu0 0.0
  %1644 = vmatprep.subr.mxu0 0.0
  %1645 = vmatpush1.msra.mxu0 0.0
  %1646 = vmatprep.subr.mxu0 0.0
  %1647 = vmatpush1.msra.mxu0 0.0
  %1648 = vmatprep.subr.mxu0 0.0
  %1649 = vmatpush1.msra.mxu0 0.0
  %1650 = vmatprep.subr.mxu0 0.0
  %1651 = vmatpush1.msra.mxu0 0.0
  %1652 = vmatprep.subr.mxu0 0.0
  %1653 = vmatpush1.msra.mxu0 0.0
  %1654 = vmatprep.subr.mxu0 0.0
  %1655 = vmatpush1.msra.mxu0 0.0
  %1656 = vmatprep.subr.mxu0 0.0
  %1657 = vmatpush1.msra.mxu0 0.0
  %1658 = vmatprep.subr.mxu0 0.0
  %1659 = vmatpush1.msra.mxu0 0.0
  %1660 = vmatprep.subr.mxu0 0.0
  %1661 = vmatpush1.msra.mxu0 0.0
  %1662 = vmatprep.subr.mxu0 0.0
  %1663 = vmatpush1.msra.mxu0 0.0
  %1664 = vmatprep.subr.mxu0 0.0
  %1665 = vmatpush1.msra.mxu0 0.0
  %1666 = vmatprep.subr.mxu0 0.0
  %1667 = vmatpush1.msra.mxu0 0.0
  %1668 = vmatprep.subr.mxu0 0.0
  %1669 = vmatpush1.msra.mxu0 0.0
  %1670 = vmatprep.mubr.f32.mxu0 0.0
  %1671 = vmatmul.mubr.f32.gmra.mrb[0].mxu0 %v1604
  %v1672 = vpop.f32.mrb[0].mxu0
  %v1673 = vadd.f32 0.0, %v1672
  %v1674 = vpop.f32.mrb[0].mxu0
  %1675 = vdwg.mxu0
  %v1678 = vcombine.low %v1600, %v1673
  %v1679 = vsel %vm118, %v1678, 0
  %1681 = vmatprep.subr.mxu0 0.0
  %1682 = vmatpush1.msra.mxu0 %v784
  %1683 = vmatprep.subr.mxu0 0.0
  %1684 = vmatpush1.msra.mxu0 %v785
  %1685 = vmatprep.subr.mxu0 0.0
  %1686 = vmatpush1.msra.mxu0 %v786
  %1687 = vmatprep.subr.mxu0 0.0
  %1688 = vmatpush1.msra.mxu0 %v787
  %1689 = vmatprep.subr.mxu0 0.0
  %1690 = vmatpush1.msra.mxu0 0.0
  %1691 = vmatprep.subr.mxu0 0.0
  %1692 = vmatpush1.msra.mxu0 0.0
  %1693 = vmatprep.subr.mxu0 0.0
  %1694 = vmatpush1.msra.mxu0 0.0
  %1695 = vmatprep.subr.mxu0 0.0
  %1696 = vmatpush1.msra.mxu0 0.0
  %1697 = vmatprep.subr.mxu0 0.0
  %1698 = vmatpush1.msra.mxu0 0.0
  %1699 = vmatprep.subr.mxu0 0.0
  %1700 = vmatpush1.msra.mxu0 0.0
  %1701 = vmatprep.subr.mxu0 0.0
  %1702 = vmatpush1.msra.mxu0 0.0
  %1703 = vmatprep.subr.mxu0 0.0
  %1704 = vmatpush1.msra.mxu0 0.0
  %1705 = vmatprep.subr.mxu0 0.0
  %1706 = vmatpush1.msra.mxu0 0.0
  %1707 = vmatprep.subr.mxu0 0.0
  %1708 = vmatpush1.msra.mxu0 0.0
  %1709 = vmatprep.subr.mxu0 0.0
  %1710 = vmatpush1.msra.mxu0 0.0
  %1711 = vmatprep.subr.mxu0 0.0
  %1712 = vmatpush1.msra.mxu0 0.0
  %1713 = vmatprep.subr.mxu0 0.0
  %1714 = vmatpush1.msra.mxu0 0.0
  %1715 = vmatprep.subr.mxu0 0.0
  %1716 = vmatpush1.msra.mxu0 0.0
  %1717 = vmatprep.subr.mxu0 0.0
  %1718 = vmatpush1.msra.mxu0 0.0
  %1719 = vmatprep.subr.mxu0 0.0
  %1720 = vmatpush1.msra.mxu0 0.0
  %1721 = vmatprep.subr.mxu0 0.0
  %1722 = vmatpush1.msra.mxu0 0.0
  %1723 = vmatprep.subr.mxu0 0.0
  %1724 = vmatpush1.msra.mxu0 0.0
  %1725 = vmatprep.subr.mxu0 0.0
  %1726 = vmatpush1.msra.mxu0 0.0
  %1727 = vmatprep.subr.mxu0 0.0
  %1728 = vmatpush1.msra.mxu0 0.0
  %1729 = vmatprep.subr.mxu0 0.0
  %1730 = vmatpush1.msra.mxu0 0.0
  %1731 = vmatprep.subr.mxu0 0.0
  %1732 = vmatpush1.msra.mxu0 0.0
  %1733 = vmatprep.subr.mxu0 0.0
  %1734 = vmatpush1.msra.mxu0 0.0
  %1735 = vmatprep.subr.mxu0 0.0
  %1736 = vmatpush1.msra.mxu0 0.0
  %1737 = vmatprep.subr.mxu0 0.0
  %1738 = vmatpush1.msra.mxu0 0.0
  %1739 = vmatprep.subr.mxu0 0.0
  %1740 = vmatpush1.msra.mxu0 0.0
  %1741 = vmatprep.subr.mxu0 0.0
  %1742 = vmatpush1.msra.mxu0 0.0
  %1743 = vmatprep.subr.mxu0 0.0
  %1744 = vmatpush1.msra.mxu0 0.0
  %1745 = vmatprep.mubr.f32.mxu0 0.0
  %1746 = vmatmul.mubr.f32.gmra.mrb[0].mxu0 %v1679
  %v1747 = vpop.f32.mrb[0].mxu0
  %v1748 = vadd.f32 %v105, %v1747
  %v1749 = vpop.f32.mrb[0].mxu0
  %1750 = vdwg.mxu0
  %v1751 = vsel %vm118, %v1230, 0
  %1753 = vmatprep.subr.mxu0 0.0
  %1754 = vmatpush1.msra.mxu0 %v885
  %1755 = vmatprep.subr.mxu0 0.0
  %1756 = vmatpush1.msra.mxu0 %v886
  %1757 = vmatprep.subr.mxu0 0.0
  %1758 = vmatpush1.msra.mxu0 %v887
  %1759 = vmatprep.subr.mxu0 0.0
  %1760 = vmatpush1.msra.mxu0 %v888
  %1761 = vmatprep.subr.mxu0 0.0
  %1762 = vmatpush1.msra.mxu0 0.0
  %1763 = vmatprep.subr.mxu0 0.0
  %1764 = vmatpush1.msra.mxu0 0.0
  %1765 = vmatprep.subr.mxu0 0.0
  %1766 = vmatpush1.msra.mxu0 0.0
  %1767 = vmatprep.subr.mxu0 0.0
  %1768 = vmatpush1.msra.mxu0 0.0
  %1769 = vmatprep.subr.mxu0 0.0
  %1770 = vmatpush1.msra.mxu0 0.0
  %1771 = vmatprep.subr.mxu0 0.0
  %1772 = vmatpush1.msra.mxu0 0.0
  %1773 = vmatprep.subr.mxu0 0.0
  %1774 = vmatpush1.msra.mxu0 0.0
  %1775 = vmatprep.subr.mxu0 0.0
  %1776 = vmatpush1.msra.mxu0 0.0
  %1777 = vmatprep.subr.mxu0 0.0
  %1778 = vmatpush1.msra.mxu0 0.0
  %1779 = vmatprep.subr.mxu0 0.0
  %1780 = vmatpush1.msra.mxu0 0.0
  %1781 = vmatprep.subr.mxu0 0.0
  %1782 = vmatpush1.msra.mxu0 0.0
  %1783 = vmatprep.subr.mxu0 0.0
  %1784 = vmatpush1.msra.mxu0 0.0
  %1785 = vmatprep.subr.mxu0 0.0
  %1786 = vmatpush1.msra.mxu0 0.0
  %1787 = vmatprep.subr.mxu0 0.0
  %1788 = vmatpush1.msra.mxu0 0.0
  %1789 = vmatprep.subr.mxu0 0.0
  %1790 = vmatpush1.msra.mxu0 0.0
  %1791 = vmatprep.subr.mxu0 0.0
  %1792 = vmatpush1.msra.mxu0 0.0
  %1793 = vmatprep.subr.mxu0 0.0
  %1794 = vmatpush1.msra.mxu0 0.0
  %1795 = vmatprep.subr.mxu0 0.0
  %1796 = vmatpush1.msra.mxu0 0.0
  %1797 = vmatprep.subr.mxu0 0.0
  %1798 = vmatpush1.msra.mxu0 0.0
  %1799 = vmatprep.subr.mxu0 0.0
  %1800 = vmatpush1.msra.mxu0 0.0
  %1801 = vmatprep.subr.mxu0 0.0
  %1802 = vmatpush1.msra.mxu0 0.0
  %1803 = vmatprep.subr.mxu0 0.0
  %1804 = vmatpush1.msra.mxu0 0.0
  %1805 = vmatprep.subr.mxu0 0.0
  %1806 = vmatpush1.msra.mxu0 0.0
  %1807 = vmatprep.subr.mxu0 0.0
  %1808 = vmatpush1.msra.mxu0 0.0
  %1809 = vmatprep.subr.mxu0 0.0
  %1810 = vmatpush1.msra.mxu0 0.0
  %1811 = vmatprep.subr.mxu0 0.0
  %1812 = vmatpush1.msra.mxu0 0.0
  %1813 = vmatprep.subr.mxu0 0.0
  %1814 = vmatpush1.msra.mxu0 0.0
  %1815 = vmatprep.subr.mxu0 0.0
  %1816 = vmatpush1.msra.mxu0 0.0
  %1817 = vmatprep.mubr.f32.mxu0 0.0
  %1818 = vmatmul.mubr.f32.gmra.mrb[0].mxu0 %v1751
  %v1819 = vpop.f32.mrb[0].mxu0
  %v1820 = vadd.f32 %v109, %v1819
  %v1821 = vpop.f32.mrb[0].mxu0
  %1822 = vdwg.mxu0
  %v1823 = vadd.f32 %v1748, %v1820
  %v1824 = vxor.u32 %v1823, 2147483648
  %v1825 = vmul.f32 %v1824, 1.442695
  %v1826 = vpow.pop %v1825
  %v1827 = vadd.f32 %v1826, 1.0
  %v1828 = vrcp.pop %v1827
  %v1829 = vmul.f32 1.0, %v1828
  %1831 = vrot.lane.b32.xlu0 %v1820, 64
  %v1832 = vpop.permute.xlu0 %1831
  %v1834 = vmul.f32 %v1829, %v1832
  %1836 = vrot.lane.b32.xlu0 %v1834, 64
  %v1837 = vpop.permute.xlu0 %1836
  %v1839 = vadd.f32 %v1748, %v1837
  %v1840 = vtanh.pop %v1839
  %v1841 = vsub.f32 1.0, %v1829
  %1843 = vrot.lane.b32.xlu0 %v1840, 96
  %v1844 = vpop.permute.xlu0 %1843
  %v1846 = vmul.f32 %v1841, %v1844
  %v1847 = vmul.f32 %v1829, %v1227
  %v1848 = vadd.f32 %v1846, %v1847
  %1850 = vrot.lane.b32.xlu0 %v1848, 96
  %v1851 = vpop.permute.xlu0 %1850
  %v1853 = vsel %vm118, %v1851, 0.0
  %1854 = vadd.xlane.f32.xlu0 %v1853
  %v1855 = vpop.xlane.xlu0 %1854
  %v1856 = vmul.f32 %v1855, %v131
  %v1857 = vsub.f32 %v1848, %v1856
  %v1858 = vmul.f32 %v1857, %v1857
  %1860 = vrot.lane.b32.xlu0 %v1858, 96
  %v1861 = vpop.permute.xlu0 %1860
  %v1863 = vsel %vm118, %v1861, 0.0
  %1864 = vadd.xlane.f32.xlu0 %v1863
  %v1865 = vpop.xlane.xlu0 %1864
  %v1866 = vmul.f32 %v1865, %v131
  %v1867 = vadd.f32 %v1866, 1e-05
  %v1868 = vrsqrt.pop %v1867
  %v1869 = vmul.f32 %v1857, %v1868
  %v1870 = vmul.f32 %v1869, %v1018
  %v1871 = vadd.f32 %v1870, %v1023
  %v1873 = vcombine.high %v1871, %v1871
  %v1875 = vsel %vm1029, %v1871, 0.0
  %v1876 = vrot.slane %v1875, 4
  %v1877 = vadd.f32 %v1875, %v1876
  %v1878 = vrot.slane %v1877, 2
  %v1879 = vadd.f32 %v1877, %v1878
  %v1880 = vrot.slane %v1879, 1
  %v1881 = vadd.f32 %v1879, %v1880
  %v1882 = vsel %vm1029, %v1873, 0.0
  %v1883 = vrot.slane %v1882, 4
  %v1884 = vadd.f32 %v1882, %v1883
  %v1885 = vrot.slane %v1884, 2
  %v1886 = vadd.f32 %v1884, %v1885
  %v1887 = vrot.slane %v1886, 1
  %v1888 = vadd.f32 %v1886, %v1887
  %v1889 = vmul.f32 %v1881, %v1044
  %v1890 = vmul.f32 %v1888, %v1044
  %1891 = vrot.lane.b32.xlu0 %v1871, 96
  %v1892 = vpop.permute.xlu0 %1891
  %v1896 = vcombine.low %v1889, %v1890
  %v1898 = vsel %vm118, %v1892, %v1896
  %v1900 = vsel %vm884, %v1898, 0
  %1902 = vmatprep.subr.mxu0 0.0
  %1903 = vmatpush1.msra.mxu0 %v40
  %1904 = vmatprep.subr.mxu0 0.0
  %1905 = vmatpush1.msra.mxu0 %v41
  %1906 = vmatprep.subr.mxu0 0.0
  %1907 = vmatpush1.msra.mxu0 %v42
  %1908 = vmatprep.subr.mxu0 0.0
  %1909 = vmatpush1.msra.mxu0 %v43
  %1910 = vmatprep.subr.mxu0 0.0
  %1911 = vmatpush1.msra.mxu0 %v44
  %1912 = vmatprep.subr.mxu0 0.0
  %1913 = vmatpush1.msra.mxu0 %v45
  %1914 = vmatprep.subr.mxu0 0.0
  %1915 = vmatpush1.msra.mxu0 %v46
  %1916 = vmatprep.subr.mxu0 0.0
  %1917 = vmatpush1.msra.mxu0 %v47
  %1918 = vmatprep.subr.mxu0 0.0
  %1919 = vmatpush1.msra.mxu0 0.0
  %1920 = vmatprep.subr.mxu0 0.0
  %1921 = vmatpush1.msra.mxu0 0.0
  %1922 = vmatprep.subr.mxu0 0.0
  %1923 = vmatpush1.msra.mxu0 0.0
  %1924 = vmatprep.subr.mxu0 0.0
  %1925 = vmatpush1.msra.mxu0 0.0
  %1926 = vmatprep.subr.mxu0 0.0
  %1927 = vmatpush1.msra.mxu0 0.0
  %1928 = vmatprep.subr.mxu0 0.0
  %1929 = vmatpush1.msra.mxu0 0.0
  %1930 = vmatprep.subr.mxu0 0.0
  %1931 = vmatpush1.msra.mxu0 0.0
  %1932 = vmatprep.subr.mxu0 0.0
  %1933 = vmatpush1.msra.mxu0 0.0
  %1934 = vmatprep.subr.mxu0 0.0
  %1935 = vmatpush1.msra.mxu0 0.0
  %1936 = vmatprep.subr.mxu0 0.0
  %1937 = vmatpush1.msra.mxu0 0.0
  %1938 = vmatprep.subr.mxu0 0.0
  %1939 = vmatpush1.msra.mxu0 0.0
  %1940 = vmatprep.subr.mxu0 0.0
  %1941 = vmatpush1.msra.mxu0 0.0
  %1942 = vmatprep.subr.mxu0 0.0
  %1943 = vmatpush1.msra.mxu0 0.0
  %1944 = vmatprep.subr.mxu0 0.0
  %1945 = vmatpush1.msra.mxu0 0.0
  %1946 = vmatprep.subr.mxu0 0.0
  %1947 = vmatpush1.msra.mxu0 0.0
  %1948 = vmatprep.subr.mxu0 0.0
  %1949 = vmatpush1.msra.mxu0 0.0
  %1950 = vmatprep.subr.mxu0 0.0
  %1951 = vmatpush1.msra.mxu0 0.0
  %1952 = vmatprep.subr.mxu0 0.0
  %1953 = vmatpush1.msra.mxu0 0.0
  %1954 = vmatprep.subr.mxu0 0.0
  %1955 = vmatpush1.msra.mxu0 0.0
  %1956 = vmatprep.subr.mxu0 0.0
  %1957 = vmatpush1.msra.mxu0 0.0
  %1958 = vmatprep.subr.mxu0 0.0
  %1959 = vmatpush1.msra.mxu0 0.0
  %1960 = vmatprep.subr.mxu0 0.0
  %1961 = vmatpush1.msra.mxu0 0.0
  %1962 = vmatprep.subr.mxu0 0.0
  %1963 = vmatpush1.msra.mxu0 0.0
  %1964 = vmatprep.subr.mxu0 0.0
  %1965 = vmatpush1.msra.mxu0 0.0
  %1966 = vmatprep.mubr.f32.mxu0 0.0
  %1967 = vmatmul.mubr.f32.gmra.mrb[0].mxu0 %v1900
  %v1968 = vpop.f32.mrb[0].mxu0
  %v1969 = vadd.f32 %v113, %v1968
  %v1970 = vpop.f32.mrb[0].mxu0
  %1971 = vdwg.mxu0
  %v1972 = vmax.f32 %v1969, 0.0
  %v1974 = vcombine.high %v1972, %v1972
  %v1976 = vsel %vm1132, %v1972, 0.0
  %v1977 = vrot.slane %v1976, 4
  %v1978 = vadd.f32 %v1976, %v1977
  %v1979 = vrot.slane %v1978, 2
  %v1980 = vadd.f32 %v1978, %v1979
  %v1981 = vrot.slane %v1980, 1
  %v1982 = vadd.f32 %v1980, %v1981
  %v1983 = vsel %vm1132, %v1974, 0.0
  %v1984 = vrot.slane %v1983, 4
  %v1985 = vadd.f32 %v1983, %v1984
  %v1986 = vrot.slane %v1985, 2
  %v1987 = vadd.f32 %v1985, %v1986
  %v1988 = vrot.slane %v1987, 1
  %v1989 = vadd.f32 %v1987, %v1988
  %v1990 = vmul.f32 %v1982, %v1044
  %v1991 = vmul.f32 %v1989, %v1044
  %v1994 = vcombine.low %v1990, %v1991
  %1996 = vmatprep.subr.mxu0 0.0
  %1997 = vmatpush1.msra.mxu0 %v48
  %1998 = vmatprep.subr.mxu0 0.0
  %1999 = vmatpush1.msra.mxu0 %v49
  %2000 = vmatprep.subr.mxu0 0.0
  %2001 = vmatpush1.msra.mxu0 %v50
  %2002 = vmatprep.subr.mxu0 0.0
  %2003 = vmatpush1.msra.mxu0 %v51
  %2004 = vmatprep.subr.mxu0 0.0
  %2005 = vmatpush1.msra.mxu0 %v52
  %2006 = vmatprep.subr.mxu0 0.0
  %2007 = vmatpush1.msra.mxu0 %v53
  %2008 = vmatprep.subr.mxu0 0.0
  %2009 = vmatpush1.msra.mxu0 %v54
  %2010 = vmatprep.subr.mxu0 0.0
  %2011 = vmatpush1.msra.mxu0 %v55
  %2012 = vmatprep.subr.mxu0 0.0
  %2013 = vmatpush1.msra.mxu0 %v56
  %2014 = vmatprep.subr.mxu0 0.0
  %2015 = vmatpush1.msra.mxu0 %v57
  %2016 = vmatprep.subr.mxu0 0.0
  %2017 = vmatpush1.msra.mxu0 %v58
  %2018 = vmatprep.subr.mxu0 0.0
  %2019 = vmatpush1.msra.mxu0 %v59
  %2020 = vmatprep.subr.mxu0 0.0
  %2021 = vmatpush1.msra.mxu0 %v60
  %2022 = vmatprep.subr.mxu0 0.0
  %2023 = vmatpush1.msra.mxu0 %v61
  %2024 = vmatprep.subr.mxu0 0.0
  %2025 = vmatpush1.msra.mxu0 %v62
  %2026 = vmatprep.subr.mxu0 0.0
  %2027 = vmatpush1.msra.mxu0 %v63
  %2028 = vmatprep.subr.mxu0 0.0
  %2029 = vmatpush1.msra.mxu0 %v64
  %2030 = vmatprep.subr.mxu0 0.0
  %2031 = vmatpush1.msra.mxu0 %v65
  %2032 = vmatprep.subr.mxu0 0.0
  %2033 = vmatpush1.msra.mxu0 %v66
  %2034 = vmatprep.subr.mxu0 0.0
  %2035 = vmatpush1.msra.mxu0 %v67
  %2036 = vmatprep.subr.mxu0 0.0
  %2037 = vmatpush1.msra.mxu0 %v68
  %2038 = vmatprep.subr.mxu0 0.0
  %2039 = vmatpush1.msra.mxu0 %v69
  %2040 = vmatprep.subr.mxu0 0.0
  %2041 = vmatpush1.msra.mxu0 %v70
  %2042 = vmatprep.subr.mxu0 0.0
  %2043 = vmatpush1.msra.mxu0 %v71
  %2044 = vmatprep.subr.mxu0 0.0
  %2045 = vmatpush1.msra.mxu0 %v72
  %2046 = vmatprep.subr.mxu0 0.0
  %2047 = vmatpush1.msra.mxu0 %v73
  %2048 = vmatprep.subr.mxu0 0.0
  %2049 = vmatpush1.msra.mxu0 %v74
  %2050 = vmatprep.subr.mxu0 0.0
  %2051 = vmatpush1.msra.mxu0 %v75
  %2052 = vmatprep.subr.mxu0 0.0
  %2053 = vmatpush1.msra.mxu0 %v76
  %2054 = vmatprep.subr.mxu0 0.0
  %2055 = vmatpush1.msra.mxu0 %v77
  %2056 = vmatprep.subr.mxu0 0.0
  %2057 = vmatpush1.msra.mxu0 %v78
  %2058 = vmatprep.subr.mxu0 0.0
  %2059 = vmatpush1.msra.mxu0 %v79
  %2060 = vmatprep.mubr.f32.mxu0 %v1994
  %2061 = vmatmul.mubr.f32.gmra.mrb[0].mxu0 %v1972
  %v2062 = vpop.f32.mrb[0].mxu0
  %v2063 = vadd.f32 %v117, %v2062
  %v2064 = vpop.f32.mrb[0].mxu0
  %2065 = vdwg.mxu0
  %2067 = vrot.lane.b32.xlu0 %v2063, 32
  %v2068 = vpop.permute.xlu0 %2067
  %v2070 = vadd.f32 %v1848, %v2068
  %2072 = vrot.lane.b32.xlu0 %v2070, 96
  %v2073 = vpop.permute.xlu0 %2072
  %v2075 = vsel %vm118, %v2073, 0.0
  %2076 = vadd.xlane.f32.xlu0 %v2075
  %v2077 = vpop.xlane.xlu0 %2076
  %v2078 = vmul.f32 %v2077, %v131
  %v2079 = vsub.f32 %v2070, %v2078
  %v2080 = vmul.f32 %v2079, %v2079
  %2082 = vrot.lane.b32.xlu0 %v2080, 96
  %v2083 = vpop.permute.xlu0 %2082
  %v2085 = vsel %vm118, %v2083, 0.0
  %2086 = vadd.xlane.f32.xlu0 %v2085
  %v2087 = vpop.xlane.xlu0 %2086
  %v2088 = vmul.f32 %v2087, %v131
  %v2089 = vadd.f32 %v2088, 1e-05
  %v2090 = vrsqrt.pop %v2089
  %v2091 = vmul.f32 %v2079, %v2090
  %v2092 = vmul.f32 %v2091, %v1251
  %v2093 = vadd.f32 %v2092, %v1256
  %2095 = vrot.lane.b32.xlu0 %v2093, 96
  %v2096 = vpop.permute.xlu0 %2095
  %v2097 = vsel %vm118, %v2096, 0
  %2099 = vmatprep.subr.mxu0 0.0
  %2100 = vmatpush1.msra.mxu0 %v28
  %2101 = vmatprep.subr.mxu0 0.0
  %2102 = vmatpush1.msra.mxu0 %v31
  %2103 = vmatprep.subr.mxu0 0.0
  %2104 = vmatpush1.msra.mxu0 %v34
  %2105 = vmatprep.subr.mxu0 0.0
  %2106 = vmatpush1.msra.mxu0 %v37
  %2107 = vmatprep.subr.mxu0 0.0
  %2108 = vmatpush1.msra.mxu0 0.0
  %2109 = vmatprep.subr.mxu0 0.0
  %2110 = vmatpush1.msra.mxu0 0.0
  %2111 = vmatprep.subr.mxu0 0.0
  %2112 = vmatpush1.msra.mxu0 0.0
  %2113 = vmatprep.subr.mxu0 0.0
  %2114 = vmatpush1.msra.mxu0 0.0
  %2115 = vmatprep.subr.mxu0 0.0
  %2116 = vmatpush1.msra.mxu0 0.0
  %2117 = vmatprep.subr.mxu0 0.0
  %2118 = vmatpush1.msra.mxu0 0.0
  %2119 = vmatprep.subr.mxu0 0.0
  %2120 = vmatpush1.msra.mxu0 0.0
  %2121 = vmatprep.subr.mxu0 0.0
  %2122 = vmatpush1.msra.mxu0 0.0
  %2123 = vmatprep.subr.mxu0 0.0
  %2124 = vmatpush1.msra.mxu0 0.0
  %2125 = vmatprep.subr.mxu0 0.0
  %2126 = vmatpush1.msra.mxu0 0.0
  %2127 = vmatprep.subr.mxu0 0.0
  %2128 = vmatpush1.msra.mxu0 0.0
  %2129 = vmatprep.subr.mxu0 0.0
  %2130 = vmatpush1.msra.mxu0 0.0
  %2131 = vmatprep.subr.mxu0 0.0
  %2132 = vmatpush1.msra.mxu0 0.0
  %2133 = vmatprep.subr.mxu0 0.0
  %2134 = vmatpush1.msra.mxu0 0.0
  %2135 = vmatprep.subr.mxu0 0.0
  %2136 = vmatpush1.msra.mxu0 0.0
  %2137 = vmatprep.subr.mxu0 0.0
  %2138 = vmatpush1.msra.mxu0 0.0
  %2139 = vmatprep.subr.mxu0 0.0
  %2140 = vmatpush1.msra.mxu0 0.0
  %2141 = vmatprep.subr.mxu0 0.0
  %2142 = vmatpush1.msra.mxu0 0.0
  %2143 = vmatprep.subr.mxu0 0.0
  %2144 = vmatpush1.msra.mxu0 0.0
  %2145 = vmatprep.subr.mxu0 0.0
  %2146 = vmatpush1.msra.mxu0 0.0
  %2147 = vmatprep.subr.mxu0 0.0
  %2148 = vmatpush1.msra.mxu0 0.0
  %2149 = vmatprep.subr.mxu0 0.0
  %2150 = vmatpush1.msra.mxu0 0.0
  %2151 = vmatprep.subr.mxu0 0.0
  %2152 = vmatpush1.msra.mxu0 0.0
  %2153 = vmatprep.subr.mxu0 0.0
  %2154 = vmatpush1.msra.mxu0 0.0
  %2155 = vmatprep.subr.mxu0 0.0
  %2156 = vmatpush1.msra.mxu0 0.0
  %2157 = vmatprep.subr.mxu0 0.0
  %2158 = vmatpush1.msra.mxu0 0.0
  %2159 = vmatprep.subr.mxu0 0.0
  %2160 = vmatpush1.msra.mxu0 0.0
  %2161 = vmatprep.subr.mxu0 0.0
  %2162 = vmatpush1.msra.mxu0 0.0
  %2163 = vmatprep.mubr.f32.mxu0 0.0
  %2164 = vmatmul.mubr.f32.gmra.mrb[0].mxu0 %v2097
  %v2165 = vpop.f32.mrb[0].mxu0
  %v2166 = vadd.f32 %v101, %v2165
  %v2167 = vpop.f32.mrb[0].mxu0
  %2168 = vdwg.mxu0
  %v2170 = vcombine.high %v2166, %v2166
  %v2171 = vsel %vm118, %v2166, 0
  %2173 = vmatprep.subr.mxu0 0.0
  %2174 = vmatpush1.xpose.msra.mxu0 %v398
  %2175 = vmatprep.subr.mxu0 0.0
  %2176 = vmatpush1.xpose.msra.mxu0 %v401
  %2177 = vmatprep.subr.mxu0 0.0
  %2178 = vmatpush1.xpose.msra.mxu0 0.0
  %2179 = vmatprep.subr.mxu0 0.0
  %2180 = vmatpush1.xpose.msra.mxu0 0.0
  %2181 = vmatprep.subr.mxu0 0.0
  %2182 = vmatpush1.xpose.msra.mxu0 0.0
  %2183 = vmatprep.subr.mxu0 0.0
  %2184 = vmatpush1.xpose.msra.mxu0 0.0
  %2185 = vmatprep.subr.mxu0 0.0
  %2186 = vmatpush1.xpose.msra.mxu0 0.0
  %2187 = vmatprep.subr.mxu0 0.0
  %2188 = vmatpush1.xpose.msra.mxu0 0.0
  %2189 = vmatprep.subr.mxu0 0.0
  %2190 = vmatpush1.xpose.msra.mxu0 0.0
  %2191 = vmatprep.subr.mxu0 0.0
  %2192 = vmatpush1.xpose.msra.mxu0 0.0
  %2193 = vmatprep.subr.mxu0 0.0
  %2194 = vmatpush1.xpose.msra.mxu0 0.0
  %2195 = vmatprep.subr.mxu0 0.0
  %2196 = vmatpush1.xpose.msra.mxu0 0.0
  %2197 = vmatprep.subr.mxu0 0.0
  %2198 = vmatpush1.xpose.msra.mxu0 0.0
  %2199 = vmatprep.subr.mxu0 0.0
  %2200 = vmatpush1.xpose.msra.mxu0 0.0
  %2201 = vmatprep.subr.mxu0 0.0
  %2202 = vmatpush1.xpose.msra.mxu0 0.0
  %2203 = vmatprep.subr.mxu0 0.0
  %2204 = vmatpush1.xpose.msra.mxu0 0.0
  %2205 = vmatprep.subr.mxu0 0.0
  %2206 = vmatpush1.xpose.msra.mxu0 0.0
  %2207 = vmatprep.subr.mxu0 0.0
  %2208 = vmatpush1.xpose.msra.mxu0 0.0
  %2209 = vmatprep.subr.mxu0 0.0
  %2210 = vmatpush1.xpose.msra.mxu0 0.0
  %2211 = vmatprep.subr.mxu0 0.0
  %2212 = vmatpush1.xpose.msra.mxu0 0.0
  %2213 = vmatprep.subr.mxu0 0.0
  %2214 = vmatpush1.xpose.msra.mxu0 0.0
  %2215 = vmatprep.subr.mxu0 0.0
  %2216 = vmatpush1.xpose.msra.mxu0 0.0
  %2217 = vmatprep.subr.mxu0 0.0
  %2218 = vmatpush1.xpose.msra.mxu0 0.0
  %2219 = vmatprep.subr.mxu0 0.0
  %2220 = vmatpush1.xpose.msra.mxu0 0.0
  %2221 = vmatprep.subr.mxu0 0.0
  %2222 = vmatpush1.xpose.msra.mxu0 0.0
  %2223 = vmatprep.subr.mxu0 0.0
  %2224 = vmatpush1.xpose.msra.mxu0 0.0
  %2225 = vmatprep.subr.mxu0 0.0
  %2226 = vmatpush1.xpose.msra.mxu0 0.0
  %2227 = vmatprep.subr.mxu0 0.0
  %2228 = vmatpush1.xpose.msra.mxu0 0.0
  %2229 = vmatprep.subr.mxu0 0.0
  %2230 = vmatpush1.xpose.msra.mxu0 0.0
  %2231 = vmatprep.subr.mxu0 0.0
  %2232 = vmatpush1.xpose.msra.mxu0 0.0
  %2233 = vmatprep.subr.mxu0 0.0
  %2234 = vmatpush1.xpose.msra.mxu0 0.0
  %2235 = vmatprep.subr.mxu0 0.0
  %2236 = vmatpush1.xpose.msra.mxu0 0.0
  %2237 = vmatprep.mubr.f32.mxu0 0.0
  %2238 = vmatmul.mubr.f32.gmra.mrb[0].mxu0 %v2171
  %v2239 = vpop.f32.mrb[0].mxu0
  %v2240 = vadd.f32 0.0, %v2239
  %v2241 = vpop.f32.mrb[0].mxu0
  %2242 = vdwg.mxu0
  %v2243 = vsel %vm118, %v2170, 0
  %2245 = vmatprep.subr.mxu0 0.0
  %2246 = vmatpush1.xpose.msra.mxu0 %v476
  %2247 = vmatprep.subr.mxu0 0.0
  %2248 = vmatpush1.xpose.msra.mxu0 %v479
  %2249 = vmatprep.subr.mxu0 0.0
  %2250 = vmatpush1.xpose.msra.mxu0 0.0
  %2251 = vmatprep.subr.mxu0 0.0
  %2252 = vmatpush1.xpose.msra.mxu0 0.0
  %2253 = vmatprep.subr.mxu0 0.0
  %2254 = vmatpush1.xpose.msra.mxu0 0.0
  %2255 = vmatprep.subr.mxu0 0.0
  %2256 = vmatpush1.xpose.msra.mxu0 0.0
  %2257 = vmatprep.subr.mxu0 0.0
  %2258 = vmatpush1.xpose.msra.mxu0 0.0
  %2259 = vmatprep.subr.mxu0 0.0
  %2260 = vmatpush1.xpose.msra.mxu0 0.0
  %2261 = vmatprep.subr.mxu0 0.0
  %2262 = vmatpush1.xpose.msra.mxu0 0.0
  %2263 = vmatprep.subr.mxu0 0.0
  %2264 = vmatpush1.xpose.msra.mxu0 0.0
  %2265 = vmatprep.subr.mxu0 0.0
  %2266 = vmatpush1.xpose.msra.mxu0 0.0
  %2267 = vmatprep.subr.mxu0 0.0
  %2268 = vmatpush1.xpose.msra.mxu0 0.0
  %2269 = vmatprep.subr.mxu0 0.0
  %2270 = vmatpush1.xpose.msra.mxu0 0.0
  %2271 = vmatprep.subr.mxu0 0.0
  %2272 = vmatpush1.xpose.msra.mxu0 0.0
  %2273 = vmatprep.subr.mxu0 0.0
  %2274 = vmatpush1.xpose.msra.mxu0 0.0
  %2275 = vmatprep.subr.mxu0 0.0
  %2276 = vmatpush1.xpose.msra.mxu0 0.0
  %2277 = vmatprep.subr.mxu0 0.0
  %2278 = vmatpush1.xpose.msra.mxu0 0.0
  %2279 = vmatprep.subr.mxu0 0.0
  %2280 = vmatpush1.xpose.msra.mxu0 0.0
  %2281 = vmatprep.subr.mxu0 0.0
  %2282 = vmatpush1.xpose.msra.mxu0 0.0
  %2283 = vmatprep.subr.mxu0 0.0
  %2284 = vmatpush1.xpose.msra.mxu0 0.0
  %2285 = vmatprep.subr.mxu0 0.0
  %2286 = vmatpush1.xpose.msra.mxu0 0.0
  %2287 = vmatprep.subr.mxu0 0.0
  %2288 = vmatpush1.xpose.msra.mxu0 0.0
  %2289 = vmatprep.subr.mxu0 0.0
  %2290 = vmatpush1.xpose.msra.mxu0 0.0
  %2291 = vmatprep.subr.mxu0 0.0
  %2292 = vmatpush1.xpose.msra.mxu0 0.0
  %2293 = vmatprep.subr.mxu0 0.0
  %2294 = vmatpush1.xpose.msra.mxu0 0.0
  %2295 = vmatprep.subr.mxu0 0.0
  %2296 = vmatpush1.xpose.msra.mxu0 0.0
  %2297 = vmatprep.subr.mxu0 0.0
  %2298 = vmatpush1.xpose.msra.mxu0 0.0
  %2299 = vmatprep.subr.mxu0 0.0
  %2300 = vmatpush1.xpose.msra.mxu0 0.0
  %2301 = vmatprep.subr.mxu0 0.0
  %2302 = vmatpush1.xpose.msra.mxu0 0.0
  %2303 = vmatprep.subr.mxu0 0.0
  %2304 = vmatpush1.xpose.msra.mxu0 0.0
  %2305 = vmatprep.subr.mxu0 0.0
  %2306 = vmatpush1.xpose.msra.mxu0 0.0
  %2307 = vmatprep.subr.mxu0 0.0
  %2308 = vmatpush1.xpose.msra.mxu0 0.0
  %2309 = vmatprep.mubr.f32.mxu0 0.0
  %2310 = vmatmul.mubr.f32.gmra.mrb[0].mxu0 %v2243
  %v2311 = vpop.f32.mrb[0].mxu0
  %v2312 = vadd.f32 0.0, %v2311
  %v2313 = vpop.f32.mrb[0].mxu0
  %2314 = vdwg.mxu0
  %v2315 = vsel %vm551, %v2240, -inf
  %v2316 = vrot.slane %v2315, 4
  %v2317 = vmax.f32 %v2315, %v2316
  %v2318 = vrot.slane %v2317, 2
  %v2319 = vmax.f32 %v2317, %v2318
  %v2320 = vrot.slane %v2319, 1
  %v2321 = vmax.f32 %v2319, %v2320
  %v2322 = vsel %vm551, %v2312, -inf
  %v2323 = vrot.slane %v2322, 4
  %v2324 = vmax.f32 %v2322, %v2323
  %v2325 = vrot.slane %v2324, 2
  %v2326 = vmax.f32 %v2324, %v2325
  %v2327 = vrot.slane %v2326, 1
  %v2328 = vmax.f32 %v2326, %v2327
  %v2329 = vsub.f32 %v2240, %v2321
  %v2330 = vsub.f32 %v2312, %v2328
  %v2331 = vmul.f32 %v2329, 1.442695
  %v2332 = vpow.pop %v2331
  %v2333 = vmul.f32 %v2330, 1.442695
  %v2334 = vpow.pop %v2333
  %v2335 = vsel %vm551, %v2332, 0.0
  %v2336 = vrot.slane %v2335, 4
  %v2337 = vadd.f32 %v2335, %v2336
  %v2338 = vrot.slane %v2337, 2
  %v2339 = vadd.f32 %v2337, %v2338
  %v2340 = vrot.slane %v2339, 1
  %v2341 = vadd.f32 %v2339, %v2340
  %v2342 = vsel %vm551, %v2334, 0.0
  %v2343 = vrot.slane %v2342, 4
  %v2344 = vadd.f32 %v2342, %v2343
  %v2345 = vrot.slane %v2344, 2
  %v2346 = vadd.f32 %v2344, %v2345
  %v2347 = vrot.slane %v2346, 1
  %v2348 = vadd.f32 %v2346, %v2347
  %v2349 = vrcp.pop %v2341
  %v2350 = vrcp.pop %v2348
  %v2351 = vmul.f32 %v2332, %v2349
  %v2352 = vmul.f32 %v2334, %v2350
  %v2353 = vadd.f32 %v2351, 1e-08
  %v2354 = vadd.f32 %v2352, 1e-08
  %v2355 = vsel %vm551, %v2353, 0.0
  %2356 = vadd.xlane.f32.xlu0 %v2355
  %v2357 = vpop.xlane.xlu0 %2356
  %v2358 = vsel %vm551, %v2354, 0.0
  %2359 = vadd.xlane.f32.xlu0 %v2358
  %v2360 = vpop.xlane.xlu0 %2359
  %v2361 = vrcp.pop %v2357
  %v2362 = vrcp.pop %v2360
  %v2363 = vmul.f32 %v2353, %v2361
  %v2364 = vmul.f32 %v2354, %v2362
  %v2366 = vsel %vm608, %v2363, 0
  %2368 = vmatprep.subr.mxu0 0.0
  %2369 = vmatpush1.msra.mxu0 %v603
  %2370 = vmatprep.subr.mxu0 0.0
  %2371 = vmatpush1.msra.mxu0 %v605
  %2372 = vmatprep.subr.mxu0 0.0
  %2373 = vmatpush1.msra.mxu0 0.0
  %2374 = vmatprep.subr.mxu0 0.0
  %2375 = vmatpush1.msra.mxu0 0.0
  %2376 = vmatprep.subr.mxu0 0.0
  %2377 = vmatpush1.msra.mxu0 0.0
  %2378 = vmatprep.subr.mxu0 0.0
  %2379 = vmatpush1.msra.mxu0 0.0
  %2380 = vmatprep.subr.mxu0 0.0
  %2381 = vmatpush1.msra.mxu0 0.0
  %2382 = vmatprep.subr.mxu0 0.0
  %2383 = vmatpush1.msra.mxu0 0.0
  %2384 = vmatprep.subr.mxu0 0.0
  %2385 = vmatpush1.msra.mxu0 0.0
  %2386 = vmatprep.subr.mxu0 0.0
  %2387 = vmatpush1.msra.mxu0 0.0
  %2388 = vmatprep.subr.mxu0 0.0
  %2389 = vmatpush1.msra.mxu0 0.0
  %2390 = vmatprep.subr.mxu0 0.0
  %2391 = vmatpush1.msra.mxu0 0.0
  %2392 = vmatprep.subr.mxu0 0.0
  %2393 = vmatpush1.msra.mxu0 0.0
  %2394 = vmatprep.subr.mxu0 0.0
  %2395 = vmatpush1.msra.mxu0 0.0
  %2396 = vmatprep.subr.mxu0 0.0
  %2397 = vmatpush1.msra.mxu0 0.0
  %2398 = vmatprep.subr.mxu0 0.0
  %2399 = vmatpush1.msra.mxu0 0.0
  %2400 = vmatprep.subr.mxu0 0.0
  %2401 = vmatpush1.msra.mxu0 0.0
  %2402 = vmatprep.subr.mxu0 0.0
  %2403 = vmatpush1.msra.mxu0 0.0
  %2404 = vmatprep.subr.mxu0 0.0
  %2405 = vmatpush1.msra.mxu0 0.0
  %2406 = vmatprep.subr.mxu0 0.0
  %2407 = vmatpush1.msra.mxu0 0.0
  %2408 = vmatprep.subr.mxu0 0.0
  %2409 = vmatpush1.msra.mxu0 0.0
  %2410 = vmatprep.subr.mxu0 0.0
  %2411 = vmatpush1.msra.mxu0 0.0
  %2412 = vmatprep.subr.mxu0 0.0
  %2413 = vmatpush1.msra.mxu0 0.0
  %2414 = vmatprep.subr.mxu0 0.0
  %2415 = vmatpush1.msra.mxu0 0.0
  %2416 = vmatprep.subr.mxu0 0.0
  %2417 = vmatpush1.msra.mxu0 0.0
  %2418 = vmatprep.subr.mxu0 0.0
  %2419 = vmatpush1.msra.mxu0 0.0
  %2420 = vmatprep.subr.mxu0 0.0
  %2421 = vmatpush1.msra.mxu0 0.0
  %2422 = vmatprep.subr.mxu0 0.0
  %2423 = vmatpush1.msra.mxu0 0.0
  %2424 = vmatprep.subr.mxu0 0.0
  %2425 = vmatpush1.msra.mxu0 0.0
  %2426 = vmatprep.subr.mxu0 0.0
  %2427 = vmatpush1.msra.mxu0 0.0
  %2428 = vmatprep.subr.mxu0 0.0
  %2429 = vmatpush1.msra.mxu0 0.0
  %2430 = vmatprep.subr.mxu0 0.0
  %2431 = vmatpush1.msra.mxu0 0.0
  %2432 = vmatprep.mubr.f32.mxu0 0.0
  %2433 = vmatmul.mubr.f32.gmra.mrb[0].mxu0 %v2366
  %v2434 = vpop.f32.mrb[0].mxu0
  %v2435 = vadd.f32 0.0, %v2434
  %v2436 = vpop.f32.mrb[0].mxu0
  %2437 = vdwg.mxu0
  %v2439 = vsel %vm608, %v2364, 0
  %2441 = vmatprep.subr.mxu0 0.0
  %2442 = vmatpush1.msra.mxu0 %v683
  %2443 = vmatprep.subr.mxu0 0.0
  %2444 = vmatpush1.msra.mxu0 %v685
  %2445 = vmatprep.subr.mxu0 0.0
  %2446 = vmatpush1.msra.mxu0 0.0
  %2447 = vmatprep.subr.mxu0 0.0
  %2448 = vmatpush1.msra.mxu0 0.0
  %2449 = vmatprep.subr.mxu0 0.0
  %2450 = vmatpush1.msra.mxu0 0.0
  %2451 = vmatprep.subr.mxu0 0.0
  %2452 = vmatpush1.msra.mxu0 0.0
  %2453 = vmatprep.subr.mxu0 0.0
  %2454 = vmatpush1.msra.mxu0 0.0
  %2455 = vmatprep.subr.mxu0 0.0
  %2456 = vmatpush1.msra.mxu0 0.0
  %2457 = vmatprep.subr.mxu0 0.0
  %2458 = vmatpush1.msra.mxu0 0.0
  %2459 = vmatprep.subr.mxu0 0.0
  %2460 = vmatpush1.msra.mxu0 0.0
  %2461 = vmatprep.subr.mxu0 0.0
  %2462 = vmatpush1.msra.mxu0 0.0
  %2463 = vmatprep.subr.mxu0 0.0
  %2464 = vmatpush1.msra.mxu0 0.0
  %2465 = vmatprep.subr.mxu0 0.0
  %2466 = vmatpush1.msra.mxu0 0.0
  %2467 = vmatprep.subr.mxu0 0.0
  %2468 = vmatpush1.msra.mxu0 0.0
  %2469 = vmatprep.subr.mxu0 0.0
  %2470 = vmatpush1.msra.mxu0 0.0
  %2471 = vmatprep.subr.mxu0 0.0
  %2472 = vmatpush1.msra.mxu0 0.0
  %2473 = vmatprep.subr.mxu0 0.0
  %2474 = vmatpush1.msra.mxu0 0.0
  %2475 = vmatprep.subr.mxu0 0.0
  %2476 = vmatpush1.msra.mxu0 0.0
  %2477 = vmatprep.subr.mxu0 0.0
  %2478 = vmatpush1.msra.mxu0 0.0
  %2479 = vmatprep.subr.mxu0 0.0
  %2480 = vmatpush1.msra.mxu0 0.0
  %2481 = vmatprep.subr.mxu0 0.0
  %2482 = vmatpush1.msra.mxu0 0.0
  %2483 = vmatprep.subr.mxu0 0.0
  %2484 = vmatpush1.msra.mxu0 0.0
  %2485 = vmatprep.subr.mxu0 0.0
  %2486 = vmatpush1.msra.mxu0 0.0
  %2487 = vmatprep.subr.mxu0 0.0
  %2488 = vmatpush1.msra.mxu0 0.0
  %2489 = vmatprep.subr.mxu0 0.0
  %2490 = vmatpush1.msra.mxu0 0.0
  %2491 = vmatprep.subr.mxu0 0.0
  %2492 = vmatpush1.msra.mxu0 0.0
  %2493 = vmatprep.subr.mxu0 0.0
  %2494 = vmatpush1.msra.mxu0 0.0
  %2495 = vmatprep.subr.mxu0 0.0
  %2496 = vmatpush1.msra.mxu0 0.0
  %2497 = vmatprep.subr.mxu0 0.0
  %2498 = vmatpush1.msra.mxu0 0.0
  %2499 = vmatprep.subr.mxu0 0.0
  %2500 = vmatpush1.msra.mxu0 0.0
  %2501 = vmatprep.subr.mxu0 0.0
  %2502 = vmatpush1.msra.mxu0 0.0
  %2503 = vmatprep.subr.mxu0 0.0
  %2504 = vmatpush1.msra.mxu0 0.0
  %2505 = vmatprep.mubr.f32.mxu0 0.0
  %2506 = vmatmul.mubr.f32.gmra.mrb[0].mxu0 %v2439
  %v2507 = vpop.f32.mrb[0].mxu0
  %v2508 = vadd.f32 0.0, %v2507
  %v2509 = vpop.f32.mrb[0].mxu0
  %2510 = vdwg.mxu0
  %v2513 = vcombine.low %v2435, %v2508
  %v2514 = vsel %vm118, %v2513, 0
  %2516 = vmatprep.subr.mxu0 0.0
  %2517 = vmatpush1.msra.mxu0 %v784
  %2518 = vmatprep.subr.mxu0 0.0
  %2519 = vmatpush1.msra.mxu0 %v785
  %2520 = vmatprep.subr.mxu0 0.0
  %2521 = vmatpush1.msra.mxu0 %v786
  %2522 = vmatprep.subr.mxu0 0.0
  %2523 = vmatpush1.msra.mxu0 %v787
  %2524 = vmatprep.subr.mxu0 0.0
  %2525 = vmatpush1.msra.mxu0 0.0
  %2526 = vmatprep.subr.mxu0 0.0
  %2527 = vmatpush1.msra.mxu0 0.0
  %2528 = vmatprep.subr.mxu0 0.0
  %2529 = vmatpush1.msra.mxu0 0.0
  %2530 = vmatprep.subr.mxu0 0.0
  %2531 = vmatpush1.msra.mxu0 0.0
  %2532 = vmatprep.subr.mxu0 0.0
  %2533 = vmatpush1.msra.mxu0 0.0
  %2534 = vmatprep.subr.mxu0 0.0
  %2535 = vmatpush1.msra.mxu0 0.0
  %2536 = vmatprep.subr.mxu0 0.0
  %2537 = vmatpush1.msra.mxu0 0.0
  %2538 = vmatprep.subr.mxu0 0.0
  %2539 = vmatpush1.msra.mxu0 0.0
  %2540 = vmatprep.subr.mxu0 0.0
  %2541 = vmatpush1.msra.mxu0 0.0
  %2542 = vmatprep.subr.mxu0 0.0
  %2543 = vmatpush1.msra.mxu0 0.0
  %2544 = vmatprep.subr.mxu0 0.0
  %2545 = vmatpush1.msra.mxu0 0.0
  %2546 = vmatprep.subr.mxu0 0.0
  %2547 = vmatpush1.msra.mxu0 0.0
  %2548 = vmatprep.subr.mxu0 0.0
  %2549 = vmatpush1.msra.mxu0 0.0
  %2550 = vmatprep.subr.mxu0 0.0
  %2551 = vmatpush1.msra.mxu0 0.0
  %2552 = vmatprep.subr.mxu0 0.0
  %2553 = vmatpush1.msra.mxu0 0.0
  %2554 = vmatprep.subr.mxu0 0.0
  %2555 = vmatpush1.msra.mxu0 0.0
  %2556 = vmatprep.subr.mxu0 0.0
  %2557 = vmatpush1.msra.mxu0 0.0
  %2558 = vmatprep.subr.mxu0 0.0
  %2559 = vmatpush1.msra.mxu0 0.0
  %2560 = vmatprep.subr.mxu0 0.0
  %2561 = vmatpush1.msra.mxu0 0.0
  %2562 = vmatprep.subr.mxu0 0.0
  %2563 = vmatpush1.msra.mxu0 0.0
  %2564 = vmatprep.subr.mxu0 0.0
  %2565 = vmatpush1.msra.mxu0 0.0
  %2566 = vmatprep.subr.mxu0 0.0
  %2567 = vmatpush1.msra.mxu0 0.0
  %2568 = vmatprep.subr.mxu0 0.0
  %2569 = vmatpush1.msra.mxu0 0.0
  %2570 = vmatprep.subr.mxu0 0.0
  %2571 = vmatpush1.msra.mxu0 0.0
  %2572 = vmatprep.subr.mxu0 0.0
  %2573 = vmatpush1.msra.mxu0 0.0
  %2574 = vmatprep.subr.mxu0 0.0
  %2575 = vmatpush1.msra.mxu0 0.0
  %2576 = vmatprep.subr.mxu0 0.0
  %2577 = vmatpush1.msra.mxu0 0.0
  %2578 = vmatprep.subr.mxu0 0.0
  %2579 = vmatpush1.msra.mxu0 0.0
  %2580 = vmatprep.mubr.f32.mxu0 0.0
  %2581 = vmatmul.mubr.f32.gmra.mrb[0].mxu0 %v2514
  %v2582 = vpop.f32.mrb[0].mxu0
  %v2583 = vadd.f32 %v105, %v2582
  %v2584 = vpop.f32.mrb[0].mxu0
  %2585 = vdwg.mxu0
  %v2586 = vsel %vm118, %v2073, 0
  %2588 = vmatprep.subr.mxu0 0.0
  %2589 = vmatpush1.msra.mxu0 %v885
  %2590 = vmatprep.subr.mxu0 0.0
  %2591 = vmatpush1.msra.mxu0 %v886
  %2592 = vmatprep.subr.mxu0 0.0
  %2593 = vmatpush1.msra.mxu0 %v887
  %2594 = vmatprep.subr.mxu0 0.0
  %2595 = vmatpush1.msra.mxu0 %v888
  %2596 = vmatprep.subr.mxu0 0.0
  %2597 = vmatpush1.msra.mxu0 0.0
  %2598 = vmatprep.subr.mxu0 0.0
  %2599 = vmatpush1.msra.mxu0 0.0
  %2600 = vmatprep.subr.mxu0 0.0
  %2601 = vmatpush1.msra.mxu0 0.0
  %2602 = vmatprep.subr.mxu0 0.0
  %2603 = vmatpush1.msra.mxu0 0.0
  %2604 = vmatprep.subr.mxu0 0.0
  %2605 = vmatpush1.msra.mxu0 0.0
  %2606 = vmatprep.subr.mxu0 0.0
  %2607 = vmatpush1.msra.mxu0 0.0
  %2608 = vmatprep.subr.mxu0 0.0
  %2609 = vmatpush1.msra.mxu0 0.0
  %2610 = vmatprep.subr.mxu0 0.0
  %2611 = vmatpush1.msra.mxu0 0.0
  %2612 = vmatprep.subr.mxu0 0.0
  %2613 = vmatpush1.msra.mxu0 0.0
  %2614 = vmatprep.subr.mxu0 0.0
  %2615 = vmatpush1.msra.mxu0 0.0
  %2616 = vmatprep.subr.mxu0 0.0
  %2617 = vmatpush1.msra.mxu0 0.0
  %2618 = vmatprep.subr.mxu0 0.0
  %2619 = vmatpush1.msra.mxu0 0.0
  %2620 = vmatprep.subr.mxu0 0.0
  %2621 = vmatpush1.msra.mxu0 0.0
  %2622 = vmatprep.subr.mxu0 0.0
  %2623 = vmatpush1.msra.mxu0 0.0
  %2624 = vmatprep.subr.mxu0 0.0
  %2625 = vmatpush1.msra.mxu0 0.0
  %2626 = vmatprep.subr.mxu0 0.0
  %2627 = vmatpush1.msra.mxu0 0.0
  %2628 = vmatprep.subr.mxu0 0.0
  %2629 = vmatpush1.msra.mxu0 0.0
  %2630 = vmatprep.subr.mxu0 0.0
  %2631 = vmatpush1.msra.mxu0 0.0
  %2632 = vmatprep.subr.mxu0 0.0
  %2633 = vmatpush1.msra.mxu0 0.0
  %2634 = vmatprep.subr.mxu0 0.0
  %2635 = vmatpush1.msra.mxu0 0.0
  %2636 = vmatprep.subr.mxu0 0.0
  %2637 = vmatpush1.msra.mxu0 0.0
  %2638 = vmatprep.subr.mxu0 0.0
  %2639 = vmatpush1.msra.mxu0 0.0
  %2640 = vmatprep.subr.mxu0 0.0
  %2641 = vmatpush1.msra.mxu0 0.0
  %2642 = vmatprep.subr.mxu0 0.0
  %2643 = vmatpush1.msra.mxu0 0.0
  %2644 = vmatprep.subr.mxu0 0.0
  %2645 = vmatpush1.msra.mxu0 0.0
  %2646 = vmatprep.subr.mxu0 0.0
  %2647 = vmatpush1.msra.mxu0 0.0
  %2648 = vmatprep.subr.mxu0 0.0
  %2649 = vmatpush1.msra.mxu0 0.0
  %2650 = vmatprep.subr.mxu0 0.0
  %2651 = vmatpush1.msra.mxu0 0.0
  %2652 = vmatprep.mubr.f32.mxu0 0.0
  %2653 = vmatmul.mubr.f32.gmra.mrb[0].mxu0 %v2586
  %v2654 = vpop.f32.mrb[0].mxu0
  %v2655 = vadd.f32 %v109, %v2654
  %v2656 = vpop.f32.mrb[0].mxu0
  %2657 = vdwg.mxu0
  %v2658 = vadd.f32 %v2583, %v2655
  %v2659 = vxor.u32 %v2658, 2147483648
  %v2660 = vmul.f32 %v2659, 1.442695
  %v2661 = vpow.pop %v2660
  %v2662 = vadd.f32 %v2661, 1.0
  %v2663 = vrcp.pop %v2662
  %v2664 = vmul.f32 1.0, %v2663
  %2666 = vrot.lane.b32.xlu0 %v2655, 64
  %v2667 = vpop.permute.xlu0 %2666
  %v2669 = vmul.f32 %v2664, %v2667
  %2671 = vrot.lane.b32.xlu0 %v2669, 64
  %v2672 = vpop.permute.xlu0 %2671
  %v2674 = vadd.f32 %v2583, %v2672
  %v2675 = vtanh.pop %v2674
  %v2676 = vsub.f32 1.0, %v2664
  %2678 = vrot.lane.b32.xlu0 %v2675, 96
  %v2679 = vpop.permute.xlu0 %2678
  %v2681 = vmul.f32 %v2676, %v2679
  %v2682 = vmul.f32 %v2664, %v2070
  %v2683 = vadd.f32 %v2681, %v2682
  %2685 = vrot.lane.b32.xlu0 %v2683, 96
  %v2686 = vpop.permute.xlu0 %2685
  %v2688 = vsel %vm118, %v2686, 0.0
  %2689 = vadd.xlane.f32.xlu0 %v2688
  %v2690 = vpop.xlane.xlu0 %2689
  %v2691 = vmul.f32 %v2690, %v131
  %v2692 = vsub.f32 %v2683, %v2691
  %v2693 = vmul.f32 %v2692, %v2692
  %2695 = vrot.lane.b32.xlu0 %v2693, 96
  %v2696 = vpop.permute.xlu0 %2695
  %v2698 = vsel %vm118, %v2696, 0.0
  %2699 = vadd.xlane.f32.xlu0 %v2698
  %v2700 = vpop.xlane.xlu0 %2699
  %v2701 = vmul.f32 %v2700, %v131
  %v2702 = vadd.f32 %v2701, 1e-05
  %v2703 = vrsqrt.pop %v2702
  %v2704 = vmul.f32 %v2692, %v2703
  %v2705 = vmul.f32 %v2704, %v1018
  %v2706 = vadd.f32 %v2705, %v1023
  %v2708 = vcombine.high %v2706, %v2706
  %v2710 = vsel %vm1029, %v2706, 0.0
  %v2711 = vrot.slane %v2710, 4
  %v2712 = vadd.f32 %v2710, %v2711
  %v2713 = vrot.slane %v2712, 2
  %v2714 = vadd.f32 %v2712, %v2713
  %v2715 = vrot.slane %v2714, 1
  %v2716 = vadd.f32 %v2714, %v2715
  %v2717 = vsel %vm1029, %v2708, 0.0
  %v2718 = vrot.slane %v2717, 4
  %v2719 = vadd.f32 %v2717, %v2718
  %v2720 = vrot.slane %v2719, 2
  %v2721 = vadd.f32 %v2719, %v2720
  %v2722 = vrot.slane %v2721, 1
  %v2723 = vadd.f32 %v2721, %v2722
  %v2724 = vmul.f32 %v2716, %v1044
  %v2725 = vmul.f32 %v2723, %v1044
  %2726 = vrot.lane.b32.xlu0 %v2706, 96
  %v2727 = vpop.permute.xlu0 %2726
  %v2731 = vcombine.low %v2724, %v2725
  %v2733 = vsel %vm118, %v2727, %v2731
  %v2735 = vsel %vm884, %v2733, 0
  %2737 = vmatprep.subr.mxu0 0.0
  %2738 = vmatpush1.msra.mxu0 %v40
  %2739 = vmatprep.subr.mxu0 0.0
  %2740 = vmatpush1.msra.mxu0 %v41
  %2741 = vmatprep.subr.mxu0 0.0
  %2742 = vmatpush1.msra.mxu0 %v42
  %2743 = vmatprep.subr.mxu0 0.0
  %2744 = vmatpush1.msra.mxu0 %v43
  %2745 = vmatprep.subr.mxu0 0.0
  %2746 = vmatpush1.msra.mxu0 %v44
  %2747 = vmatprep.subr.mxu0 0.0
  %2748 = vmatpush1.msra.mxu0 %v45
  %2749 = vmatprep.subr.mxu0 0.0
  %2750 = vmatpush1.msra.mxu0 %v46
  %2751 = vmatprep.subr.mxu0 0.0
  %2752 = vmatpush1.msra.mxu0 %v47
  %2753 = vmatprep.subr.mxu0 0.0
  %2754 = vmatpush1.msra.mxu0 0.0
  %2755 = vmatprep.subr.mxu0 0.0
  %2756 = vmatpush1.msra.mxu0 0.0
  %2757 = vmatprep.subr.mxu0 0.0
  %2758 = vmatpush1.msra.mxu0 0.0
  %2759 = vmatprep.subr.mxu0 0.0
  %2760 = vmatpush1.msra.mxu0 0.0
  %2761 = vmatprep.subr.mxu0 0.0
  %2762 = vmatpush1.msra.mxu0 0.0
  %2763 = vmatprep.subr.mxu0 0.0
  %2764 = vmatpush1.msra.mxu0 0.0
  %2765 = vmatprep.subr.mxu0 0.0
  %2766 = vmatpush1.msra.mxu0 0.0
  %2767 = vmatprep.subr.mxu0 0.0
  %2768 = vmatpush1.msra.mxu0 0.0
  %2769 = vmatprep.subr.mxu0 0.0
  %2770 = vmatpush1.msra.mxu0 0.0
  %2771 = vmatprep.subr.mxu0 0.0
  %2772 = vmatpush1.msra.mxu0 0.0
  %2773 = vmatprep.subr.mxu0 0.0
  %2774 = vmatpush1.msra.mxu0 0.0
  %2775 = vmatprep.subr.mxu0 0.0
  %2776 = vmatpush1.msra.mxu0 0.0
  %2777 = vmatprep.subr.mxu0 0.0
  %2778 = vmatpush1.msra.mxu0 0.0
  %2779 = vmatprep.subr.mxu0 0.0
  %2780 = vmatpush1.msra.mxu0 0.0
  %2781 = vmatprep.subr.mxu0 0.0
  %2782 = vmatpush1.msra.mxu0 0.0
  %2783 = vmatprep.subr.mxu0 0.0
  %2784 = vmatpush1.msra.mxu0 0.0
  %2785 = vmatprep.subr.mxu0 0.0
  %2786 = vmatpush1.msra.mxu0 0.0
  %2787 = vmatprep.subr.mxu0 0.0
  %2788 = vmatpush1.msra.mxu0 0.0
  %2789 = vmatprep.subr.mxu0 0.0
  %2790 = vmatpush1.msra.mxu0 0.0
  %2791 = vmatprep.subr.mxu0 0.0
  %2792 = vmatpush1.msra.mxu0 0.0
  %2793 = vmatprep.subr.mxu0 0.0
  %2794 = vmatpush1.msra.mxu0 0.0
  %2795 = vmatprep.subr.mxu0 0.0
  %2796 = vmatpush1.msra.mxu0 0.0
  %2797 = vmatprep.subr.mxu0 0.0
  %2798 = vmatpush1.msra.mxu0 0.0
  %2799 = vmatprep.subr.mxu0 0.0
  %2800 = vmatpush1.msra.mxu0 0.0
  %2801 = vmatprep.mubr.f32.mxu0 0.0
  %2802 = vmatmul.mubr.f32.gmra.mrb[0].mxu0 %v2735
  %v2803 = vpop.f32.mrb[0].mxu0
  %v2804 = vadd.f32 %v113, %v2803
  %v2805 = vpop.f32.mrb[0].mxu0
  %2806 = vdwg.mxu0
  %v2807 = vmax.f32 %v2804, 0.0
  %v2809 = vcombine.high %v2807, %v2807
  %v2811 = vsel %vm1132, %v2807, 0.0
  %v2812 = vrot.slane %v2811, 4
  %v2813 = vadd.f32 %v2811, %v2812
  %v2814 = vrot.slane %v2813, 2
  %v2815 = vadd.f32 %v2813, %v2814
  %v2816 = vrot.slane %v2815, 1
  %v2817 = vadd.f32 %v2815, %v2816
  %v2818 = vsel %vm1132, %v2809, 0.0
  %v2819 = vrot.slane %v2818, 4
  %v2820 = vadd.f32 %v2818, %v2819
  %v2821 = vrot.slane %v2820, 2
  %v2822 = vadd.f32 %v2820, %v2821
  %v2823 = vrot.slane %v2822, 1
  %v2824 = vadd.f32 %v2822, %v2823
  %v2825 = vmul.f32 %v2817, %v1044
  %v2826 = vmul.f32 %v2824, %v1044
  %v2829 = vcombine.low %v2825, %v2826
  %2831 = vmatprep.subr.mxu0 0.0
  %2832 = vmatpush1.msra.mxu0 %v48
  %2833 = vmatprep.subr.mxu0 0.0
  %2834 = vmatpush1.msra.mxu0 %v49
  %2835 = vmatprep.subr.mxu0 0.0
  %2836 = vmatpush1.msra.mxu0 %v50
  %2837 = vmatprep.subr.mxu0 0.0
  %2838 = vmatpush1.msra.mxu0 %v51
  %2839 = vmatprep.subr.mxu0 0.0
  %2840 = vmatpush1.msra.mxu0 %v52
  %2841 = vmatprep.subr.mxu0 0.0
  %2842 = vmatpush1.msra.mxu0 %v53
  %2843 = vmatprep.subr.mxu0 0.0
  %2844 = vmatpush1.msra.mxu0 %v54
  %2845 = vmatprep.subr.mxu0 0.0
  %2846 = vmatpush1.msra.mxu0 %v55
  %2847 = vmatprep.subr.mxu0 0.0
  %2848 = vmatpush1.msra.mxu0 %v56
  %2849 = vmatprep.subr.mxu0 0.0
  %2850 = vmatpush1.msra.mxu0 %v57
  %2851 = vmatprep.subr.mxu0 0.0
  %2852 = vmatpush1.msra.mxu0 %v58
  %2853 = vmatprep.subr.mxu0 0.0
  %2854 = vmatpush1.msra.mxu0 %v59
  %2855 = vmatprep.subr.mxu0 0.0
  %2856 = vmatpush1.msra.mxu0 %v60
  %2857 = vmatprep.subr.mxu0 0.0
  %2858 = vmatpush1.msra.mxu0 %v61
  %2859 = vmatprep.subr.mxu0 0.0
  %2860 = vmatpush1.msra.mxu0 %v62
  %2861 = vmatprep.subr.mxu0 0.0
  %2862 = vmatpush1.msra.mxu0 %v63
  %2863 = vmatprep.subr.mxu0 0.0
  %2864 = vmatpush1.msra.mxu0 %v64
  %2865 = vmatprep.subr.mxu0 0.0
  %2866 = vmatpush1.msra.mxu0 %v65
  %2867 = vmatprep.subr.mxu0 0.0
  %2868 = vmatpush1.msra.mxu0 %v66
  %2869 = vmatprep.subr.mxu0 0.0
  %2870 = vmatpush1.msra.mxu0 %v67
  %2871 = vmatprep.subr.mxu0 0.0
  %2872 = vmatpush1.msra.mxu0 %v68
  %2873 = vmatprep.subr.mxu0 0.0
  %2874 = vmatpush1.msra.mxu0 %v69
  %2875 = vmatprep.subr.mxu0 0.0
  %2876 = vmatpush1.msra.mxu0 %v70
  %2877 = vmatprep.subr.mxu0 0.0
  %2878 = vmatpush1.msra.mxu0 %v71
  %2879 = vmatprep.subr.mxu0 0.0
  %2880 = vmatpush1.msra.mxu0 %v72
  %2881 = vmatprep.subr.mxu0 0.0
  %2882 = vmatpush1.msra.mxu0 %v73
  %2883 = vmatprep.subr.mxu0 0.0
  %2884 = vmatpush1.msra.mxu0 %v74
  %2885 = vmatprep.subr.mxu0 0.0
  %2886 = vmatpush1.msra.mxu0 %v75
  %2887 = vmatprep.subr.mxu0 0.0
  %2888 = vmatpush1.msra.mxu0 %v76
  %2889 = vmatprep.subr.mxu0 0.0
  %2890 = vmatpush1.msra.mxu0 %v77
  %2891 = vmatprep.subr.mxu0 0.0
  %2892 = vmatpush1.msra.mxu0 %v78
  %2893 = vmatprep.subr.mxu0 0.0
  %2894 = vmatpush1.msra.mxu0 %v79
  %2895 = vmatprep.mubr.f32.mxu0 %v2829
  %2896 = vmatmul.mubr.f32.gmra.mrb[0].mxu0 %v2807
  %v2897 = vpop.f32.mrb[0].mxu0
  %v2898 = vadd.f32 %v117, %v2897
  %v2899 = vpop.f32.mrb[0].mxu0
  %2900 = vdwg.mxu0
  %2902 = vrot.lane.b32.xlu0 %v2898, 32
  %v2903 = vpop.permute.xlu0 %2902
  %v2905 = vadd.f32 %v2683, %v2903
  %2907 = vrot.lane.b32.xlu0 %v2905, 96
  %v2908 = vpop.permute.xlu0 %2907
  %v2912 = vcombine.low %v2351, %v2352
  %2913 = vrot.lane.b32.xlu0 %v2912, 32
  %v2914 = vpop.permute.xlu0 %2913
  %v2916 = vsel %vm118, %v2908, %v2914
  %vm2917 = vcmask 392192
  %v2918 = vsel %vm2917, %v2916, 0.0
  %2919 = vst [vmem:[%s6] sm:$0xff] %v2918
  // Predicated region
  $region26: #{slot_attention_forward.1} parent=0 // pred_check
    _
  $region27: #{slot_attention_forward.1} parent=0 // pred_check_branch
    %2921 = sbr.rel (0) target = $region29
  $region28: #{slot_attention_forward.1} parent=0 // pred_region
    _
  $region29: #{slot_attention_forward.1} parent=0 // pred_fallthru
    _
  // Predicated region
  $region30: #{slot_attention_forward.1} parent=0 // pred_check
    _
  $region31: #{slot_attention_forward.1} parent=0 // pred_check_branch
    %2923 = sbr.rel (0) target = $region33
  $region32: #{slot_attention_forward.1} parent=0 // pred_region
    _
  $region33: #{slot_attention_forward.1} parent=0 // pred_fallthru
    _

</llo_original>
